<compile_context>
chip_gen: v7x
topology: tpu7x:2x2x1
jax: 0.10.0
libtpu: 0.0.40
codegen_flags: <defaults>
</compile_context>

<pallas_src>
import functools

import jax
import jax.numpy as jnp
from jax import lax
from jax.experimental import pallas as pl
from jax.experimental.pallas import tpu as pltpu


def basic_block_kernel(xpad_ref, w1_ref, b1_ref, w2_ref, b2_ref, o_ref,
                       mid_ref, *, row_chunk):
    """One batch element per grid step.

    xpad_ref : (H+2, W+2, Cin)  f32   spatially zero-padded input (true channels)
    w1_ref   : (9*Cin, Cmid)    bf16  conv1 weight, BN1 scale folded, im2col layout
    b1_ref   : (1, Cmid)        f32   folded BN1 bias
    w2_ref   : (9*Cmid, Np)     bf16  conv2 weight, BN2 scale folded, N padded to 128
    b2_ref   : (1, Np)          f32   folded BN2 bias (zeros in padded lanes)
    o_ref    : (H, W, Np)       f32   output (padded output channels are exact zeros)
    mid_ref  : (H+2, W+2, Cmid) bf16  VMEM scratch (padded conv1 output)
    """
    H, W, Np = o_ref.shape
    cin = xpad_ref.shape[-1]
    cmid = w1_ref.shape[-1]
    rc = row_chunk
    n_chunks = H // rc

    # Zero only the 1-pixel halo of the intermediate; the interior is fully
    # overwritten below.  Done every step (cheap) so it is megacore-safe.
    mid_ref[0:1, :, :] = jnp.zeros((1, W + 2, cmid), mid_ref.dtype)
    mid_ref[H + 1:H + 2, :, :] = jnp.zeros((1, W + 2, cmid), mid_ref.dtype)
    mid_ref[:, 0:1, :] = jnp.zeros((H + 2, 1, cmid), mid_ref.dtype)
    mid_ref[:, W + 1:W + 2, :] = jnp.zeros((H + 2, 1, cmid), mid_ref.dtype)

    w1 = w1_ref[...]     # (9*Cin, Cmid)  bf16
    w2 = w2_ref[...]     # (9*Cmid, Np)   bf16
    b1 = b1_ref[...]     # (1, Cmid)      f32
    b2 = b2_ref[...]     # (1, Np)        f32

    def row_start(c):
        r0 = c * rc
        if not isinstance(r0, int):          # dynamic (fori_loop) index
            r0 = pl.multiple_of(r0, rc)
        return r0

    # ---- conv1 (3x3, pad=1, stride=1) + folded BN1 + ReLU, row-chunked ----
    def conv1_chunk(c, carry):
        r0 = row_start(c)
        # One load + ONE bf16 cast per chunk (not per overlapping tap).
        xw = xpad_ref[pl.ds(r0, rc + 2), :, :].astype(jnp.bfloat16)    # (rc+2, W+2, Cin)
        # Pre-build the 3 W-shifted copies; the 9 taps are leading-dim slices.
        shifted = [xw[:, dw:dw + W, :] for dw in range(3)]             # (rc+2, W, Cin)
        taps = []
        for dh in range(3):
            for dw in range(3):
                taps.append(shifted[dw][dh:dh + rc].reshape(rc * W, cin))
        patch = jnp.concatenate(taps, axis=-1)                         # (rc*W, 9*Cin)
        acc = jnp.dot(patch, w1, preferred_element_type=jnp.float32)   # (rc*W, Cmid)
        y = jnp.maximum(acc + b1, 0.0)
        mid_ref[pl.ds(1 + r0, rc), 1:W + 1, :] = (
            y.reshape(rc, W, cmid).astype(mid_ref.dtype))
        return carry

    # ---- conv2 (3x3, pad=1) + folded BN2 + residual add + ReLU ----
    def conv2_chunk(c, carry):
        r0 = row_start(c)
        mw = mid_ref[pl.ds(r0, rc + 2), :, :]                          # bf16, no cast
        shifted = [mw[:, dw:dw + W, :] for dw in range(3)]
        taps = []
        for dh in range(3):
            for dw in range(3):
                taps.append(shifted[dw][dh:dh + rc].reshape(rc * W, cmid))
        patch = jnp.concatenate(taps, axis=-1)                         # (rc*W, 9*Cmid)
        acc2 = jnp.dot(patch, w2, preferred_element_type=jnp.float32)  # (rc*W, Np)
        identity = xpad_ref[pl.ds(1 + r0, rc), 1:W + 1, :].reshape(rc * W, cin)  # f32
        if Np > cin:   # zero-extend residual into padded output lanes
            identity = jnp.concatenate(
                [identity, jnp.zeros((rc * W, Np - cin), jnp.float32)], axis=-1)
        out = jnp.maximum(acc2 + b2 + identity, 0.0)
        o_ref[pl.ds(r0, rc), :, :] = out.reshape(rc, W, Np).astype(o_ref.dtype)
        return carry

    if n_chunks == 1:
        # Static fast path (whole image in one dot, static offsets).
        conv1_chunk(0, 0)
        conv2_chunk(0, 0)
    else:
        lax.fori_loop(0, n_chunks, conv1_chunk, 0)
        lax.fori_loop(0, n_chunks, conv2_chunk, 0)


def _fold_bn(gamma, beta, mean, var, eps=1e-5):
    scale = gamma / jnp.sqrt(var + eps)
    bias = beta - mean * scale
    return scale, bias


def _round_up(x, m):
    return (x + m - 1) // m * m


def _pick_row_chunk(H, W, target_rows=512):
    """Largest divisor of H with rc * W <= target_rows (rows per MXU dot)."""
    per = max(1, target_rows // W)
    rc = 1
    for d in range(1, H + 1):
        if H % d == 0 and d <= per:
            rc = d
    return rc


def _padded_vmem_bytes(shape, elem_bytes, sublane_tile):
    """Conservative VMEM footprint of an array incl. lane/sublane tiling pad."""
    s = list(shape)
    s[-1] = _round_up(s[-1], 128)
    if len(s) >= 2:
        s[-2] = _round_up(s[-2], sublane_tile)
    n = 1
    for d in s:
        n *= d
    return n * elem_bytes


@jax.jit
def basic_block_forward(x_nchw, params):
    """BasicBlock forward. x_nchw: (N, C, H, W) float32."""
    # NCHW -> NHWC
    x = jnp.transpose(x_nchw, (0, 2, 3, 1)).astype(jnp.float32)
    N, H, W, Cin = x.shape

    w1_oihw = params["conv1_w"]
    w2_oihw = params["conv2_w"]
    Cout = w1_oihw.shape[0]
    # stride=1 / no downsample path only: residual requires matching channels.
    assert Cin == Cout, "Pallas BasicBlock kernel requires inplanes == planes"
    assert w1_oihw.shape[1] == Cin and w2_oihw.shape[1] == Cout

    # Pad only conv2's OUTPUT channel axis to a multiple of 128 (lane-dense HBM
    # stores); the contraction dims stay at true Cin / Cout.
    Np = max(128, _round_up(Cout, 128))

    # Fold BN scale into the conv weights (over the O axis); keep only bias.
    s1, b1 = _fold_bn(params["bn1_gamma"], params["bn1_beta"],
                      params["bn1_mean"], params["bn1_var"])
    s2, b2 = _fold_bn(params["bn2_gamma"], params["bn2_beta"],
                      params["bn2_mean"], params["bn2_var"])

    # OIHW -> HWIO, scale folded over the O (last) axis.
    w1 = jnp.transpose(w1_oihw, (2, 3, 1, 0)).astype(jnp.float32) * s1   # (3,3,Cin,Cout)
    w2 = jnp.transpose(w2_oihw, (2, 3, 1, 0)).astype(jnp.float32) * s2   # (3,3,Cout,Cout)

    # im2col layout: conv1 keeps true Cout (feeds VMEM intermediate);
    # conv2's output axis is padded to Np for the dense HBM store.
    w1p = w1.reshape(9 * Cin, Cout).astype(jnp.bfloat16)
    w2p = (jnp.zeros((3, 3, Cout, Np), jnp.float32)
           .at[..., :Cout].set(w2)
           .reshape(9 * Cout, Np).astype(jnp.bfloat16))

    b1p = b1.reshape(1, Cout).astype(jnp.float32)
    b2p = jnp.zeros((1, Np), jnp.float32).at[0, :Cout].set(b2)

    # Spatial 1-px halo only; channels kept at true Cin (less HBM read traffic).
    x_pad = jnp.pad(x, ((0, 0), (1, 1), (1, 1), (0, 0)))

    rc = _pick_row_chunk(H, W)

    # VMEM budget from the actual (tiling-padded) block sizes, not a fixed 32 MiB.
    blk_bytes = (
        2 * _padded_vmem_bytes((H + 2, W + 2, Cin), 4, 8)        # input  (dbl-buffered)
        + 2 * _padded_vmem_bytes((H, W, Np), 4, 8)               # output (dbl-buffered)
        + 2 * (_padded_vmem_bytes((9 * Cin, Cout), 2, 16)
               + _padded_vmem_bytes((9 * Cout, Np), 2, 16))      # weights
        + 2 * (_padded_vmem_bytes((1, Cout), 4, 8)
               + _padded_vmem_bytes((1, Np), 4, 8))              # biases
        + _padded_vmem_bytes((H + 2, W + 2, Cout), 2, 16)        # bf16 mid scratch
    )
    vmem_limit = int(min(max(int(blk_bytes * 1.5) + (8 << 20), 24 << 20), 112 << 20))

    out_nhwc = pl.pallas_call(
        functools.partial(basic_block_kernel, row_chunk=rc),
        out_shape=jax.ShapeDtypeStruct((N, H, W, Np), jnp.float32),
        grid_spec=pltpu.PrefetchScalarGridSpec(
            num_scalar_prefetch=0,
            grid=(N,),
            in_specs=[
                pl.BlockSpec((None, H + 2, W + 2, Cin), lambda n: (n, 0, 0, 0)),
                pl.BlockSpec((9 * Cin, Cout), lambda n: (0, 0)),
                pl.BlockSpec((1, Cout), lambda n: (0, 0)),
                pl.BlockSpec((9 * Cout, Np), lambda n: (0, 0)),
                pl.BlockSpec((1, Np), lambda n: (0, 0)),
            ],
            out_specs=pl.BlockSpec((None, H, W, Np), lambda n: (n, 0, 0, 0)),
            scratch_shapes=[pltpu.VMEM((H + 2, W + 2, Cout), jnp.bfloat16)],
        ),
        compiler_params=pltpu.CompilerParams(
            dimension_semantics=("parallel",),
            vmem_limit_bytes=vmem_limit),
    )(x_pad, w1p, b1p, w2p, b2p)

    # Drop padded output channels, NHWC -> NCHW (network-boundary only).
    out = out_nhwc[:, :, :, :Cout]
    return jnp.transpose(out, (0, 3, 1, 2))


# ---------------- plain-JAX reference (for correctness check) ----------------
def basic_block_reference(x_nchw, params):
    x = jnp.transpose(x_nchw, (0, 2, 3, 1)).astype(jnp.float32)
    w1 = jnp.transpose(params["conv1_w"], (2, 3, 1, 0)).astype(jnp.float32)
    w2 = jnp.transpose(params["conv2_w"], (2, 3, 1, 0)).astype(jnp.float32)
    dn = ("NHWC", "HWIO", "NHWC")

    def bn(z, g, b, m, v, eps=1e-5):
        return (z - m) / jnp.sqrt(v + eps) * g + b

    out = lax.conv_general_dilated(x, w1, (1, 1), "SAME", dimension_numbers=dn)
    out = bn(out, params["bn1_gamma"], params["bn1_beta"],
             params["bn1_mean"], params["bn1_var"])
    out = jnp.maximum(out, 0.0)
    out = lax.conv_general_dilated(out, w2, (1, 1), "SAME", dimension_numbers=dn)
    out = bn(out, params["bn2_gamma"], params["bn2_beta"],
             params["bn2_mean"], params["bn2_var"])
    out = jnp.maximum(out + x, 0.0)
    return jnp.transpose(out, (0, 3, 1, 2))


def make_params(key, inplanes, planes):
    ks = jax.random.split(key, 10)
    return {
        # conv weights in PyTorch OIHW layout, 3x3, no bias.
        "conv1_w": 0.1 * jax.random.normal(ks[0], (planes, inplanes, 3, 3), jnp.float32),
        "conv2_w": 0.1 * jax.random.normal(ks[1], (planes, planes, 3, 3), jnp.float32),
        "bn1_gamma": 1.0 + 0.1 * jax.random.normal(ks[2], (planes,), jnp.float32),
        "bn1_beta": 0.1 * jax.random.normal(ks[3], (planes,), jnp.float32),
        "bn1_mean": 0.1 * jax.random.normal(ks[4], (planes,), jnp.float32),
        "bn1_var": 1.0 + 0.1 * jnp.abs(jax.random.normal(ks[5], (planes,), jnp.float32)),
        "bn2_gamma": 1.0 + 0.1 * jax.random.normal(ks[6], (planes,), jnp.float32),
        "bn2_beta": 0.1 * jax.random.normal(ks[7], (planes,), jnp.float32),
        "bn2_mean": 0.1 * jax.random.normal(ks[8], (planes,), jnp.float32),
        "bn2_var": 1.0 + 0.1 * jnp.abs(jax.random.normal(ks[9], (planes,), jnp.float32)),
    }


if __name__ == "__main__":
    key = jax.random.PRNGKey(0)
    kx, kp = jax.random.split(key)

    # Primary (spec) shape: single-chunk fast path.
    N, C, H, W = 2, 4, 16, 16           # inplanes = planes = 4, stride = 1
    x = jax.random.normal(kx, (N, C, H, W), jnp.float32)
    params = make_params(kp, inplanes=C, planes=C)

    out = jax.block_until_ready(basic_block_forward(x, params))
    ref = basic_block_reference(x, params)
    assert out.shape == (N, C, H, W)
    max_err = float(jnp.max(jnp.abs(out - ref)))
    # bf16 MXU operands (f32 accumulation, f32 residual) vs. pure-f32 reference.
    assert jnp.allclose(out, ref, atol=5e-2, rtol=5e-2), max_err

    # Secondary check: more channels + multiple row chunks (fori_loop path).
    kx2, kp2 = jax.random.split(jax.random.PRNGKey(1))
    N2, C2, H2, W2 = 1, 8, 32, 32
    x2 = jax.random.normal(kx2, (N2, C2, H2, W2), jnp.float32)
    params2 = make_params(kp2, inplanes=C2, planes=C2)
    out2 = jax.block_until_ready(basic_block_forward(x2, params2))
    ref2 = basic_block_reference(x2, params2)
    max_err2 = float(jnp.max(jnp.abs(out2 - ref2)))
    assert jnp.allclose(out2, ref2, atol=5e-2, rtol=5e-2), max_err2

    print("KERNEL_OK")
</pallas_src>

<mosaic_0001>
module attributes {stable_mosaic.version = 11 : i64} {
  func.func @basic_block_kernel(%arg0: i32, %arg1: memref<1x18x18x4xf32, #tpu.memory_space<vmem>>, %arg2: memref<36x4xbf16, #tpu.memory_space<vmem>>, %arg3: memref<1x4xf32, #tpu.memory_space<vmem>>, %arg4: memref<36x128xbf16, #tpu.memory_space<vmem>>, %arg5: memref<1x128xf32, #tpu.memory_space<vmem>>, %arg6: memref<1x16x16x128xf32, #tpu.memory_space<vmem>>, %arg7: memref<18x18x4xbf16, #tpu.memory_space<vmem>>) attributes {dimension_semantics = [#tpu.dimension_semantics<parallel>], iteration_bounds = array<i64: 2>, scalar_prefetch = 0 : i64, scratch_operands = 1 : i64, tpu.core_type = #tpu.core_type<tc>, window_params = [{transform_indices = @transform_0, window_bounds = array<i64: 1, 18, 18, 4>}, {pipeline_mode = #tpu.pipeline_mode<synchronous>, transform_indices = @transform_1, window_bounds = array<i64: 36, 4>}, {pipeline_mode = #tpu.pipeline_mode<synchronous>, transform_indices = @transform_2, window_bounds = array<i64: 1, 4>}, {pipeline_mode = #tpu.pipeline_mode<synchronous>, transform_indices = @transform_3, window_bounds = array<i64: 36, 128>}, {pipeline_mode = #tpu.pipeline_mode<synchronous>, transform_indices = @transform_4, window_bounds = array<i64: 1, 128>}, {transform_indices = @transform_5, window_bounds = array<i64: 1, 16, 16, 128>}]} {
    %cst = arith.constant 0.000000e+00 : bf16
    %0 = vector.broadcast %cst : bf16 to vector<1x18x4xbf16>
    %c0 = arith.constant 0 : index
    %c0_0 = arith.constant 0 : index
    %c0_1 = arith.constant 0 : index
    %1 = vector.load %arg7[%c0, %c0_0, %c0_1] : memref<18x18x4xbf16, #tpu.memory_space<vmem>>, vector<1x18x4xbf16>
    tpu.vector_store %arg7[%c0, %c0_0, %c0_1], %0 {strides = array<i32>} : memref<18x18x4xbf16, #tpu.memory_space<vmem>>, vector<1x18x4xbf16>,
    %cst_2 = arith.constant 0.000000e+00 : bf16
    %2 = vector.broadcast %cst_2 : bf16 to vector<1x18x4xbf16>
    %c17 = arith.constant 17 : index
    %c0_3 = arith.constant 0 : index
    %c0_4 = arith.constant 0 : index
    %3 = vector.load %arg7[%c17, %c0_3, %c0_4] : memref<18x18x4xbf16, #tpu.memory_space<vmem>>, vector<1x18x4xbf16>
    tpu.vector_store %arg7[%c17, %c0_3, %c0_4], %2 {strides = array<i32>} : memref<18x18x4xbf16, #tpu.memory_space<vmem>>, vector<1x18x4xbf16>,
    %cst_5 = arith.constant 0.000000e+00 : bf16
    %4 = vector.broadcast %cst_5 : bf16 to vector<18x1x4xbf16>
    %c0_6 = arith.constant 0 : index
    %c0_7 = arith.constant 0 : index
    %c0_8 = arith.constant 0 : index
    %5 = vector.load %arg7[%c0_6, %c0_7, %c0_8] : memref<18x18x4xbf16, #tpu.memory_space<vmem>>, vector<18x1x4xbf16>
    tpu.vector_store %arg7[%c0_6, %c0_7, %c0_8], %4 {strides = array<i32>} : memref<18x18x4xbf16, #tpu.memory_space<vmem>>, vector<18x1x4xbf16>,
    %cst_9 = arith.constant 0.000000e+00 : bf16
    %6 = vector.broadcast %cst_9 : bf16 to vector<18x1x4xbf16>
    %c0_10 = arith.constant 0 : index
    %c17_11 = arith.constant 17 : index
    %c0_12 = arith.constant 0 : index
    %7 = vector.load %arg7[%c0_10, %c17_11, %c0_12] : memref<18x18x4xbf16, #tpu.memory_space<vmem>>, vector<18x1x4xbf16>
    tpu.vector_store %arg7[%c0_10, %c17_11, %c0_12], %6 {strides = array<i32>} : memref<18x18x4xbf16, #tpu.memory_space<vmem>>, vector<18x1x4xbf16>,
    %c0_13 = arith.constant 0 : index
    %c0_14 = arith.constant 0 : index
    %8 = vector.load %arg2[%c0_13, %c0_14] : memref<36x4xbf16, #tpu.memory_space<vmem>>, vector<36x4xbf16>
    %c0_15 = arith.constant 0 : index
    %c0_16 = arith.constant 0 : index
    %9 = vector.load %arg4[%c0_15, %c0_16] : memref<36x128xbf16, #tpu.memory_space<vmem>>, vector<36x128xbf16>
    %c0_17 = arith.constant 0 : index
    %c0_18 = arith.constant 0 : index
    %10 = vector.load %arg3[%c0_17, %c0_18] : memref<1x4xf32, #tpu.memory_space<vmem>>, vector<1x4xf32>
    %c0_19 = arith.constant 0 : index
    %c0_20 = arith.constant 0 : index
    %11 = vector.load %arg5[%c0_19, %c0_20] : memref<1x128xf32, #tpu.memory_space<vmem>>, vector<1x128xf32>
    %c0_21 = arith.constant 0 : index
    %c0_22 = arith.constant 0 : index
    %c0_23 = arith.constant 0 : index
    %c0_24 = arith.constant 0 : index
    %12 = vector.load %arg1[%c0_21, %c0_22, %c0_23, %c0_24] : memref<1x18x18x4xf32, #tpu.memory_space<vmem>>, vector<1x18x18x4xf32>
    %13 = vector.shape_cast %12 : vector<1x18x18x4xf32> to vector<18x18x4xf32>
    %14 = arith.truncf %13 : vector<18x18x4xf32> to vector<18x18x4xbf16>
    %15 = vector.extract_strided_slice %14 {offsets = [0, 0, 0], sizes = [18, 16, 4], strides = [1, 1, 1]} : vector<18x18x4xbf16> to vector<18x16x4xbf16>
    %16 = vector.extract_strided_slice %14 {offsets = [0, 1, 0], sizes = [18, 16, 4], strides = [1, 1, 1]} : vector<18x18x4xbf16> to vector<18x16x4xbf16>
    %17 = vector.extract_strided_slice %14 {offsets = [0, 2, 0], sizes = [18, 16, 4], strides = [1, 1, 1]} : vector<18x18x4xbf16> to vector<18x16x4xbf16>
    %18 = vector.extract_strided_slice %15 {offsets = [0, 0, 0], sizes = [16, 16, 4], strides = [1, 1, 1]} : vector<18x16x4xbf16> to vector<16x16x4xbf16>
    %19 = vector.shape_cast %18 : vector<16x16x4xbf16> to vector<256x4xbf16>
    %20 = vector.extract_strided_slice %16 {offsets = [0, 0, 0], sizes = [16, 16, 4], strides = [1, 1, 1]} : vector<18x16x4xbf16> to vector<16x16x4xbf16>
    %21 = vector.shape_cast %20 : vector<16x16x4xbf16> to vector<256x4xbf16>
    %22 = vector.extract_strided_slice %17 {offsets = [0, 0, 0], sizes = [16, 16, 4], strides = [1, 1, 1]} : vector<18x16x4xbf16> to vector<16x16x4xbf16>
    %23 = vector.shape_cast %22 : vector<16x16x4xbf16> to vector<256x4xbf16>
    %24 = vector.extract_strided_slice %15 {offsets = [1, 0, 0], sizes = [16, 16, 4], strides = [1, 1, 1]} : vector<18x16x4xbf16> to vector<16x16x4xbf16>
    %25 = vector.shape_cast %24 : vector<16x16x4xbf16> to vector<256x4xbf16>
    %26 = vector.extract_strided_slice %16 {offsets = [1, 0, 0], sizes = [16, 16, 4], strides = [1, 1, 1]} : vector<18x16x4xbf16> to vector<16x16x4xbf16>
    %27 = vector.shape_cast %26 : vector<16x16x4xbf16> to vector<256x4xbf16>
    %28 = vector.extract_strided_slice %17 {offsets = [1, 0, 0], sizes = [16, 16, 4], strides = [1, 1, 1]} : vector<18x16x4xbf16> to vector<16x16x4xbf16>
    %29 = vector.shape_cast %28 : vector<16x16x4xbf16> to vector<256x4xbf16>
    %30 = vector.extract_strided_slice %15 {offsets = [2, 0, 0], sizes = [16, 16, 4], strides = [1, 1, 1]} : vector<18x16x4xbf16> to vector<16x16x4xbf16>
    %31 = vector.shape_cast %30 : vector<16x16x4xbf16> to vector<256x4xbf16>
    %32 = vector.extract_strided_slice %16 {offsets = [2, 0, 0], sizes = [16, 16, 4], strides = [1, 1, 1]} : vector<18x16x4xbf16> to vector<16x16x4xbf16>
    %33 = vector.shape_cast %32 : vector<16x16x4xbf16> to vector<256x4xbf16>
    %34 = vector.extract_strided_slice %17 {offsets = [2, 0, 0], sizes = [16, 16, 4], strides = [1, 1, 1]} : vector<18x16x4xbf16> to vector<16x16x4xbf16>
    %35 = vector.shape_cast %34 : vector<16x16x4xbf16> to vector<256x4xbf16>
    %36 = tpu.concatenate %19, %21, %23, %25, %27, %29, %31, %33, %35 in 1 : vector<256x4xbf16>, vector<256x4xbf16>, vector<256x4xbf16>, vector<256x4xbf16>, vector<256x4xbf16>, vector<256x4xbf16>, vector<256x4xbf16>, vector<256x4xbf16>, vector<256x4xbf16> -> vector<256x36xbf16>
    %cst_25 = arith.constant dense<0.000000e+00> : vector<256x4xf32>
    %37 = tpu.matmul %36, %8, %cst_25 {dimension_numbers = #tpu.dot_dimension_numbers<[1], [0], [0], [1], [0, 0, 1, 1], [], []>} : vector<256x36xbf16>, vector<36x4xbf16>, vector<256x4xf32> -> vector<256x4xf32>
    %38 = vector.broadcast %10 : vector<1x4xf32> to vector<256x4xf32>
    %39 = arith.addf %37, %38 : vector<256x4xf32>
    %cst_26 = arith.constant 0.000000e+00 : f32
    %40 = vector.broadcast %cst_26 : f32 to vector<256x4xf32>
    %41 = arith.maximumf %39, %40 : vector<256x4xf32>
    %42 = vector.shape_cast %41 : vector<256x4xf32> to vector<16x16x4xf32>
    %43 = arith.truncf %42 : vector<16x16x4xf32> to vector<16x16x4xbf16>
    %c1 = arith.constant 1 : index
    %c1_27 = arith.constant 1 : index
    %c0_28 = arith.constant 0 : index
    %44 = vector.load %arg7[%c1, %c1_27, %c0_28] : memref<18x18x4xbf16, #tpu.memory_space<vmem>>, vector<16x16x4xbf16>
    tpu.vector_store %arg7[%c1, %c1_27, %c0_28], %43 {strides = array<i32>} : memref<18x18x4xbf16, #tpu.memory_space<vmem>>, vector<16x16x4xbf16>,
    %c0_29 = arith.constant 0 : index
    %c0_30 = arith.constant 0 : index
    %c0_31 = arith.constant 0 : index
    %45 = vector.load %arg7[%c0_29, %c0_30, %c0_31] : memref<18x18x4xbf16, #tpu.memory_space<vmem>>, vector<18x18x4xbf16>
    %46 = vector.extract_strided_slice %45 {offsets = [0, 0, 0], sizes = [18, 16, 4], strides = [1, 1, 1]} : vector<18x18x4xbf16> to vector<18x16x4xbf16>
    %47 = vector.extract_strided_slice %45 {offsets = [0, 1, 0], sizes = [18, 16, 4], strides = [1, 1, 1]} : vector<18x18x4xbf16> to vector<18x16x4xbf16>
    %48 = vector.extract_strided_slice %45 {offsets = [0, 2, 0], sizes = [18, 16, 4], strides = [1, 1, 1]} : vector<18x18x4xbf16> to vector<18x16x4xbf16>
    %49 = vector.extract_strided_slice %46 {offsets = [0, 0, 0], sizes = [16, 16, 4], strides = [1, 1, 1]} : vector<18x16x4xbf16> to vector<16x16x4xbf16>
    %50 = vector.shape_cast %49 : vector<16x16x4xbf16> to vector<256x4xbf16>
    %51 = vector.extract_strided_slice %47 {offsets = [0, 0, 0], sizes = [16, 16, 4], strides = [1, 1, 1]} : vector<18x16x4xbf16> to vector<16x16x4xbf16>
    %52 = vector.shape_cast %51 : vector<16x16x4xbf16> to vector<256x4xbf16>
    %53 = vector.extract_strided_slice %48 {offsets = [0, 0, 0], sizes = [16, 16, 4], strides = [1, 1, 1]} : vector<18x16x4xbf16> to vector<16x16x4xbf16>
    %54 = vector.shape_cast %53 : vector<16x16x4xbf16> to vector<256x4xbf16>
    %55 = vector.extract_strided_slice %46 {offsets = [1, 0, 0], sizes = [16, 16, 4], strides = [1, 1, 1]} : vector<18x16x4xbf16> to vector<16x16x4xbf16>
    %56 = vector.shape_cast %55 : vector<16x16x4xbf16> to vector<256x4xbf16>
    %57 = vector.extract_strided_slice %47 {offsets = [1, 0, 0], sizes = [16, 16, 4], strides = [1, 1, 1]} : vector<18x16x4xbf16> to vector<16x16x4xbf16>
    %58 = vector.shape_cast %57 : vector<16x16x4xbf16> to vector<256x4xbf16>
    %59 = vector.extract_strided_slice %48 {offsets = [1, 0, 0], sizes = [16, 16, 4], strides = [1, 1, 1]} : vector<18x16x4xbf16> to vector<16x16x4xbf16>
    %60 = vector.shape_cast %59 : vector<16x16x4xbf16> to vector<256x4xbf16>
    %61 = vector.extract_strided_slice %46 {offsets = [2, 0, 0], sizes = [16, 16, 4], strides = [1, 1, 1]} : vector<18x16x4xbf16> to vector<16x16x4xbf16>
    %62 = vector.shape_cast %61 : vector<16x16x4xbf16> to vector<256x4xbf16>
    %63 = vector.extract_strided_slice %47 {offsets = [2, 0, 0], sizes = [16, 16, 4], strides = [1, 1, 1]} : vector<18x16x4xbf16> to vector<16x16x4xbf16>
    %64 = vector.shape_cast %63 : vector<16x16x4xbf16> to vector<256x4xbf16>
    %65 = vector.extract_strided_slice %48 {offsets = [2, 0, 0], sizes = [16, 16, 4], strides = [1, 1, 1]} : vector<18x16x4xbf16> to vector<16x16x4xbf16>
    %66 = vector.shape_cast %65 : vector<16x16x4xbf16> to vector<256x4xbf16>
    %67 = tpu.concatenate %50, %52, %54, %56, %58, %60, %62, %64, %66 in 1 : vector<256x4xbf16>, vector<256x4xbf16>, vector<256x4xbf16>, vector<256x4xbf16>, vector<256x4xbf16>, vector<256x4xbf16>, vector<256x4xbf16>, vector<256x4xbf16>, vector<256x4xbf16> -> vector<256x36xbf16>
    %cst_32 = arith.constant dense<0.000000e+00> : vector<256x128xf32>
    %68 = tpu.matmul %67, %9, %cst_32 {dimension_numbers = #tpu.dot_dimension_numbers<[1], [0], [0], [1], [0, 0, 1, 1], [], []>} : vector<256x36xbf16>, vector<36x128xbf16>, vector<256x128xf32> -> vector<256x128xf32>
    %c0_33 = arith.constant 0 : index
    %c1_34 = arith.constant 1 : index
    %c1_35 = arith.constant 1 : index
    %c0_36 = arith.constant 0 : index
    %69 = vector.load %arg1[%c0_33, %c1_34, %c1_35, %c0_36] : memref<1x18x18x4xf32, #tpu.memory_space<vmem>>, vector<1x16x16x4xf32>
    %70 = vector.shape_cast %69 : vector<1x16x16x4xf32> to vector<16x16x4xf32>
    %71 = vector.shape_cast %70 : vector<16x16x4xf32> to vector<256x4xf32>
    %cst_37 = arith.constant 0.000000e+00 : f32
    %72 = vector.broadcast %cst_37 : f32 to vector<256x124xf32>
    %73 = tpu.concatenate %71, %72 in 1 : vector<256x4xf32>, vector<256x124xf32> -> vector<256x128xf32>
    %74 = vector.broadcast %11 : vector<1x128xf32> to vector<256x128xf32>
    %75 = arith.addf %68, %74 : vector<256x128xf32>
    %76 = arith.addf %75, %73 : vector<256x128xf32>
    %cst_38 = arith.constant 0.000000e+00 : f32
    %77 = vector.broadcast %cst_38 : f32 to vector<256x128xf32>
    %78 = arith.maximumf %76, %77 : vector<256x128xf32>
    %79 = vector.shape_cast %78 : vector<256x128xf32> to vector<16x16x128xf32>
    %c0_39 = arith.constant 0 : index
    %c0_40 = arith.constant 0 : index
    %c0_41 = arith.constant 0 : index
    %c0_42 = arith.constant 0 : index
    %80 = vector.load %arg6[%c0_39, %c0_40, %c0_41, %c0_42] : memref<1x16x16x128xf32, #tpu.memory_space<vmem>>, vector<1x16x16x128xf32>
    %81 = vector.shape_cast %80 : vector<1x16x16x128xf32> to vector<16x16x128xf32>
    %82 = vector.shape_cast %79 : vector<16x16x128xf32> to vector<1x16x16x128xf32>
    tpu.vector_store %arg6[%c0_39, %c0_40, %c0_41, %c0_42], %82 {strides = array<i32>} : memref<1x16x16x128xf32, #tpu.memory_space<vmem>>, vector<1x16x16x128xf32>,
    return
  }
  func.func @transform_0(%arg0: i32) -> (i32, i32, i32, i32) {
    %c0_i32 = arith.constant 0 : i32
    %c0_i32_0 = arith.constant 0 : i32
    %c0_i32_1 = arith.constant 0 : i32
    %c0_i32_2 = arith.constant 0 : i32
    return %arg0, %c0_i32, %c0_i32_0, %c0_i32_1 : i32, i32, i32, i32
  }
  func.func @transform_1(%arg0: i32) -> (i32, i32) {
    %c0_i32 = arith.constant 0 : i32
    %c0_i32_0 = arith.constant 0 : i32
    %c0_i32_1 = arith.constant 0 : i32
    return %c0_i32, %c0_i32_0 : i32, i32
  }
  func.func @transform_2(%arg0: i32) -> (i32, i32) {
    %c0_i32 = arith.constant 0 : i32
    %c0_i32_0 = arith.constant 0 : i32
    %c0_i32_1 = arith.constant 0 : i32
    return %c0_i32, %c0_i32_0 : i32, i32
  }
  func.func @transform_3(%arg0: i32) -> (i32, i32) {
    %c0_i32 = arith.constant 0 : i32
    %c0_i32_0 = arith.constant 0 : i32
    %c0_i32_1 = arith.constant 0 : i32
    return %c0_i32, %c0_i32_0 : i32, i32
  }
  func.func @transform_4(%arg0: i32) -> (i32, i32) {
    %c0_i32 = arith.constant 0 : i32
    %c0_i32_0 = arith.constant 0 : i32
    %c0_i32_1 = arith.constant 0 : i32
    return %c0_i32, %c0_i32_0 : i32, i32
  }
  func.func @transform_5(%arg0: i32) -> (i32, i32, i32, i32) {
    %c0_i32 = arith.constant 0 : i32
    %c0_i32_0 = arith.constant 0 : i32
    %c0_i32_1 = arith.constant 0 : i32
    %c0_i32_2 = arith.constant 0 : i32
    return %arg0, %c0_i32, %c0_i32_0, %c0_i32_1 : i32, i32, i32, i32
  }
}

</mosaic_0001>

<llo_original>
// kernel: basic_block_forward.1
$region0: #{basic_block_forward.1}
  #allocation0 [shape = 'u32[]', space=smem, size = 0x4, offset = 0x4, fixed_abs, tag = 'smem constant byte address 0x4 - core index']
  #allocation1 [shape = 'u32[144,128]{1,0:T(1,128)}', space=vmem, size = 0x12000, scoped, tag = 'internal scratch']
  #allocation2 [shape = 'bf16[18,18,4]{2,1,0:T(8,128)(2,1)}', space=vmem, size = 0x1b000, scoped, tag = 'scratch operand']
  %s0 = inlined_call_operand.vmem [shape: f32[2,18,18,4], index: 0, kind: input, shape index: {}]
  %s1 = inlined_call_operand.vmem [shape: bf16[36,4], index: 1, kind: input, shape index: {}]
  %s2 = inlined_call_operand.vmem [shape: f32[1,4], index: 2, kind: input, shape index: {}]
  %s3 = inlined_call_operand.vmem [shape: bf16[36,128], index: 3, kind: input, shape index: {}]
  %s4 = inlined_call_operand.vmem [shape: f32[1,128], index: 4, kind: input, shape index: {}]
  %s5 = inlined_call_operand.vmem [shape: f32[2,16,16,128], index: 5, kind: output, shape index: {}]
  %s6 = sld [smem:[#allocation0]]
  $region53: #{basic_block_forward.1} parent=0
    _
  %s8 = ssub.s32 1, %s6
  %s9 = scalar_select 0, %s8, %s6
  loop: start=0, step=1, limit=4
  $region2: #{basic_block_forward.1} parent=0 // loop_pre_header
    _
  $region3: #{basic_block_forward.1} parent=0 // loop_header
    %s11 = sphi 0, %s15
    %p12 = scmp.ge.s32.totalorder %s11, 4
    %s21 = sphi 0, %s23
    %s24 = sphi 0, %s21
    %s25 = sphi 0, %s24
    %s41 = sphi 0, %s25
    %s45 = sphi 0, %s45
    %s47 = sphi 0, %s45
    %s48 = sphi 0, %s47
    %s62 = sphi 0, %s48
    %s66 = sphi 0, %s66
    %s68 = sphi 0, %s66
    %s69 = sphi 0, %s68
    %s83 = sphi 0, %s69
    %s87 = sphi 0, %s87
    %s89 = sphi 0, %s87
    %s90 = sphi 0, %s89
    %s104 = sphi 0, %s90
    %s108 = sphi 0, %s108
    %s110 = sphi 0, %s108
    %s111 = sphi 0, %s110
    %s125 = sphi 0, %s111
    %s131 = sphi 0, %s133
    %s134 = sphi 0, %s131
    %s135 = sphi 0, %s134
    %s151 = sphi 0, %s135
  $region4: #{basic_block_forward.1} parent=0 // loop_header_branch
    %14 = sbr.rel (%p12) target = $region8
  $region5: #{basic_block_forward.1} parent=0 // loop_body
    %s16 = ssub.s32 %s11, 1
    %s17 = ssub.s32 %s11, 2
    %s18 = sadd.s32 %s11, 1
    %s19 = ssub.s32 %s11, %s18
    %p20 = scmp.eq.s32.totalorder %s19, 0
    %s22 = sadd.s32 %s21, 1
    %s23 = scalar_select %p20, %s21, %s22
    %p26 = pneg %p20
    %p27 = scmp.eq.s32.totalorder %s11, 1
    %p28 = por %p26, %p27
    %p29 = scmp.ne.s32.totalorder %s21, %s24
    %p30 = scmp.eq.s32.totalorder %s11, 0
    %p31 = por %p29, %p30
    %p32 = scmp.ne.s32.totalorder %s21, %s24
    %p33 = scmp.eq.s32.totalorder %s16, 1
    %p34 = por %p32, %p33
    %p35 = scmp.ne.s32.totalorder %s24, %s25
    %p36 = scmp.eq.s32.totalorder %s16, 0
    %p37 = por %p35, %p36
    %p38 = scmp.ne.s32.totalorder %s24, %s25
    %p39 = scmp.eq.s32.totalorder %s17, 1
    %p40 = por %p38, %p39
    %p42 = scmp.ne.s32.totalorder %s25, %s41
    %p43 = scmp.eq.s32.totalorder %s17, 0
    %p44 = por %p42, %p43
    %s46 = sadd.s32 %s45, 1
    %p49 = scmp.eq.s32.totalorder %s11, 1
    %p50 = scmp.ne.s32.totalorder %s45, %s47
    %p51 = scmp.eq.s32.totalorder %s11, 0
    %p52 = por %p50, %p51
    %p53 = scmp.ne.s32.totalorder %s45, %s47
    %p54 = scmp.eq.s32.totalorder %s16, 1
    %p55 = por %p53, %p54
    %p56 = scmp.ne.s32.totalorder %s47, %s48
    %p57 = scmp.eq.s32.totalorder %s16, 0
    %p58 = por %p56, %p57
    %p59 = scmp.ne.s32.totalorder %s47, %s48
    %p60 = scmp.eq.s32.totalorder %s17, 1
    %p61 = por %p59, %p60
    %p63 = scmp.ne.s32.totalorder %s48, %s62
    %p64 = scmp.eq.s32.totalorder %s17, 0
    %p65 = por %p63, %p64
    %s67 = sadd.s32 %s66, 1
    %p70 = scmp.eq.s32.totalorder %s11, 1
    %p71 = scmp.ne.s32.totalorder %s66, %s68
    %p72 = scmp.eq.s32.totalorder %s11, 0
    %p73 = por %p71, %p72
    %p74 = scmp.ne.s32.totalorder %s66, %s68
    %p75 = scmp.eq.s32.totalorder %s16, 1
    %p76 = por %p74, %p75
    %p77 = scmp.ne.s32.totalorder %s68, %s69
    %p78 = scmp.eq.s32.totalorder %s16, 0
    %p79 = por %p77, %p78
    %p80 = scmp.ne.s32.totalorder %s68, %s69
    %p81 = scmp.eq.s32.totalorder %s17, 1
    %p82 = por %p80, %p81
    %p84 = scmp.ne.s32.totalorder %s69, %s83
    %p85 = scmp.eq.s32.totalorder %s17, 0
    %p86 = por %p84, %p85
    %s88 = sadd.s32 %s87, 1
    %p91 = scmp.eq.s32.totalorder %s11, 1
    %p92 = scmp.ne.s32.totalorder %s87, %s89
    %p93 = scmp.eq.s32.totalorder %s11, 0
    %p94 = por %p92, %p93
    %p95 = scmp.ne.s32.totalorder %s87, %s89
    %p96 = scmp.eq.s32.totalorder %s16, 1
    %p97 = por %p95, %p96
    %p98 = scmp.ne.s32.totalorder %s89, %s90
    %p99 = scmp.eq.s32.totalorder %s16, 0
    %p100 = por %p98, %p99
    %p101 = scmp.ne.s32.totalorder %s89, %s90
    %p102 = scmp.eq.s32.totalorder %s17, 1
    %p103 = por %p101, %p102
    %p105 = scmp.ne.s32.totalorder %s90, %s104
    %p106 = scmp.eq.s32.totalorder %s17, 0
    %p107 = por %p105, %p106
    %s109 = sadd.s32 %s108, 1
    %p112 = scmp.eq.s32.totalorder %s11, 1
    %p113 = scmp.ne.s32.totalorder %s108, %s110
    %p114 = scmp.eq.s32.totalorder %s11, 0
    %p115 = por %p113, %p114
    %p116 = scmp.ne.s32.totalorder %s108, %s110
    %p117 = scmp.eq.s32.totalorder %s16, 1
    %p118 = por %p116, %p117
    %p119 = scmp.ne.s32.totalorder %s110, %s111
    %p120 = scmp.eq.s32.totalorder %s16, 0
    %p121 = por %p119, %p120
    %p122 = scmp.ne.s32.totalorder %s110, %s111
    %p123 = scmp.eq.s32.totalorder %s17, 1
    %p124 = por %p122, %p123
    %p126 = scmp.ne.s32.totalorder %s111, %s125
    %p127 = scmp.eq.s32.totalorder %s17, 0
    %p128 = por %p126, %p127
    %s129 = ssub.s32 %s11, %s18
    %p130 = scmp.eq.s32.totalorder %s129, 0
    %s132 = sadd.s32 %s131, 1
    %s133 = scalar_select %p130, %s131, %s132
    %p136 = pneg %p130
    %p137 = scmp.eq.s32.totalorder %s11, 1
    %p138 = por %p136, %p137
    %p139 = scmp.ne.s32.totalorder %s131, %s134
    %p140 = scmp.eq.s32.totalorder %s11, 0
    %p141 = por %p139, %p140
    %p142 = scmp.ne.s32.totalorder %s131, %s134
    %p143 = scmp.eq.s32.totalorder %s16, 1
    %p144 = por %p142, %p143
    %p145 = scmp.ne.s32.totalorder %s134, %s135
    %p146 = scmp.eq.s32.totalorder %s16, 0
    %p147 = por %p145, %p146
    %p148 = scmp.ne.s32.totalorder %s134, %s135
    %p149 = scmp.eq.s32.totalorder %s17, 1
    %p150 = por %p148, %p149
    %p152 = scmp.ne.s32.totalorder %s135, %s151
    %p153 = scmp.eq.s32.totalorder %s17, 0
    %p154 = por %p152, %p153
    %p155 = scmp.le.s32.totalorder 1, %s11
    %p156 = scmp.lt.s32.totalorder %s11, 3
    %p157 = pnand %p155, %p156
    %p158 = pneg %p157
    // Predicated region
    $region9: #{basic_block_forward.1} parent=5 // pred_check
      _
    $region10: #{basic_block_forward.1} parent=5 // pred_check_branch
      %160 = sbr.rel (%p157) target = $region12
    $region11: #{basic_block_forward.1} parent=5 // pred_region
      %s161 = ssub.s32 %s11, 1
      // Predicated region
      $region13: #{basic_block_forward.1} parent=11 // pred_check
        %p162 = pneg %p58
      $region14: #{basic_block_forward.1} parent=11 // pred_check_branch
        %164 = sbr.rel (%p162) target = $region16
      $region15: #{basic_block_forward.1} parent=11 // pred_region
        _
      $region16: #{basic_block_forward.1} parent=11 // pred_fallthru
        _
      // Predicated region
      $region17: #{basic_block_forward.1} parent=11 // pred_check
        %p165 = pneg %p79
      $region18: #{basic_block_forward.1} parent=11 // pred_check_branch
        %167 = sbr.rel (%p165) target = $region20
      $region19: #{basic_block_forward.1} parent=11 // pred_region
        _
      $region20: #{basic_block_forward.1} parent=11 // pred_fallthru
        _
      // Predicated region
      $region21: #{basic_block_forward.1} parent=11 // pred_check
        %p168 = pneg %p100
      $region22: #{basic_block_forward.1} parent=11 // pred_check_branch
        %170 = sbr.rel (%p168) target = $region24
      $region23: #{basic_block_forward.1} parent=11 // pred_region
        _
      $region24: #{basic_block_forward.1} parent=11 // pred_fallthru
        _
      // Predicated region
      $region25: #{basic_block_forward.1} parent=11 // pred_check
        %p171 = pneg %p121
      $region26: #{basic_block_forward.1} parent=11 // pred_check_branch
        %173 = sbr.rel (%p171) target = $region28
      $region27: #{basic_block_forward.1} parent=11 // pred_region
        _
      $region28: #{basic_block_forward.1} parent=11 // pred_fallthru
        _
    $region12: #{basic_block_forward.1} parent=5 // pred_fallthru
      _
    %p174 = scmp.lt.s32.totalorder %s11, 2
    // Predicated region
    $region29: #{basic_block_forward.1} parent=5 // pred_check
      %p175 = pneg %p174
    $region30: #{basic_block_forward.1} parent=5 // pred_check_branch
      %177 = sbr.rel (%p175) target = $region32
    $region31: #{basic_block_forward.1} parent=5 // pred_region
      // Predicated region
      $region33: #{basic_block_forward.1} parent=31 // pred_check
        %p178 = pneg %p31
      $region34: #{basic_block_forward.1} parent=31 // pred_check_branch
        %180 = sbr.rel (%p178) target = $region36
      $region35: #{basic_block_forward.1} parent=31 // pred_region
        %p181 = scmp.lt.s32.totalorder %s11, 1
        %s182 = scalar_select %p181, %s11, 1
        %s183 = smul.addr %s182, 54
        %s184 = smul.addr %s183, 8
        %s185 = scalar_lea.vmem %s0, %s184
      $region36: #{basic_block_forward.1} parent=31 // pred_fallthru
        _
    $region32: #{basic_block_forward.1} parent=5 // pred_fallthru
      _
    %p186 = scmp.le.s32.totalorder 1, %s11
    %p187 = scmp.lt.s32.totalorder %s11, 3
    %p188 = pnand %p186, %p187
    %p189 = pneg %p188
    // Predicated region
    $region37: #{basic_block_forward.1} parent=5 // pred_check
      _
    $region38: #{basic_block_forward.1} parent=5 // pred_check_branch
      %191 = sbr.rel (%p188) target = $region40
    $region39: #{basic_block_forward.1} parent=5 // pred_region
      %s192 = ssub.s32 %s11, 1
      %p193 = scmp.lt.s32.totalorder %s16, 1
      %s194 = scalar_select %p193, %s16, 1
      %s195 = smul.addr %s194, 54
      %s196 = smul.addr %s195, 8
      %s197 = scalar_lea.vmem %s0, %s196
      %p198 = pneg %p37
      %p199 = pneg %p34
      %p200 = pneg %p58
      %p201 = pneg %p55
      %p202 = pneg %p79
      %p203 = pneg %p76
      %p204 = pneg %p100
      %p205 = pneg %p97
      %p206 = pneg %p121
      %p207 = pneg %p118
      %p208 = pneg %p147
      %p209 = pneg %p144
      %p210 = scmp.lt.s32.totalorder %s16, 1
      %s211 = scalar_select %p210, %s16, 1
      %s212 = smul.addr %s211, 32
      %s213 = smul.addr %s212, 8
      %s214 = scalar_lea.vmem %s5, %s213
      %p215 = scmp.lt.s32.totalorder %s16, 1
      %s216 = scalar_select %p215, %s16, 1
      %s217 = smul.addr %s216, 54
      %s218 = smul.addr %s217, 8
      %s219 = scalar_lea.vmem %s0, %s218
      %p220 = scmp.lt.s32.totalorder %s16, 1
      %s221 = scalar_select %p220, %s16, 1
      %s222 = smul.addr %s221, 32
      %s223 = smul.addr %s222, 8
      %s224 = scalar_lea.vmem %s5, %s223
      %vm226 = vcmask 27648
      %227 = vst.msk [vmem:[#allocation2] sm:$0xf] %vm226, 0
      %228 = vst.msk [vmem:[#allocation2 + $0x4] sm:$0xf] %vm226, 0
      %vm229 = vcmask 24576
      %230 = vst.msk [vmem:[#allocation2 + $0x8] sm:$0x1] %vm229, 0
      %s231 = scalar_lea.vmem [#allocation2], 204
      %232 = vst.msk [vmem:[%s231] sm:$0xf] %vm226, 0
      %233 = vst.msk [vmem:[%s231 + $0x4] sm:$0xf] %vm226, 0
      %234 = vst.msk [vmem:[%s231 + $0x8] sm:$0x1] %vm229, 0
      %vm235 = vcmask 24576
      %vm236 = vsmask.f32 256
      %vm237 = vmand %vm235, %vm236
      %v238 = vld [vmem:[#allocation2] sm:$0x1]
      %v239 = vsel %vm237, 0, %v238
      %240 = vst [vmem:[#allocation2] sm:$0x1] %v239
      %v241 = vld [vmem:[#allocation2 + $0xc] sm:$0x1]
      %v242 = vsel %vm237, 0, %v241
      %243 = vst [vmem:[#allocation2 + $0xc] sm:$0x1] %v242
      %v244 = vld [vmem:[#allocation2 + $0x18] sm:$0x1]
      %v245 = vsel %vm237, 0, %v244
      %246 = vst [vmem:[#allocation2 + $0x18] sm:$0x1] %v245
      %v247 = vld [vmem:[#allocation2 + $0x24] sm:$0x1]
      %v248 = vsel %vm237, 0, %v247
      %249 = vst [vmem:[#allocation2 + $0x24] sm:$0x1] %v248
      %v250 = vld [vmem:[#allocation2 + $0x30] sm:$0x1]
      %v251 = vsel %vm237, 0, %v250
      %252 = vst [vmem:[#allocation2 + $0x30] sm:$0x1] %v251
      %v253 = vld [vmem:[#allocation2 + $0x3c] sm:$0x1]
      %v254 = vsel %vm237, 0, %v253
      %255 = vst [vmem:[#allocation2 + $0x3c] sm:$0x1] %v254
      %v256 = vld [vmem:[#allocation2 + $0x48] sm:$0x1]
      %v257 = vsel %vm237, 0, %v256
      %258 = vst [vmem:[#allocation2 + $0x48] sm:$0x1] %v257
      %v259 = vld [vmem:[#allocation2 + $0x54] sm:$0x1]
      %v260 = vsel %vm237, 0, %v259
      %261 = vst [vmem:[#allocation2 + $0x54] sm:$0x1] %v260
      %v262 = vld [vmem:[#allocation2 + $0x60] sm:$0x1]
      %v263 = vsel %vm237, 0, %v262
      %264 = vst [vmem:[#allocation2 + $0x60] sm:$0x1] %v263
      %v265 = vld [vmem:[#allocation2 + $0x6c] sm:$0x1]
      %v266 = vsel %vm237, 0, %v265
      %267 = vst [vmem:[#allocation2 + $0x6c] sm:$0x1] %v266
      %v268 = vld [vmem:[#allocation2 + $0x78] sm:$0x1]
      %v269 = vsel %vm237, 0, %v268
      %270 = vst [vmem:[#allocation2 + $0x78] sm:$0x1] %v269
      %v271 = vld [vmem:[#allocation2 + $0x84] sm:$0x1]
      %v272 = vsel %vm237, 0, %v271
      %273 = vst [vmem:[#allocation2 + $0x84] sm:$0x1] %v272
      %v274 = vld [vmem:[#allocation2 + $0x90] sm:$0x1]
      %v275 = vsel %vm237, 0, %v274
      %276 = vst [vmem:[#allocation2 + $0x90] sm:$0x1] %v275
      %v277 = vld [vmem:[#allocation2 + $0x9c] sm:$0x1]
      %v278 = vsel %vm237, 0, %v277
      %279 = vst [vmem:[#allocation2 + $0x9c] sm:$0x1] %v278
      %v280 = vld [vmem:[#allocation2 + $0xa8] sm:$0x1]
      %v281 = vsel %vm237, 0, %v280
      %282 = vst [vmem:[#allocation2 + $0xa8] sm:$0x1] %v281
      %v283 = vld [vmem:[#allocation2 + $0xb4] sm:$0x1]
      %v284 = vsel %vm237, 0, %v283
      %285 = vst [vmem:[#allocation2 + $0xb4] sm:$0x1] %v284
      %v286 = vld [vmem:[#allocation2 + $0xc0] sm:$0x1]
      %v287 = vsel %vm237, 0, %v286
      %288 = vst [vmem:[#allocation2 + $0xc0] sm:$0x1] %v287
      %v289 = vld [vmem:[#allocation2 + $0xcc] sm:$0x1]
      %v290 = vsel %vm237, 0, %v289
      %291 = vst [vmem:[#allocation2 + $0xcc] sm:$0x1] %v290
      %vm292 = vsmask.f32 7938
      %vm293 = vmand %vm235, %vm292
      %v294 = vld [vmem:[#allocation2 + $0x8] sm:$0x1]
      %v295 = vsel %vm293, 0, %v294
      %296 = vst [vmem:[#allocation2 + $0x8] sm:$0x1] %v295
      %v297 = vld [vmem:[#allocation2 + $0x14] sm:$0x1]
      %v298 = vsel %vm293, 0, %v297
      %299 = vst [vmem:[#allocation2 + $0x14] sm:$0x1] %v298
      %v300 = vld [vmem:[#allocation2 + $0x20] sm:$0x1]
      %v301 = vsel %vm293, 0, %v300
      %302 = vst [vmem:[#allocation2 + $0x20] sm:$0x1] %v301
      %v303 = vld [vmem:[#allocation2 + $0x2c] sm:$0x1]
      %v304 = vsel %vm293, 0, %v303
      %305 = vst [vmem:[#allocation2 + $0x2c] sm:$0x1] %v304
      %v306 = vld [vmem:[#allocation2 + $0x38] sm:$0x1]
      %v307 = vsel %vm293, 0, %v306
      %308 = vst [vmem:[#allocation2 + $0x38] sm:$0x1] %v307
      %v309 = vld [vmem:[#allocation2 + $0x44] sm:$0x1]
      %v310 = vsel %vm293, 0, %v309
      %311 = vst [vmem:[#allocation2 + $0x44] sm:$0x1] %v310
      %v312 = vld [vmem:[#allocation2 + $0x50] sm:$0x1]
      %v313 = vsel %vm293, 0, %v312
      %314 = vst [vmem:[#allocation2 + $0x50] sm:$0x1] %v313
      %v315 = vld [vmem:[#allocation2 + $0x5c] sm:$0x1]
      %v316 = vsel %vm293, 0, %v315
      %317 = vst [vmem:[#allocation2 + $0x5c] sm:$0x1] %v316
      %v318 = vld [vmem:[#allocation2 + $0x68] sm:$0x1]
      %v319 = vsel %vm293, 0, %v318
      %320 = vst [vmem:[#allocation2 + $0x68] sm:$0x1] %v319
      %v321 = vld [vmem:[#allocation2 + $0x74] sm:$0x1]
      %v322 = vsel %vm293, 0, %v321
      %323 = vst [vmem:[#allocation2 + $0x74] sm:$0x1] %v322
      %v324 = vld [vmem:[#allocation2 + $0x80] sm:$0x1]
      %v325 = vsel %vm293, 0, %v324
      %326 = vst [vmem:[#allocation2 + $0x80] sm:$0x1] %v325
      %v327 = vld [vmem:[#allocation2 + $0x8c] sm:$0x1]
      %v328 = vsel %vm293, 0, %v327
      %329 = vst [vmem:[#allocation2 + $0x8c] sm:$0x1] %v328
      %v330 = vld [vmem:[#allocation2 + $0x98] sm:$0x1]
      %v331 = vsel %vm293, 0, %v330
      %332 = vst [vmem:[#allocation2 + $0x98] sm:$0x1] %v331
      %v333 = vld [vmem:[#allocation2 + $0xa4] sm:$0x1]
      %v334 = vsel %vm293, 0, %v333
      %335 = vst [vmem:[#allocation2 + $0xa4] sm:$0x1] %v334
      %v336 = vld [vmem:[#allocation2 + $0xb0] sm:$0x1]
      %v337 = vsel %vm293, 0, %v336
      %338 = vst [vmem:[#allocation2 + $0xb0] sm:$0x1] %v337
      %v339 = vld [vmem:[#allocation2 + $0xbc] sm:$0x1]
      %v340 = vsel %vm293, 0, %v339
      %341 = vst [vmem:[#allocation2 + $0xbc] sm:$0x1] %v340
      %v342 = vld [vmem:[#allocation2 + $0xc8] sm:$0x1]
      %v343 = vsel %vm293, 0, %v342
      %344 = vst [vmem:[#allocation2 + $0xc8] sm:$0x1] %v343
      %v345 = vld [vmem:[#allocation2 + $0xd4] sm:$0x1]
      %v346 = vsel %vm293, 0, %v345
      %347 = vst [vmem:[#allocation2 + $0xd4] sm:$0x1] %v346
      %v348 = vld [vmem:[%s1] sm:$0xf]
      %v349 = vld [vmem:[%s1 + $0x4] sm:$0xf]
      %v350 = vld [vmem:[%s1 + $0x8] sm:$0xf]
      %v351 = vld [vmem:[%s1 + $0xc] sm:$0xf]
      %v352 = vld [vmem:[%s1 + $0x10] sm:$0x3]
      %v353 = vld [vmem:[%s3] sm:$0xf]
      %v354 = vld [vmem:[%s3 + $0x4] sm:$0xf]
      %v355 = vld [vmem:[%s3 + $0x8] sm:$0xf]
      %v356 = vld [vmem:[%s3 + $0xc] sm:$0xf]
      %v357 = vld [vmem:[%s3 + $0x10] sm:$0x3]
      %v358 = vld [vmem:[%s2] sm:$0x1]
      %v359 = vld [vmem:[%s4] sm:$0x1]
      %v360 = vld [vmem:[%s219] sm:$0xff]
      %v361 = vld [vmem:[%s219 + $0x8] sm:$0xff]
      %v362 = vld [vmem:[%s219 + $0x10] sm:$0x3]
      %v363 = vld [vmem:[%s219 + $0x18] sm:$0xff]
      %v364 = vld [vmem:[%s219 + $0x20] sm:$0xff]
      %v365 = vld [vmem:[%s219 + $0x28] sm:$0x3]
      %v366 = vld [vmem:[%s219 + $0x30] sm:$0xff]
      %v367 = vld [vmem:[%s219 + $0x38] sm:$0xff]
      %v368 = vld [vmem:[%s219 + $0x40] sm:$0x3]
      %v369 = vld [vmem:[%s219 + $0x48] sm:$0xff]
      %v370 = vld [vmem:[%s219 + $0x50] sm:$0xff]
      %v371 = vld [vmem:[%s219 + $0x58] sm:$0x3]
      %v372 = vld [vmem:[%s219 + $0x60] sm:$0xff]
      %v373 = vld [vmem:[%s219 + $0x68] sm:$0xff]
      %v374 = vld [vmem:[%s219 + $0x70] sm:$0x3]
      %v375 = vld [vmem:[%s219 + $0x78] sm:$0xff]
      %v376 = vld [vmem:[%s219 + $0x80] sm:$0xff]
      %v377 = vld [vmem:[%s219 + $0x88] sm:$0x3]
      %v378 = vld [vmem:[%s219 + $0x90] sm:$0xff]
      %v379 = vld [vmem:[%s219 + $0x98] sm:$0xff]
      %v380 = vld [vmem:[%s219 + $0xa0] sm:$0x3]
      %v381 = vld [vmem:[%s219 + $0xa8] sm:$0xff]
      %v382 = vld [vmem:[%s219 + $0xb0] sm:$0xff]
      %v383 = vld [vmem:[%s219 + $0xb8] sm:$0x3]
      %v384 = vld [vmem:[%s219 + $0xc0] sm:$0xff]
      %v385 = vld [vmem:[%s219 + $0xc8] sm:$0xff]
      %v386 = vld [vmem:[%s219 + $0xd0] sm:$0x3]
      %v387 = vld [vmem:[%s219 + $0xd8] sm:$0xff]
      %v388 = vld [vmem:[%s219 + $0xe0] sm:$0xff]
      %v389 = vld [vmem:[%s219 + $0xe8] sm:$0x3]
      %v390 = vld [vmem:[%s219 + $0xf0] sm:$0xff]
      %v391 = vld [vmem:[%s219 + $0xf8] sm:$0xff]
      %v392 = vld [vmem:[%s219 + $0x100] sm:$0x3]
      %v393 = vld [vmem:[%s219 + $0x108] sm:$0xff]
      %v394 = vld [vmem:[%s219 + $0x110] sm:$0xff]
      %v395 = vld [vmem:[%s219 + $0x118] sm:$0x3]
      %v396 = vld [vmem:[%s219 + $0x120] sm:$0xff]
      %v397 = vld [vmem:[%s219 + $0x128] sm:$0xff]
      %v398 = vld [vmem:[%s219 + $0x130] sm:$0x3]
      %v399 = vld [vmem:[%s219 + $0x138] sm:$0xff]
      %v400 = vld [vmem:[%s219 + $0x140] sm:$0xff]
      %v401 = vld [vmem:[%s219 + $0x148] sm:$0x3]
      %v402 = vld [vmem:[%s219 + $0x150] sm:$0xff]
      %v403 = vld [vmem:[%s219 + $0x158] sm:$0xff]
      %v404 = vld [vmem:[%s219 + $0x160] sm:$0x3]
      %v405 = vld [vmem:[%s219 + $0x168] sm:$0xff]
      %v406 = vld [vmem:[%s219 + $0x170] sm:$0xff]
      %v407 = vld [vmem:[%s219 + $0x178] sm:$0x3]
      %v408 = vld [vmem:[%s219 + $0x180] sm:$0xff]
      %v409 = vld [vmem:[%s219 + $0x188] sm:$0xff]
      %v410 = vld [vmem:[%s219 + $0x190] sm:$0x3]
      %v411 = vld [vmem:[%s219 + $0x198] sm:$0xff]
      %v412 = vld [vmem:[%s219 + $0x1a0] sm:$0xff]
      %v413 = vld [vmem:[%s219 + $0x1a8] sm:$0x3]
      %v414 = vpack.c.bf16 %v361, %v360
      %v415 = vpack.c.bf16 %v362, %v362
      %v416 = vpack.c.bf16 %v364, %v363
      %v417 = vpack.c.bf16 %v365, %v365
      %v418 = vpack.c.bf16 %v367, %v366
      %v419 = vpack.c.bf16 %v368, %v368
      %v420 = vpack.c.bf16 %v370, %v369
      %v421 = vpack.c.bf16 %v371, %v371
      %v422 = vpack.c.bf16 %v373, %v372
      %v423 = vpack.c.bf16 %v374, %v374
      %v424 = vpack.c.bf16 %v376, %v375
      %v425 = vpack.c.bf16 %v377, %v377
      %v426 = vpack.c.bf16 %v379, %v378
      %v427 = vpack.c.bf16 %v380, %v380
      %v428 = vpack.c.bf16 %v382, %v381
      %v429 = vpack.c.bf16 %v383, %v383
      %v430 = vpack.c.bf16 %v385, %v384
      %v431 = vpack.c.bf16 %v386, %v386
      %v432 = vpack.c.bf16 %v388, %v387
      %v433 = vpack.c.bf16 %v389, %v389
      %v434 = vpack.c.bf16 %v391, %v390
      %v435 = vpack.c.bf16 %v392, %v392
      %v436 = vpack.c.bf16 %v394, %v393
      %v437 = vpack.c.bf16 %v395, %v395
      %v438 = vpack.c.bf16 %v397, %v396
      %v439 = vpack.c.bf16 %v398, %v398
      %v440 = vpack.c.bf16 %v400, %v399
      %v441 = vpack.c.bf16 %v401, %v401
      %v442 = vpack.c.bf16 %v403, %v402
      %v443 = vpack.c.bf16 %v404, %v404
      %v444 = vpack.c.bf16 %v406, %v405
      %v445 = vpack.c.bf16 %v407, %v407
      %v446 = vpack.c.bf16 %v409, %v408
      %v447 = vpack.c.bf16 %v410, %v410
      %v448 = vpack.c.bf16 %v412, %v411
      %v449 = vpack.c.bf16 %v413, %v413
      %vm450 = vsmask.f32 7424
      %v452 = vshrl.u32 %v414, 16
      %v454 = vshll.u32 %v414, 16
      %v456 = vrot.slane %v454, 1
      %v457 = vor.u32 %v452, %v456
      %v459 = vshll.u32 %v415, 16
      %v461 = vrot.slane %v459, 1
      %v462 = vsel %vm450, %v457, %v461
      %v464 = vshrl.u32 %v416, 16
      %v466 = vshll.u32 %v416, 16
      %v468 = vrot.slane %v466, 1
      %v469 = vor.u32 %v464, %v468
      %v471 = vshll.u32 %v417, 16
      %v473 = vrot.slane %v471, 1
      %v474 = vsel %vm450, %v469, %v473
      %v476 = vshrl.u32 %v418, 16
      %v478 = vshll.u32 %v418, 16
      %v480 = vrot.slane %v478, 1
      %v481 = vor.u32 %v476, %v480
      %v483 = vshll.u32 %v419, 16
      %v485 = vrot.slane %v483, 1
      %v486 = vsel %vm450, %v481, %v485
      %v488 = vshrl.u32 %v420, 16
      %v490 = vshll.u32 %v420, 16
      %v492 = vrot.slane %v490, 1
      %v493 = vor.u32 %v488, %v492
      %v495 = vshll.u32 %v421, 16
      %v497 = vrot.slane %v495, 1
      %v498 = vsel %vm450, %v493, %v497
      %v500 = vshrl.u32 %v422, 16
      %v502 = vshll.u32 %v422, 16
      %v504 = vrot.slane %v502, 1
      %v505 = vor.u32 %v500, %v504
      %v507 = vshll.u32 %v423, 16
      %v509 = vrot.slane %v507, 1
      %v510 = vsel %vm450, %v505, %v509
      %v512 = vshrl.u32 %v424, 16
      %v514 = vshll.u32 %v424, 16
      %v516 = vrot.slane %v514, 1
      %v517 = vor.u32 %v512, %v516
      %v519 = vshll.u32 %v425, 16
      %v521 = vrot.slane %v519, 1
      %v522 = vsel %vm450, %v517, %v521
      %v524 = vshrl.u32 %v426, 16
      %v526 = vshll.u32 %v426, 16
      %v528 = vrot.slane %v526, 1
      %v529 = vor.u32 %v524, %v528
      %v531 = vshll.u32 %v427, 16
      %v533 = vrot.slane %v531, 1
      %v534 = vsel %vm450, %v529, %v533
      %v536 = vshrl.u32 %v428, 16
      %v538 = vshll.u32 %v428, 16
      %v540 = vrot.slane %v538, 1
      %v541 = vor.u32 %v536, %v540
      %v543 = vshll.u32 %v429, 16
      %v545 = vrot.slane %v543, 1
      %v546 = vsel %vm450, %v541, %v545
      %v548 = vshrl.u32 %v430, 16
      %v550 = vshll.u32 %v430, 16
      %v552 = vrot.slane %v550, 1
      %v553 = vor.u32 %v548, %v552
      %v555 = vshll.u32 %v431, 16
      %v557 = vrot.slane %v555, 1
      %v558 = vsel %vm450, %v553, %v557
      %v560 = vshrl.u32 %v432, 16
      %v562 = vshll.u32 %v432, 16
      %v564 = vrot.slane %v562, 1
      %v565 = vor.u32 %v560, %v564
      %v567 = vshll.u32 %v433, 16
      %v569 = vrot.slane %v567, 1
      %v570 = vsel %vm450, %v565, %v569
      %v572 = vshrl.u32 %v434, 16
      %v574 = vshll.u32 %v434, 16
      %v576 = vrot.slane %v574, 1
      %v577 = vor.u32 %v572, %v576
      %v579 = vshll.u32 %v435, 16
      %v581 = vrot.slane %v579, 1
      %v582 = vsel %vm450, %v577, %v581
      %v584 = vshrl.u32 %v436, 16
      %v586 = vshll.u32 %v436, 16
      %v588 = vrot.slane %v586, 1
      %v589 = vor.u32 %v584, %v588
      %v591 = vshll.u32 %v437, 16
      %v593 = vrot.slane %v591, 1
      %v594 = vsel %vm450, %v589, %v593
      %v596 = vshrl.u32 %v438, 16
      %v598 = vshll.u32 %v438, 16
      %v600 = vrot.slane %v598, 1
      %v601 = vor.u32 %v596, %v600
      %v603 = vshll.u32 %v439, 16
      %v605 = vrot.slane %v603, 1
      %v606 = vsel %vm450, %v601, %v605
      %v608 = vshrl.u32 %v440, 16
      %v610 = vshll.u32 %v440, 16
      %v612 = vrot.slane %v610, 1
      %v613 = vor.u32 %v608, %v612
      %v615 = vshll.u32 %v441, 16
      %v617 = vrot.slane %v615, 1
      %v618 = vsel %vm450, %v613, %v617
      %v620 = vshrl.u32 %v442, 16
      %v622 = vshll.u32 %v442, 16
      %v624 = vrot.slane %v622, 1
      %v625 = vor.u32 %v620, %v624
      %v627 = vshll.u32 %v443, 16
      %v629 = vrot.slane %v627, 1
      %v630 = vsel %vm450, %v625, %v629
      %v632 = vshrl.u32 %v444, 16
      %v634 = vshll.u32 %v444, 16
      %v636 = vrot.slane %v634, 1
      %v637 = vor.u32 %v632, %v636
      %v639 = vshll.u32 %v445, 16
      %v641 = vrot.slane %v639, 1
      %v642 = vsel %vm450, %v637, %v641
      %vm675 = vcmask 1046528
      %v676 = vrot.slane %v414, 1
      %v677 = vrot.slane %v415, 1
      %v678 = vsel %vm675, %v676, %v677
      %v679 = vrot.slane %v416, 1
      %v680 = vrot.slane %v417, 1
      %v681 = vsel %vm675, %v679, %v680
      %v682 = vrot.slane %v418, 1
      %v683 = vrot.slane %v419, 1
      %v684 = vsel %vm675, %v682, %v683
      %v685 = vrot.slane %v420, 1
      %v686 = vrot.slane %v421, 1
      %v687 = vsel %vm675, %v685, %v686
      %v688 = vrot.slane %v422, 1
      %v689 = vrot.slane %v423, 1
      %v690 = vsel %vm675, %v688, %v689
      %v691 = vrot.slane %v424, 1
      %v692 = vrot.slane %v425, 1
      %v693 = vsel %vm675, %v691, %v692
      %v694 = vrot.slane %v426, 1
      %v695 = vrot.slane %v427, 1
      %v696 = vsel %vm675, %v694, %v695
      %v697 = vrot.slane %v428, 1
      %v698 = vrot.slane %v429, 1
      %v699 = vsel %vm675, %v697, %v698
      %v700 = vrot.slane %v430, 1
      %v701 = vrot.slane %v431, 1
      %v702 = vsel %vm675, %v700, %v701
      %v703 = vrot.slane %v432, 1
      %v704 = vrot.slane %v433, 1
      %v705 = vsel %vm675, %v703, %v704
      %v706 = vrot.slane %v434, 1
      %v707 = vrot.slane %v435, 1
      %v708 = vsel %vm675, %v706, %v707
      %v709 = vrot.slane %v436, 1
      %v710 = vrot.slane %v437, 1
      %v711 = vsel %vm675, %v709, %v710
      %v712 = vrot.slane %v438, 1
      %v713 = vrot.slane %v439, 1
      %v714 = vsel %vm675, %v712, %v713
      %v715 = vrot.slane %v440, 1
      %v716 = vrot.slane %v441, 1
      %v717 = vsel %vm675, %v715, %v716
      %v718 = vrot.slane %v442, 1
      %v719 = vrot.slane %v443, 1
      %v720 = vsel %vm675, %v718, %v719
      %v721 = vrot.slane %v444, 1
      %v722 = vrot.slane %v445, 1
      %v723 = vsel %vm675, %v721, %v722
      %v725 = vshrl.u32 %v446, 16
      %v727 = vshll.u32 %v446, 16
      %v729 = vrot.slane %v727, 1
      %v730 = vor.u32 %v725, %v729
      %v732 = vshll.u32 %v447, 16
      %v734 = vrot.slane %v732, 1
      %v735 = vsel %vm450, %v730, %v734
      %v738 = vrot.slane %v446, 1
      %v739 = vrot.slane %v447, 1
      %v740 = vsel %vm675, %v738, %v739
      %v742 = vshrl.u32 %v448, 16
      %v744 = vshll.u32 %v448, 16
      %v746 = vrot.slane %v744, 1
      %v747 = vor.u32 %v742, %v746
      %v749 = vshll.u32 %v449, 16
      %v751 = vrot.slane %v749, 1
      %v752 = vsel %vm450, %v747, %v751
      %v755 = vrot.slane %v448, 1
      %v756 = vrot.slane %v449, 1
      %v757 = vsel %vm675, %v755, %v756
      %758 = vrot.lane.b32.xlu0 %v462, 4
      %v759 = vpop.permute.xlu0 %758
      %760 = vrot.lane.b32.xlu0 %v474, 4
      %v761 = vpop.permute.xlu0 %760
      %762 = vrot.lane.b32.xlu0 %v486, 4
      %v763 = vpop.permute.xlu0 %762
      %764 = vrot.lane.b32.xlu0 %v498, 4
      %v765 = vpop.permute.xlu0 %764
      %766 = vrot.lane.b32.xlu0 %v510, 4
      %v767 = vpop.permute.xlu0 %766
      %768 = vrot.lane.b32.xlu0 %v522, 4
      %v769 = vpop.permute.xlu0 %768
      %770 = vrot.lane.b32.xlu0 %v534, 4
      %v771 = vpop.permute.xlu0 %770
      %772 = vrot.lane.b32.xlu0 %v546, 4
      %v773 = vpop.permute.xlu0 %772
      %774 = vrot.lane.b32.xlu0 %v558, 4
      %v775 = vpop.permute.xlu0 %774
      %776 = vrot.lane.b32.xlu0 %v570, 4
      %v777 = vpop.permute.xlu0 %776
      %778 = vrot.lane.b32.xlu0 %v582, 4
      %v779 = vpop.permute.xlu0 %778
      %780 = vrot.lane.b32.xlu0 %v594, 4
      %v781 = vpop.permute.xlu0 %780
      %782 = vrot.lane.b32.xlu0 %v606, 4
      %v783 = vpop.permute.xlu0 %782
      %784 = vrot.lane.b32.xlu0 %v618, 4
      %v785 = vpop.permute.xlu0 %784
      %786 = vrot.lane.b32.xlu0 %v630, 4
      %v787 = vpop.permute.xlu0 %786
      %788 = vrot.lane.b32.xlu0 %v642, 4
      %v789 = vpop.permute.xlu0 %788
      %790 = vrot.lane.b32.xlu0 %v678, 8
      %v791 = vpop.permute.xlu0 %790
      %792 = vrot.lane.b32.xlu0 %v681, 8
      %v793 = vpop.permute.xlu0 %792
      %794 = vrot.lane.b32.xlu0 %v684, 8
      %v795 = vpop.permute.xlu0 %794
      %796 = vrot.lane.b32.xlu0 %v687, 8
      %v797 = vpop.permute.xlu0 %796
      %798 = vrot.lane.b32.xlu0 %v690, 8
      %v799 = vpop.permute.xlu0 %798
      %800 = vrot.lane.b32.xlu0 %v693, 8
      %v801 = vpop.permute.xlu0 %800
      %802 = vrot.lane.b32.xlu0 %v696, 8
      %v803 = vpop.permute.xlu0 %802
      %804 = vrot.lane.b32.xlu0 %v699, 8
      %v805 = vpop.permute.xlu0 %804
      %806 = vrot.lane.b32.xlu0 %v702, 8
      %v807 = vpop.permute.xlu0 %806
      %808 = vrot.lane.b32.xlu0 %v705, 8
      %v809 = vpop.permute.xlu0 %808
      %810 = vrot.lane.b32.xlu0 %v708, 8
      %v811 = vpop.permute.xlu0 %810
      %812 = vrot.lane.b32.xlu0 %v711, 8
      %v813 = vpop.permute.xlu0 %812
      %814 = vrot.lane.b32.xlu0 %v714, 8
      %v815 = vpop.permute.xlu0 %814
      %816 = vrot.lane.b32.xlu0 %v717, 8
      %v817 = vpop.permute.xlu0 %816
      %818 = vrot.lane.b32.xlu0 %v720, 8
      %v819 = vpop.permute.xlu0 %818
      %820 = vrot.lane.b32.xlu0 %v723, 8
      %v821 = vpop.permute.xlu0 %820
      %822 = vrot.lane.b32.xlu0 %v416, 12
      %v823 = vpop.permute.xlu0 %822
      %824 = vrot.lane.b32.xlu0 %v418, 12
      %v825 = vpop.permute.xlu0 %824
      %826 = vrot.lane.b32.xlu0 %v420, 12
      %v827 = vpop.permute.xlu0 %826
      %828 = vrot.lane.b32.xlu0 %v422, 12
      %v829 = vpop.permute.xlu0 %828
      %830 = vrot.lane.b32.xlu0 %v424, 12
      %v831 = vpop.permute.xlu0 %830
      %832 = vrot.lane.b32.xlu0 %v426, 12
      %v833 = vpop.permute.xlu0 %832
      %834 = vrot.lane.b32.xlu0 %v428, 12
      %v835 = vpop.permute.xlu0 %834
      %836 = vrot.lane.b32.xlu0 %v430, 12
      %v837 = vpop.permute.xlu0 %836
      %838 = vrot.lane.b32.xlu0 %v432, 12
      %v839 = vpop.permute.xlu0 %838
      %840 = vrot.lane.b32.xlu0 %v434, 12
      %v841 = vpop.permute.xlu0 %840
      %842 = vrot.lane.b32.xlu0 %v436, 12
      %v843 = vpop.permute.xlu0 %842
      %844 = vrot.lane.b32.xlu0 %v438, 12
      %v845 = vpop.permute.xlu0 %844
      %846 = vrot.lane.b32.xlu0 %v440, 12
      %v847 = vpop.permute.xlu0 %846
      %848 = vrot.lane.b32.xlu0 %v442, 12
      %v849 = vpop.permute.xlu0 %848
      %850 = vrot.lane.b32.xlu0 %v444, 12
      %v851 = vpop.permute.xlu0 %850
      %852 = vrot.lane.b32.xlu0 %v446, 12
      %v853 = vpop.permute.xlu0 %852
      %854 = vrot.lane.b32.xlu0 %v474, 16
      %v855 = vpop.permute.xlu0 %854
      %856 = vrot.lane.b32.xlu0 %v486, 16
      %v857 = vpop.permute.xlu0 %856
      %858 = vrot.lane.b32.xlu0 %v498, 16
      %v859 = vpop.permute.xlu0 %858
      %860 = vrot.lane.b32.xlu0 %v510, 16
      %v861 = vpop.permute.xlu0 %860
      %862 = vrot.lane.b32.xlu0 %v522, 16
      %v863 = vpop.permute.xlu0 %862
      %864 = vrot.lane.b32.xlu0 %v534, 16
      %v865 = vpop.permute.xlu0 %864
      %866 = vrot.lane.b32.xlu0 %v546, 16
      %v867 = vpop.permute.xlu0 %866
      %868 = vrot.lane.b32.xlu0 %v558, 16
      %v869 = vpop.permute.xlu0 %868
      %870 = vrot.lane.b32.xlu0 %v570, 16
      %v871 = vpop.permute.xlu0 %870
      %872 = vrot.lane.b32.xlu0 %v582, 16
      %v873 = vpop.permute.xlu0 %872
      %874 = vrot.lane.b32.xlu0 %v594, 16
      %v875 = vpop.permute.xlu0 %874
      %876 = vrot.lane.b32.xlu0 %v606, 16
      %v877 = vpop.permute.xlu0 %876
      %878 = vrot.lane.b32.xlu0 %v618, 16
      %v879 = vpop.permute.xlu0 %878
      %880 = vrot.lane.b32.xlu0 %v630, 16
      %v881 = vpop.permute.xlu0 %880
      %882 = vrot.lane.b32.xlu0 %v642, 16
      %v883 = vpop.permute.xlu0 %882
      %884 = vrot.lane.b32.xlu0 %v735, 16
      %v885 = vpop.permute.xlu0 %884
      %886 = vrot.lane.b32.xlu0 %v681, 20
      %v887 = vpop.permute.xlu0 %886
      %888 = vrot.lane.b32.xlu0 %v684, 20
      %v889 = vpop.permute.xlu0 %888
      %890 = vrot.lane.b32.xlu0 %v687, 20
      %v891 = vpop.permute.xlu0 %890
      %892 = vrot.lane.b32.xlu0 %v690, 20
      %v893 = vpop.permute.xlu0 %892
      %894 = vrot.lane.b32.xlu0 %v693, 20
      %v895 = vpop.permute.xlu0 %894
      %896 = vrot.lane.b32.xlu0 %v696, 20
      %v897 = vpop.permute.xlu0 %896
      %898 = vrot.lane.b32.xlu0 %v699, 20
      %v899 = vpop.permute.xlu0 %898
      %900 = vrot.lane.b32.xlu0 %v702, 20
      %v901 = vpop.permute.xlu0 %900
      %902 = vrot.lane.b32.xlu0 %v705, 20
      %v903 = vpop.permute.xlu0 %902
      %904 = vrot.lane.b32.xlu0 %v708, 20
      %v905 = vpop.permute.xlu0 %904
      %906 = vrot.lane.b32.xlu0 %v711, 20
      %v907 = vpop.permute.xlu0 %906
      %908 = vrot.lane.b32.xlu0 %v714, 20
      %v909 = vpop.permute.xlu0 %908
      %910 = vrot.lane.b32.xlu0 %v717, 20
      %v911 = vpop.permute.xlu0 %910
      %912 = vrot.lane.b32.xlu0 %v720, 20
      %v913 = vpop.permute.xlu0 %912
      %914 = vrot.lane.b32.xlu0 %v723, 20
      %v915 = vpop.permute.xlu0 %914
      %916 = vrot.lane.b32.xlu0 %v740, 20
      %v917 = vpop.permute.xlu0 %916
      %918 = vrot.lane.b32.xlu0 %v418, 24
      %v919 = vpop.permute.xlu0 %918
      %920 = vrot.lane.b32.xlu0 %v420, 24
      %v921 = vpop.permute.xlu0 %920
      %922 = vrot.lane.b32.xlu0 %v422, 24
      %v923 = vpop.permute.xlu0 %922
      %924 = vrot.lane.b32.xlu0 %v424, 24
      %v925 = vpop.permute.xlu0 %924
      %926 = vrot.lane.b32.xlu0 %v426, 24
      %v927 = vpop.permute.xlu0 %926
      %928 = vrot.lane.b32.xlu0 %v428, 24
      %v929 = vpop.permute.xlu0 %928
      %930 = vrot.lane.b32.xlu0 %v430, 24
      %v931 = vpop.permute.xlu0 %930
      %932 = vrot.lane.b32.xlu0 %v432, 24
      %v933 = vpop.permute.xlu0 %932
      %934 = vrot.lane.b32.xlu0 %v434, 24
      %v935 = vpop.permute.xlu0 %934
      %936 = vrot.lane.b32.xlu0 %v436, 24
      %v937 = vpop.permute.xlu0 %936
      %938 = vrot.lane.b32.xlu0 %v438, 24
      %v939 = vpop.permute.xlu0 %938
      %940 = vrot.lane.b32.xlu0 %v440, 24
      %v941 = vpop.permute.xlu0 %940
      %942 = vrot.lane.b32.xlu0 %v442, 24
      %v943 = vpop.permute.xlu0 %942
      %944 = vrot.lane.b32.xlu0 %v444, 24
      %v945 = vpop.permute.xlu0 %944
      %946 = vrot.lane.b32.xlu0 %v446, 24
      %v947 = vpop.permute.xlu0 %946
      %948 = vrot.lane.b32.xlu0 %v448, 24
      %v949 = vpop.permute.xlu0 %948
      %950 = vrot.lane.b32.xlu0 %v486, 28
      %v951 = vpop.permute.xlu0 %950
      %952 = vrot.lane.b32.xlu0 %v498, 28
      %v953 = vpop.permute.xlu0 %952
      %954 = vrot.lane.b32.xlu0 %v510, 28
      %v955 = vpop.permute.xlu0 %954
      %956 = vrot.lane.b32.xlu0 %v522, 28
      %v957 = vpop.permute.xlu0 %956
      %958 = vrot.lane.b32.xlu0 %v534, 28
      %v959 = vpop.permute.xlu0 %958
      %960 = vrot.lane.b32.xlu0 %v546, 28
      %v961 = vpop.permute.xlu0 %960
      %962 = vrot.lane.b32.xlu0 %v558, 28
      %v963 = vpop.permute.xlu0 %962
      %964 = vrot.lane.b32.xlu0 %v570, 28
      %v965 = vpop.permute.xlu0 %964
      %966 = vrot.lane.b32.xlu0 %v582, 28
      %v967 = vpop.permute.xlu0 %966
      %968 = vrot.lane.b32.xlu0 %v594, 28
      %v969 = vpop.permute.xlu0 %968
      %970 = vrot.lane.b32.xlu0 %v606, 28
      %v971 = vpop.permute.xlu0 %970
      %972 = vrot.lane.b32.xlu0 %v618, 28
      %v973 = vpop.permute.xlu0 %972
      %974 = vrot.lane.b32.xlu0 %v630, 28
      %v975 = vpop.permute.xlu0 %974
      %976 = vrot.lane.b32.xlu0 %v642, 28
      %v977 = vpop.permute.xlu0 %976
      %978 = vrot.lane.b32.xlu0 %v735, 28
      %v979 = vpop.permute.xlu0 %978
      %980 = vrot.lane.b32.xlu0 %v752, 28
      %v981 = vpop.permute.xlu0 %980
      %982 = vrot.lane.b32.xlu0 %v684, 32
      %v983 = vpop.permute.xlu0 %982
      %984 = vrot.lane.b32.xlu0 %v687, 32
      %v985 = vpop.permute.xlu0 %984
      %986 = vrot.lane.b32.xlu0 %v690, 32
      %v987 = vpop.permute.xlu0 %986
      %988 = vrot.lane.b32.xlu0 %v693, 32
      %v989 = vpop.permute.xlu0 %988
      %990 = vrot.lane.b32.xlu0 %v696, 32
      %v991 = vpop.permute.xlu0 %990
      %992 = vrot.lane.b32.xlu0 %v699, 32
      %v993 = vpop.permute.xlu0 %992
      %994 = vrot.lane.b32.xlu0 %v702, 32
      %v995 = vpop.permute.xlu0 %994
      %996 = vrot.lane.b32.xlu0 %v705, 32
      %v997 = vpop.permute.xlu0 %996
      %998 = vrot.lane.b32.xlu0 %v708, 32
      %v999 = vpop.permute.xlu0 %998
      %1000 = vrot.lane.b32.xlu0 %v711, 32
      %v1001 = vpop.permute.xlu0 %1000
      %1002 = vrot.lane.b32.xlu0 %v714, 32
      %v1003 = vpop.permute.xlu0 %1002
      %1004 = vrot.lane.b32.xlu0 %v717, 32
      %v1005 = vpop.permute.xlu0 %1004
      %1006 = vrot.lane.b32.xlu0 %v720, 32
      %v1007 = vpop.permute.xlu0 %1006
      %1008 = vrot.lane.b32.xlu0 %v723, 32
      %v1009 = vpop.permute.xlu0 %1008
      %1010 = vrot.lane.b32.xlu0 %v740, 32
      %v1011 = vpop.permute.xlu0 %1010
      %1012 = vrot.lane.b32.xlu0 %v757, 32
      %v1013 = vpop.permute.xlu0 %1012
      %vm1014 = vcmask 31744
      %v1016 = vsel %vm1014, %v414, %v759
      %v1018 = vsel %vm1014, %v416, %v761
      %v1020 = vsel %vm1014, %v418, %v763
      %v1022 = vsel %vm1014, %v420, %v765
      %v1024 = vsel %vm1014, %v422, %v767
      %v1026 = vsel %vm1014, %v424, %v769
      %v1028 = vsel %vm1014, %v426, %v771
      %v1030 = vsel %vm1014, %v428, %v773
      %v1032 = vsel %vm1014, %v430, %v775
      %v1034 = vsel %vm1014, %v432, %v777
      %v1036 = vsel %vm1014, %v434, %v779
      %v1038 = vsel %vm1014, %v436, %v781
      %v1040 = vsel %vm1014, %v438, %v783
      %v1042 = vsel %vm1014, %v440, %v785
      %v1044 = vsel %vm1014, %v442, %v787
      %v1046 = vsel %vm1014, %v444, %v789
      %vm1047 = vcmask 64512
      %v1049 = vsel %vm1047, %v1016, %v791
      %v1051 = vsel %vm1047, %v1018, %v793
      %v1053 = vsel %vm1047, %v1020, %v795
      %v1055 = vsel %vm1047, %v1022, %v797
      %v1057 = vsel %vm1047, %v1024, %v799
      %v1059 = vsel %vm1047, %v1026, %v801
      %v1061 = vsel %vm1047, %v1028, %v803
      %v1063 = vsel %vm1047, %v1030, %v805
      %v1065 = vsel %vm1047, %v1032, %v807
      %v1067 = vsel %vm1047, %v1034, %v809
      %v1069 = vsel %vm1047, %v1036, %v811
      %v1071 = vsel %vm1047, %v1038, %v813
      %v1073 = vsel %vm1047, %v1040, %v815
      %v1075 = vsel %vm1047, %v1042, %v817
      %v1077 = vsel %vm1047, %v1044, %v819
      %v1079 = vsel %vm1047, %v1046, %v821
      %vm1080 = vcmask 97280
      %v1082 = vsel %vm1080, %v1049, %v823
      %v1084 = vsel %vm1080, %v1051, %v825
      %v1086 = vsel %vm1080, %v1053, %v827
      %v1088 = vsel %vm1080, %v1055, %v829
      %v1090 = vsel %vm1080, %v1057, %v831
      %v1092 = vsel %vm1080, %v1059, %v833
      %v1094 = vsel %vm1080, %v1061, %v835
      %v1096 = vsel %vm1080, %v1063, %v837
      %v1098 = vsel %vm1080, %v1065, %v839
      %v1100 = vsel %vm1080, %v1067, %v841
      %v1102 = vsel %vm1080, %v1069, %v843
      %v1104 = vsel %vm1080, %v1071, %v845
      %v1106 = vsel %vm1080, %v1073, %v847
      %v1108 = vsel %vm1080, %v1075, %v849
      %v1110 = vsel %vm1080, %v1077, %v851
      %v1112 = vsel %vm1080, %v1079, %v853
      %vm1113 = vcmask 130048
      %v1115 = vsel %vm1113, %v1082, %v855
      %v1117 = vsel %vm1113, %v1084, %v857
      %v1119 = vsel %vm1113, %v1086, %v859
      %v1121 = vsel %vm1113, %v1088, %v861
      %v1123 = vsel %vm1113, %v1090, %v863
      %v1125 = vsel %vm1113, %v1092, %v865
      %v1127 = vsel %vm1113, %v1094, %v867
      %v1129 = vsel %vm1113, %v1096, %v869
      %v1131 = vsel %vm1113, %v1098, %v871
      %v1133 = vsel %vm1113, %v1100, %v873
      %v1135 = vsel %vm1113, %v1102, %v875
      %v1137 = vsel %vm1113, %v1104, %v877
      %v1139 = vsel %vm1113, %v1106, %v879
      %v1141 = vsel %vm1113, %v1108, %v881
      %v1143 = vsel %vm1113, %v1110, %v883
      %v1145 = vsel %vm1113, %v1112, %v885
      %vm1146 = vcmask 162816
      %v1148 = vsel %vm1146, %v1115, %v887
      %v1150 = vsel %vm1146, %v1117, %v889
      %v1152 = vsel %vm1146, %v1119, %v891
      %v1154 = vsel %vm1146, %v1121, %v893
      %v1156 = vsel %vm1146, %v1123, %v895
      %v1158 = vsel %vm1146, %v1125, %v897
      %v1160 = vsel %vm1146, %v1127, %v899
      %v1162 = vsel %vm1146, %v1129, %v901
      %v1164 = vsel %vm1146, %v1131, %v903
      %v1166 = vsel %vm1146, %v1133, %v905
      %v1168 = vsel %vm1146, %v1135, %v907
      %v1170 = vsel %vm1146, %v1137, %v909
      %v1172 = vsel %vm1146, %v1139, %v911
      %v1174 = vsel %vm1146, %v1141, %v913
      %v1176 = vsel %vm1146, %v1143, %v915
      %v1178 = vsel %vm1146, %v1145, %v917
      %vm1179 = vcmask 195584
      %v1181 = vsel %vm1179, %v1148, %v919
      %v1183 = vsel %vm1179, %v1150, %v921
      %v1185 = vsel %vm1179, %v1152, %v923
      %v1187 = vsel %vm1179, %v1154, %v925
      %v1189 = vsel %vm1179, %v1156, %v927
      %v1191 = vsel %vm1179, %v1158, %v929
      %v1193 = vsel %vm1179, %v1160, %v931
      %v1195 = vsel %vm1179, %v1162, %v933
      %v1197 = vsel %vm1179, %v1164, %v935
      %v1199 = vsel %vm1179, %v1166, %v937
      %v1201 = vsel %vm1179, %v1168, %v939
      %v1203 = vsel %vm1179, %v1170, %v941
      %v1205 = vsel %vm1179, %v1172, %v943
      %v1207 = vsel %vm1179, %v1174, %v945
      %v1209 = vsel %vm1179, %v1176, %v947
      %v1211 = vsel %vm1179, %v1178, %v949
      %vm1212 = vcmask 228352
      %v1214 = vsel %vm1212, %v1181, %v951
      %v1216 = vsel %vm1212, %v1183, %v953
      %v1218 = vsel %vm1212, %v1185, %v955
      %v1220 = vsel %vm1212, %v1187, %v957
      %v1222 = vsel %vm1212, %v1189, %v959
      %v1224 = vsel %vm1212, %v1191, %v961
      %v1226 = vsel %vm1212, %v1193, %v963
      %v1228 = vsel %vm1212, %v1195, %v965
      %v1230 = vsel %vm1212, %v1197, %v967
      %v1232 = vsel %vm1212, %v1199, %v969
      %v1234 = vsel %vm1212, %v1201, %v971
      %v1236 = vsel %vm1212, %v1203, %v973
      %v1238 = vsel %vm1212, %v1205, %v975
      %v1240 = vsel %vm1212, %v1207, %v977
      %v1242 = vsel %vm1212, %v1209, %v979
      %v1244 = vsel %vm1212, %v1211, %v981
      %vm1245 = vcmask 261120
      %v1247 = vsel %vm1245, %v1214, %v983
      %v1249 = vsel %vm1245, %v1216, %v985
      %v1251 = vsel %vm1245, %v1218, %v987
      %v1253 = vsel %vm1245, %v1220, %v989
      %v1255 = vsel %vm1245, %v1222, %v991
      %v1257 = vsel %vm1245, %v1224, %v993
      %v1259 = vsel %vm1245, %v1226, %v995
      %v1261 = vsel %vm1245, %v1228, %v997
      %v1263 = vsel %vm1245, %v1230, %v999
      %v1265 = vsel %vm1245, %v1232, %v1001
      %v1267 = vsel %vm1245, %v1234, %v1003
      %v1269 = vsel %vm1245, %v1236, %v1005
      %v1271 = vsel %vm1245, %v1238, %v1007
      %v1273 = vsel %vm1245, %v1240, %v1009
      %v1275 = vsel %vm1245, %v1242, %v1011
      %v1277 = vsel %vm1245, %v1244, %v1013
      %v1279 = vlaneseq
      %v1280 = vshrl.u32 %v1279, 7
      %v1281 = vsub.s32 0, %v1280
      %v1282 = vrot.slane %v358, %v1281
      %v1289 = vunpack.c.l.b16 %v348
      %v1290 = vunpack.c.l.b16 %v349
      %v1291 = vunpack.c.l.b16 %v350
      %v1292 = vunpack.c.l.b16 %v351
      %v1293 = vunpack.c.l.b16 %v352
      %v1294 = vpack.c.b16 %v1290, %v1289
      %v1295 = vpack.c.b16 %v1292, %v1291
      %v1296 = vpack.c.b16 %v1293, %v1293
      %vm1299 = vcmask 293888
      %v1300 = vsel %vm1299, %v1247, 0
      %v1302 = vsel %vm1299, %v1249, 0
      %v1304 = vsel %vm1299, %v1251, 0
      %v1306 = vsel %vm1299, %v1253, 0
      %v1308 = vsel %vm1299, %v1255, 0
      %v1310 = vsel %vm1299, %v1257, 0
      %v1312 = vsel %vm1299, %v1259, 0
      %v1314 = vsel %vm1299, %v1261, 0
      %v1316 = vsel %vm1299, %v1263, 0
      %v1318 = vsel %vm1299, %v1265, 0
      %v1320 = vsel %vm1299, %v1267, 0
      %v1322 = vsel %vm1299, %v1269, 0
      %v1324 = vsel %vm1299, %v1271, 0
      %v1326 = vsel %vm1299, %v1273, 0
      %v1328 = vsel %vm1299, %v1275, 0
      %v1330 = vsel %vm1299, %v1277, 0
      %vm1332 = vcmask 1041408
      %v1334 = vsel %vm1332, %v1296, 0
      %1336 = vmatprep.subr.bf16.mxu0 0
      %1337 = vmatpush1.bf16.msra.mxu0 %v1294
      %1338 = vmatprep.subr.bf16.mxu0 0
      %1339 = vmatpush1.bf16.msra.mxu0 %v1295
      %1340 = vmatprep.subr.bf16.mxu0 0
      %1341 = vmatpush1.bf16.msra.mxu0 %v1334
      %1342 = vmatprep.subr.bf16.mxu0 0
      %1343 = vmatpush1.bf16.msra.mxu0 0
      %1344 = vmatprep.subr.bf16.mxu0 0
      %1345 = vmatpush1.bf16.msra.mxu0 0
      %1346 = vmatprep.subr.bf16.mxu0 0
      %1347 = vmatpush1.bf16.msra.mxu0 0
      %1348 = vmatprep.subr.bf16.mxu0 0
      %1349 = vmatpush1.bf16.msra.mxu0 0
      %1350 = vmatprep.subr.bf16.mxu0 0
      %1351 = vmatpush1.bf16.msra.mxu0 0
      %1352 = vmatprep.subr.bf16.mxu0 0
      %1353 = vmatpush1.bf16.msra.mxu0 0
      %1354 = vmatprep.subr.bf16.mxu0 0
      %1355 = vmatpush1.bf16.msra.mxu0 0
      %1356 = vmatprep.subr.bf16.mxu0 0
      %1357 = vmatpush1.bf16.msra.mxu0 0
      %1358 = vmatprep.subr.bf16.mxu0 0
      %1359 = vmatpush1.bf16.msra.mxu0 0
      %1360 = vmatprep.subr.bf16.mxu0 0
      %1361 = vmatpush1.bf16.msra.mxu0 0
      %1362 = vmatprep.subr.bf16.mxu0 0
      %1363 = vmatpush1.bf16.msra.mxu0 0
      %1364 = vmatprep.subr.bf16.mxu0 0
      %1365 = vmatpush1.bf16.msra.mxu0 0
      %1366 = vmatprep.subr.bf16.mxu0 0
      %1367 = vmatpush1.bf16.msra.mxu0 0
      %1368 = vmatprep.mubr.bf16.mxu0 0
      %1369 = vmatmul.mubr.bf16.gmra.mrb[0].mxu0 %v1300
      %v1370 = vpop.f32.mrb[0].mxu0
      %v1371 = vadd.f32 %v1282, %v1370
      %v1372 = vpop.f32.mrb[0].mxu0
      %v1373 = vpop.f32.mrb[0].mxu0
      %v1374 = vadd.f32 %v1282, %v1373
      %v1375 = vpop.f32.mrb[0].mxu0
      %1376 = vmatprep.mubr.bf16.mxu0 0
      %1377 = vmatmul.mubr.bf16.gmra.mrb[0].mxu0 %v1302
      %v1378 = vpop.f32.mrb[0].mxu0
      %v1379 = vadd.f32 %v1282, %v1378
      %v1380 = vpop.f32.mrb[0].mxu0
      %v1381 = vpop.f32.mrb[0].mxu0
      %v1382 = vadd.f32 %v1282, %v1381
      %v1383 = vpop.f32.mrb[0].mxu0
      %1384 = vmatprep.mubr.bf16.mxu0 0
      %1385 = vmatmul.mubr.bf16.gmra.mrb[0].mxu0 %v1304
      %v1386 = vpop.f32.mrb[0].mxu0
      %v1387 = vadd.f32 %v1282, %v1386
      %v1388 = vpop.f32.mrb[0].mxu0
      %v1389 = vpop.f32.mrb[0].mxu0
      %v1390 = vadd.f32 %v1282, %v1389
      %v1391 = vpop.f32.mrb[0].mxu0
      %1392 = vmatprep.mubr.bf16.mxu0 0
      %1393 = vmatmul.mubr.bf16.gmra.mrb[0].mxu0 %v1306
      %v1394 = vpop.f32.mrb[0].mxu0
      %v1395 = vadd.f32 %v1282, %v1394
      %v1396 = vpop.f32.mrb[0].mxu0
      %v1397 = vpop.f32.mrb[0].mxu0
      %v1398 = vadd.f32 %v1282, %v1397
      %v1399 = vpop.f32.mrb[0].mxu0
      %1400 = vmatprep.mubr.bf16.mxu0 0
      %1401 = vmatmul.mubr.bf16.gmra.mrb[0].mxu0 %v1308
      %v1402 = vpop.f32.mrb[0].mxu0
      %v1403 = vadd.f32 %v1282, %v1402
      %v1404 = vpop.f32.mrb[0].mxu0
      %v1405 = vpop.f32.mrb[0].mxu0
      %v1406 = vadd.f32 %v1282, %v1405
      %v1407 = vpop.f32.mrb[0].mxu0
      %1408 = vmatprep.mubr.bf16.mxu0 0
      %1409 = vmatmul.mubr.bf16.gmra.mrb[0].mxu0 %v1310
      %v1410 = vpop.f32.mrb[0].mxu0
      %v1411 = vadd.f32 %v1282, %v1410
      %v1412 = vpop.f32.mrb[0].mxu0
      %v1413 = vpop.f32.mrb[0].mxu0
      %v1414 = vadd.f32 %v1282, %v1413
      %v1415 = vpop.f32.mrb[0].mxu0
      %1416 = vmatprep.mubr.bf16.mxu0 0
      %1417 = vmatmul.mubr.bf16.gmra.mrb[0].mxu0 %v1312
      %v1418 = vpop.f32.mrb[0].mxu0
      %v1419 = vadd.f32 %v1282, %v1418
      %v1420 = vpop.f32.mrb[0].mxu0
      %v1421 = vpop.f32.mrb[0].mxu0
      %v1422 = vadd.f32 %v1282, %v1421
      %v1423 = vpop.f32.mrb[0].mxu0
      %1424 = vmatprep.mubr.bf16.mxu0 0
      %1425 = vmatmul.mubr.bf16.gmra.mrb[0].mxu0 %v1314
      %v1426 = vpop.f32.mrb[0].mxu0
      %v1427 = vadd.f32 %v1282, %v1426
      %v1428 = vpop.f32.mrb[0].mxu0
      %v1429 = vpop.f32.mrb[0].mxu0
      %v1430 = vadd.f32 %v1282, %v1429
      %v1431 = vpop.f32.mrb[0].mxu0
      %1432 = vmatprep.mubr.bf16.mxu0 0
      %1433 = vmatmul.mubr.bf16.gmra.mrb[0].mxu0 %v1316
      %v1434 = vpop.f32.mrb[0].mxu0
      %v1435 = vadd.f32 %v1282, %v1434
      %v1436 = vpop.f32.mrb[0].mxu0
      %v1437 = vpop.f32.mrb[0].mxu0
      %v1438 = vadd.f32 %v1282, %v1437
      %v1439 = vpop.f32.mrb[0].mxu0
      %1440 = vmatprep.mubr.bf16.mxu0 0
      %1441 = vmatmul.mubr.bf16.gmra.mrb[0].mxu0 %v1318
      %v1442 = vpop.f32.mrb[0].mxu0
      %v1443 = vadd.f32 %v1282, %v1442
      %v1444 = vpop.f32.mrb[0].mxu0
      %v1445 = vpop.f32.mrb[0].mxu0
      %v1446 = vadd.f32 %v1282, %v1445
      %v1447 = vpop.f32.mrb[0].mxu0
      %1448 = vmatprep.mubr.bf16.mxu0 0
      %1449 = vmatmul.mubr.bf16.gmra.mrb[0].mxu0 %v1320
      %v1450 = vpop.f32.mrb[0].mxu0
      %v1451 = vadd.f32 %v1282, %v1450
      %v1452 = vpop.f32.mrb[0].mxu0
      %v1453 = vpop.f32.mrb[0].mxu0
      %v1454 = vadd.f32 %v1282, %v1453
      %v1455 = vpop.f32.mrb[0].mxu0
      %1456 = vmatprep.mubr.bf16.mxu0 0
      %1457 = vmatmul.mubr.bf16.gmra.mrb[0].mxu0 %v1322
      %v1458 = vpop.f32.mrb[0].mxu0
      %v1459 = vadd.f32 %v1282, %v1458
      %v1460 = vpop.f32.mrb[0].mxu0
      %v1461 = vpop.f32.mrb[0].mxu0
      %v1462 = vadd.f32 %v1282, %v1461
      %v1463 = vpop.f32.mrb[0].mxu0
      %1464 = vmatprep.mubr.bf16.mxu0 0
      %1465 = vmatmul.mubr.bf16.gmra.mrb[0].mxu0 %v1324
      %v1466 = vpop.f32.mrb[0].mxu0
      %v1467 = vadd.f32 %v1282, %v1466
      %v1468 = vpop.f32.mrb[0].mxu0
      %v1469 = vpop.f32.mrb[0].mxu0
      %v1470 = vadd.f32 %v1282, %v1469
      %v1471 = vpop.f32.mrb[0].mxu0
      %1472 = vmatprep.mubr.bf16.mxu0 0
      %1473 = vmatmul.mubr.bf16.gmra.mrb[0].mxu0 %v1326
      %v1474 = vpop.f32.mrb[0].mxu0
      %v1475 = vadd.f32 %v1282, %v1474
      %v1476 = vpop.f32.mrb[0].mxu0
      %v1477 = vpop.f32.mrb[0].mxu0
      %v1478 = vadd.f32 %v1282, %v1477
      %v1479 = vpop.f32.mrb[0].mxu0
      %1480 = vmatprep.mubr.bf16.mxu0 0
      %1481 = vmatmul.mubr.bf16.gmra.mrb[0].mxu0 %v1328
      %v1482 = vpop.f32.mrb[0].mxu0
      %v1483 = vadd.f32 %v1282, %v1482
      %v1484 = vpop.f32.mrb[0].mxu0
      %v1485 = vpop.f32.mrb[0].mxu0
      %v1486 = vadd.f32 %v1282, %v1485
      %v1487 = vpop.f32.mrb[0].mxu0
      %1488 = vmatprep.mubr.bf16.mxu0 0
      %1489 = vmatmul.mubr.bf16.gmra.mrb[0].mxu0 %v1330
      %v1490 = vpop.f32.mrb[0].mxu0
      %v1491 = vadd.f32 %v1282, %v1490
      %v1492 = vpop.f32.mrb[0].mxu0
      %v1493 = vpop.f32.mrb[0].mxu0
      %v1494 = vadd.f32 %v1282, %v1493
      %v1495 = vpop.f32.mrb[0].mxu0
      %1496 = vdwg.mxu0
      %v1497 = vmax.f32 %v1371, 0.0
      %v1498 = vmax.f32 %v1374, 0.0
      %v1499 = vmax.f32 %v1379, 0.0
      %v1500 = vmax.f32 %v1382, 0.0
      %v1501 = vmax.f32 %v1387, 0.0
      %v1502 = vmax.f32 %v1390, 0.0
      %v1503 = vmax.f32 %v1395, 0.0
      %v1504 = vmax.f32 %v1398, 0.0
      %v1505 = vmax.f32 %v1403, 0.0
      %v1506 = vmax.f32 %v1406, 0.0
      %v1507 = vmax.f32 %v1411, 0.0
      %v1508 = vmax.f32 %v1414, 0.0
      %v1509 = vmax.f32 %v1419, 0.0
      %v1510 = vmax.f32 %v1422, 0.0
      %v1511 = vmax.f32 %v1427, 0.0
      %v1512 = vmax.f32 %v1430, 0.0
      %v1513 = vmax.f32 %v1435, 0.0
      %v1514 = vmax.f32 %v1438, 0.0
      %v1515 = vmax.f32 %v1443, 0.0
      %v1516 = vmax.f32 %v1446, 0.0
      %v1517 = vmax.f32 %v1451, 0.0
      %v1518 = vmax.f32 %v1454, 0.0
      %v1519 = vmax.f32 %v1459, 0.0
      %v1520 = vmax.f32 %v1462, 0.0
      %v1521 = vmax.f32 %v1467, 0.0
      %v1522 = vmax.f32 %v1470, 0.0
      %v1523 = vmax.f32 %v1475, 0.0
      %v1524 = vmax.f32 %v1478, 0.0
      %v1525 = vmax.f32 %v1483, 0.0
      %v1526 = vmax.f32 %v1486, 0.0
      %v1527 = vmax.f32 %v1491, 0.0
      %v1528 = vmax.f32 %v1494, 0.0
      %v1529 = vpack.c.bf16 %v1498, %v1497
      %v1530 = vpack.c.bf16 %v1500, %v1499
      %v1531 = vpack.c.bf16 %v1502, %v1501
      %v1532 = vpack.c.bf16 %v1504, %v1503
      %v1533 = vpack.c.bf16 %v1506, %v1505
      %v1534 = vpack.c.bf16 %v1508, %v1507
      %v1535 = vpack.c.bf16 %v1510, %v1509
      %v1536 = vpack.c.bf16 %v1512, %v1511
      %v1537 = vpack.c.bf16 %v1514, %v1513
      %v1538 = vpack.c.bf16 %v1516, %v1515
      %v1539 = vpack.c.bf16 %v1518, %v1517
      %v1540 = vpack.c.bf16 %v1520, %v1519
      %v1541 = vpack.c.bf16 %v1522, %v1521
      %v1542 = vpack.c.bf16 %v1524, %v1523
      %v1543 = vpack.c.bf16 %v1526, %v1525
      %v1544 = vpack.c.bf16 %v1528, %v1527
      %v1561 = vunpack.c.l.b16 %v1529
      %v1562 = vunpack.c.h.b16 %v1529
      %v1563 = vunpack.c.l.b16 %v1530
      %v1564 = vunpack.c.h.b16 %v1530
      %v1565 = vunpack.c.l.b16 %v1531
      %v1566 = vunpack.c.h.b16 %v1531
      %v1567 = vunpack.c.l.b16 %v1532
      %v1568 = vunpack.c.h.b16 %v1532
      %v1569 = vunpack.c.l.b16 %v1533
      %v1570 = vunpack.c.h.b16 %v1533
      %v1571 = vunpack.c.l.b16 %v1534
      %v1572 = vunpack.c.h.b16 %v1534
      %v1573 = vunpack.c.l.b16 %v1535
      %v1574 = vunpack.c.h.b16 %v1535
      %v1575 = vunpack.c.l.b16 %v1536
      %v1576 = vunpack.c.h.b16 %v1536
      %v1577 = vunpack.c.l.b16 %v1537
      %v1578 = vunpack.c.h.b16 %v1537
      %v1579 = vunpack.c.l.b16 %v1538
      %v1580 = vunpack.c.h.b16 %v1538
      %v1581 = vunpack.c.l.b16 %v1539
      %v1582 = vunpack.c.h.b16 %v1539
      %v1583 = vunpack.c.l.b16 %v1540
      %v1584 = vunpack.c.h.b16 %v1540
      %v1585 = vunpack.c.l.b16 %v1541
      %v1586 = vunpack.c.h.b16 %v1541
      %v1587 = vunpack.c.l.b16 %v1542
      %v1588 = vunpack.c.h.b16 %v1542
      %v1589 = vunpack.c.l.b16 %v1543
      %v1590 = vunpack.c.h.b16 %v1543
      %v1591 = vunpack.c.l.b16 %v1544
      %v1592 = vunpack.c.h.b16 %v1544
      %v1593 = vpack.c.b16 %v1561, %v1561
      %v1594 = vpack.c.b16 %v1562, %v1562
      %v1595 = vpack.c.b16 %v1563, %v1563
      %v1596 = vpack.c.b16 %v1564, %v1564
      %v1597 = vpack.c.b16 %v1565, %v1565
      %v1598 = vpack.c.b16 %v1566, %v1566
      %v1599 = vpack.c.b16 %v1567, %v1567
      %v1600 = vpack.c.b16 %v1568, %v1568
      %v1601 = vpack.c.b16 %v1569, %v1569
      %v1602 = vpack.c.b16 %v1570, %v1570
      %v1603 = vpack.c.b16 %v1571, %v1571
      %v1604 = vpack.c.b16 %v1572, %v1572
      %v1605 = vpack.c.b16 %v1573, %v1573
      %v1606 = vpack.c.b16 %v1574, %v1574
      %v1607 = vpack.c.b16 %v1575, %v1575
      %v1608 = vpack.c.b16 %v1576, %v1576
      %v1609 = vpack.c.b16 %v1577, %v1577
      %v1610 = vpack.c.b16 %v1578, %v1578
      %v1611 = vpack.c.b16 %v1579, %v1579
      %v1612 = vpack.c.b16 %v1580, %v1580
      %v1613 = vpack.c.b16 %v1581, %v1581
      %v1614 = vpack.c.b16 %v1582, %v1582
      %v1615 = vpack.c.b16 %v1583, %v1583
      %v1616 = vpack.c.b16 %v1584, %v1584
      %v1617 = vpack.c.b16 %v1585, %v1585
      %v1618 = vpack.c.b16 %v1586, %v1586
      %v1619 = vpack.c.b16 %v1587, %v1587
      %v1620 = vpack.c.b16 %v1588, %v1588
      %v1621 = vpack.c.b16 %v1589, %v1589
      %v1622 = vpack.c.b16 %v1590, %v1590
      %v1623 = vpack.c.b16 %v1591, %v1591
      %v1624 = vpack.c.b16 %v1592, %v1592
      %vm1625 = vsmask.f32 4368
      %vm1626 = vmor %vm236, %vm1625
      %v1628 = vshrl.u32 %v1593, 16
      %v1630 = vrot.slane %v1628, 7
      %v1631 = vshll.u32 %v1593, 16
      %v1633 = vor.u32 %v1630, %v1631
      %v1634 = vrot.slane %v1630, 4
      %v1636 = vshrl.u32 %v1594, 16
      %v1638 = vrot.slane %v1636, 7
      %v1639 = vshll.u32 %v1594, 16
      %v1641 = vor.u32 %v1638, %v1639
      %v1642 = vsel %vm1626, %v1634, %v1641
      %v1643 = vrot.slane %v1638, 4
      %v1645 = vshrl.u32 %v1595, 16
      %v1647 = vrot.slane %v1645, 7
      %v1648 = vshll.u32 %v1595, 16
      %v1650 = vor.u32 %v1647, %v1648
      %v1651 = vrot.slane %v1647, 4
      %v1653 = vshrl.u32 %v1596, 16
      %v1655 = vrot.slane %v1653, 7
      %v1656 = vshll.u32 %v1596, 16
      %v1658 = vor.u32 %v1655, %v1656
      %v1659 = vsel %vm1626, %v1651, %v1658
      %v1660 = vrot.slane %v1655, 4
      %v1662 = vshrl.u32 %v1597, 16
      %v1664 = vrot.slane %v1662, 7
      %v1665 = vshll.u32 %v1597, 16
      %v1667 = vor.u32 %v1664, %v1665
      %v1668 = vrot.slane %v1664, 4
      %v1670 = vshrl.u32 %v1598, 16
      %v1672 = vrot.slane %v1670, 7
      %v1673 = vshll.u32 %v1598, 16
      %v1675 = vor.u32 %v1672, %v1673
      %v1676 = vsel %vm1626, %v1668, %v1675
      %v1677 = vrot.slane %v1672, 4
      %v1679 = vshrl.u32 %v1599, 16
      %v1681 = vrot.slane %v1679, 7
      %v1682 = vshll.u32 %v1599, 16
      %v1684 = vor.u32 %v1681, %v1682
      %v1685 = vrot.slane %v1681, 4
      %v1687 = vshrl.u32 %v1600, 16
      %v1689 = vrot.slane %v1687, 7
      %v1690 = vshll.u32 %v1600, 16
      %v1692 = vor.u32 %v1689, %v1690
      %v1693 = vsel %vm1626, %v1685, %v1692
      %v1694 = vrot.slane %v1689, 4
      %v1696 = vshrl.u32 %v1601, 16
      %v1698 = vrot.slane %v1696, 7
      %v1699 = vshll.u32 %v1601, 16
      %v1701 = vor.u32 %v1698, %v1699
      %v1702 = vrot.slane %v1698, 4
      %v1704 = vshrl.u32 %v1602, 16
      %v1706 = vrot.slane %v1704, 7
      %v1707 = vshll.u32 %v1602, 16
      %v1709 = vor.u32 %v1706, %v1707
      %v1710 = vsel %vm1626, %v1702, %v1709
      %v1711 = vrot.slane %v1706, 4
      %v1713 = vshrl.u32 %v1603, 16
      %v1715 = vrot.slane %v1713, 7
      %v1716 = vshll.u32 %v1603, 16
      %v1718 = vor.u32 %v1715, %v1716
      %v1719 = vrot.slane %v1715, 4
      %v1721 = vshrl.u32 %v1604, 16
      %v1723 = vrot.slane %v1721, 7
      %v1724 = vshll.u32 %v1604, 16
      %v1726 = vor.u32 %v1723, %v1724
      %v1727 = vsel %vm1626, %v1719, %v1726
      %v1728 = vrot.slane %v1723, 4
      %v1730 = vshrl.u32 %v1605, 16
      %v1732 = vrot.slane %v1730, 7
      %v1733 = vshll.u32 %v1605, 16
      %v1735 = vor.u32 %v1732, %v1733
      %v1736 = vrot.slane %v1732, 4
      %v1738 = vshrl.u32 %v1606, 16
      %v1740 = vrot.slane %v1738, 7
      %v1741 = vshll.u32 %v1606, 16
      %v1743 = vor.u32 %v1740, %v1741
      %v1744 = vsel %vm1626, %v1736, %v1743
      %v1745 = vrot.slane %v1740, 4
      %v1747 = vshrl.u32 %v1607, 16
      %v1749 = vrot.slane %v1747, 7
      %v1750 = vshll.u32 %v1607, 16
      %v1752 = vor.u32 %v1749, %v1750
      %v1753 = vrot.slane %v1749, 4
      %v1755 = vshrl.u32 %v1608, 16
      %v1757 = vrot.slane %v1755, 7
      %v1758 = vshll.u32 %v1608, 16
      %v1760 = vor.u32 %v1757, %v1758
      %v1761 = vsel %vm1626, %v1753, %v1760
      %v1762 = vrot.slane %v1757, 4
      %v1764 = vshrl.u32 %v1609, 16
      %v1766 = vrot.slane %v1764, 7
      %v1767 = vshll.u32 %v1609, 16
      %v1769 = vor.u32 %v1766, %v1767
      %v1770 = vrot.slane %v1766, 4
      %v1772 = vshrl.u32 %v1610, 16
      %v1774 = vrot.slane %v1772, 7
      %v1775 = vshll.u32 %v1610, 16
      %v1777 = vor.u32 %v1774, %v1775
      %v1778 = vsel %vm1626, %v1770, %v1777
      %v1779 = vrot.slane %v1774, 4
      %v1781 = vshrl.u32 %v1611, 16
      %v1783 = vrot.slane %v1781, 7
      %v1784 = vshll.u32 %v1611, 16
      %v1786 = vor.u32 %v1783, %v1784
      %v1787 = vrot.slane %v1783, 4
      %v1789 = vshrl.u32 %v1612, 16
      %v1791 = vrot.slane %v1789, 7
      %v1792 = vshll.u32 %v1612, 16
      %v1794 = vor.u32 %v1791, %v1792
      %v1795 = vsel %vm1626, %v1787, %v1794
      %v1796 = vrot.slane %v1791, 4
      %v1798 = vshrl.u32 %v1613, 16
      %v1800 = vrot.slane %v1798, 7
      %v1801 = vshll.u32 %v1613, 16
      %v1803 = vor.u32 %v1800, %v1801
      %v1804 = vrot.slane %v1800, 4
      %v1806 = vshrl.u32 %v1614, 16
      %v1808 = vrot.slane %v1806, 7
      %v1809 = vshll.u32 %v1614, 16
      %v1811 = vor.u32 %v1808, %v1809
      %v1812 = vsel %vm1626, %v1804, %v1811
      %v1813 = vrot.slane %v1808, 4
      %v1815 = vshrl.u32 %v1615, 16
      %v1817 = vrot.slane %v1815, 7
      %v1818 = vshll.u32 %v1615, 16
      %v1820 = vor.u32 %v1817, %v1818
      %v1821 = vrot.slane %v1817, 4
      %v1823 = vshrl.u32 %v1616, 16
      %v1825 = vrot.slane %v1823, 7
      %v1826 = vshll.u32 %v1616, 16
      %v1828 = vor.u32 %v1825, %v1826
      %v1829 = vsel %vm1626, %v1821, %v1828
      %v1830 = vrot.slane %v1825, 4
      %v1832 = vshrl.u32 %v1617, 16
      %v1834 = vrot.slane %v1832, 7
      %v1835 = vshll.u32 %v1617, 16
      %v1837 = vor.u32 %v1834, %v1835
      %v1838 = vrot.slane %v1834, 4
      %v1840 = vshrl.u32 %v1618, 16
      %v1842 = vrot.slane %v1840, 7
      %v1843 = vshll.u32 %v1618, 16
      %v1845 = vor.u32 %v1842, %v1843
      %v1846 = vsel %vm1626, %v1838, %v1845
      %v1847 = vrot.slane %v1842, 4
      %v1849 = vshrl.u32 %v1619, 16
      %v1851 = vrot.slane %v1849, 7
      %v1852 = vshll.u32 %v1619, 16
      %v1854 = vor.u32 %v1851, %v1852
      %v1855 = vrot.slane %v1851, 4
      %v1857 = vshrl.u32 %v1620, 16
      %v1859 = vrot.slane %v1857, 7
      %v1860 = vshll.u32 %v1620, 16
      %v1862 = vor.u32 %v1859, %v1860
      %v1863 = vsel %vm1626, %v1855, %v1862
      %v1864 = vrot.slane %v1859, 4
      %v1866 = vshrl.u32 %v1621, 16
      %v1868 = vrot.slane %v1866, 7
      %v1869 = vshll.u32 %v1621, 16
      %v1871 = vor.u32 %v1868, %v1869
      %v1872 = vrot.slane %v1868, 4
      %v1874 = vshrl.u32 %v1622, 16
      %v1876 = vrot.slane %v1874, 7
      %v1877 = vshll.u32 %v1622, 16
      %v1879 = vor.u32 %v1876, %v1877
      %v1880 = vsel %vm1626, %v1872, %v1879
      %v1881 = vrot.slane %v1876, 4
      %v1883 = vshrl.u32 %v1623, 16
      %v1885 = vrot.slane %v1883, 7
      %v1886 = vshll.u32 %v1623, 16
      %v1888 = vor.u32 %v1885, %v1886
      %v1889 = vrot.slane %v1885, 4
      %v1891 = vshrl.u32 %v1624, 16
      %v1893 = vrot.slane %v1891, 7
      %v1894 = vshll.u32 %v1624, 16
      %v1896 = vor.u32 %v1893, %v1894
      %v1897 = vsel %vm1626, %v1889, %v1896
      %v1898 = vrot.slane %v1893, 4
      %s1947 = scalar_lea.vmem [#allocation2], 12
      %vm1948 = vcmask 27648
      %vm1949 = vmand %vm1948, %vm292
      %v1950 = vld [vmem:[%s1947] sm:$0xf]
      %v1951 = vsel %vm1949, %v1633, %v1950
      %1952 = vst [vmem:[%s1947] sm:$0xf] %v1951
      %1953 = vst.msk [vmem:[%s1947 + $0x4] sm:$0xf] %vm226, %v1642
      %v1954 = vld [vmem:[%s1947 + $0x8] sm:$0x1]
      %v1955 = vsel %vm237, %v1643, %v1954
      %1956 = vst [vmem:[%s1947 + $0x8] sm:$0x1] %v1955
      %v1957 = vld [vmem:[%s1947 + $0xc] sm:$0xf]
      %v1958 = vsel %vm1949, %v1650, %v1957
      %1959 = vst [vmem:[%s1947 + $0xc] sm:$0xf] %v1958
      %1960 = vst.msk [vmem:[%s1947 + $0x10] sm:$0xf] %vm226, %v1659
      %v1961 = vld [vmem:[%s1947 + $0x14] sm:$0x1]
      %v1962 = vsel %vm237, %v1660, %v1961
      %1963 = vst [vmem:[%s1947 + $0x14] sm:$0x1] %v1962
      %v1964 = vld [vmem:[%s1947 + $0x18] sm:$0xf]
      %v1965 = vsel %vm1949, %v1667, %v1964
      %1966 = vst [vmem:[%s1947 + $0x18] sm:$0xf] %v1965
      %1967 = vst.msk [vmem:[%s1947 + $0x1c] sm:$0xf] %vm226, %v1676
      %v1968 = vld [vmem:[%s1947 + $0x20] sm:$0x1]
      %v1969 = vsel %vm237, %v1677, %v1968
      %1970 = vst [vmem:[%s1947 + $0x20] sm:$0x1] %v1969
      %v1971 = vld [vmem:[%s1947 + $0x24] sm:$0xf]
      %v1972 = vsel %vm1949, %v1684, %v1971
      %1973 = vst [vmem:[%s1947 + $0x24] sm:$0xf] %v1972
      %1974 = vst.msk [vmem:[%s1947 + $0x28] sm:$0xf] %vm226, %v1693
      %v1975 = vld [vmem:[%s1947 + $0x2c] sm:$0x1]
      %v1976 = vsel %vm237, %v1694, %v1975
      %1977 = vst [vmem:[%s1947 + $0x2c] sm:$0x1] %v1976
      %v1978 = vld [vmem:[%s1947 + $0x30] sm:$0xf]
      %v1979 = vsel %vm1949, %v1701, %v1978
      %1980 = vst [vmem:[%s1947 + $0x30] sm:$0xf] %v1979
      %1981 = vst.msk [vmem:[%s1947 + $0x34] sm:$0xf] %vm226, %v1710
      %v1982 = vld [vmem:[%s1947 + $0x38] sm:$0x1]
      %v1983 = vsel %vm237, %v1711, %v1982
      %1984 = vst [vmem:[%s1947 + $0x38] sm:$0x1] %v1983
      %v1985 = vld [vmem:[%s1947 + $0x3c] sm:$0xf]
      %v1986 = vsel %vm1949, %v1718, %v1985
      %1987 = vst [vmem:[%s1947 + $0x3c] sm:$0xf] %v1986
      %1988 = vst.msk [vmem:[%s1947 + $0x40] sm:$0xf] %vm226, %v1727
      %v1989 = vld [vmem:[%s1947 + $0x44] sm:$0x1]
      %v1990 = vsel %vm237, %v1728, %v1989
      %1991 = vst [vmem:[%s1947 + $0x44] sm:$0x1] %v1990
      %v1992 = vld [vmem:[%s1947 + $0x48] sm:$0xf]
      %v1993 = vsel %vm1949, %v1735, %v1992
      %1994 = vst [vmem:[%s1947 + $0x48] sm:$0xf] %v1993
      %1995 = vst.msk [vmem:[%s1947 + $0x4c] sm:$0xf] %vm226, %v1744
      %v1996 = vld [vmem:[%s1947 + $0x50] sm:$0x1]
      %v1997 = vsel %vm237, %v1745, %v1996
      %1998 = vst [vmem:[%s1947 + $0x50] sm:$0x1] %v1997
      %v1999 = vld [vmem:[%s1947 + $0x54] sm:$0xf]
      %v2000 = vsel %vm1949, %v1752, %v1999
      %2001 = vst [vmem:[%s1947 + $0x54] sm:$0xf] %v2000
      %2002 = vst.msk [vmem:[%s1947 + $0x58] sm:$0xf] %vm226, %v1761
      %v2003 = vld [vmem:[%s1947 + $0x5c] sm:$0x1]
      %v2004 = vsel %vm237, %v1762, %v2003
      %2005 = vst [vmem:[%s1947 + $0x5c] sm:$0x1] %v2004
      %v2006 = vld [vmem:[%s1947 + $0x60] sm:$0xf]
      %v2007 = vsel %vm1949, %v1769, %v2006
      %2008 = vst [vmem:[%s1947 + $0x60] sm:$0xf] %v2007
      %2009 = vst.msk [vmem:[%s1947 + $0x64] sm:$0xf] %vm226, %v1778
      %v2010 = vld [vmem:[%s1947 + $0x68] sm:$0x1]
      %v2011 = vsel %vm237, %v1779, %v2010
      %2012 = vst [vmem:[%s1947 + $0x68] sm:$0x1] %v2011
      %v2013 = vld [vmem:[%s1947 + $0x6c] sm:$0xf]
      %v2014 = vsel %vm1949, %v1786, %v2013
      %2015 = vst [vmem:[%s1947 + $0x6c] sm:$0xf] %v2014
      %2016 = vst.msk [vmem:[%s1947 + $0x70] sm:$0xf] %vm226, %v1795
      %v2017 = vld [vmem:[%s1947 + $0x74] sm:$0x1]
      %v2018 = vsel %vm237, %v1796, %v2017
      %2019 = vst [vmem:[%s1947 + $0x74] sm:$0x1] %v2018
      %v2020 = vld [vmem:[%s1947 + $0x78] sm:$0xf]
      %v2021 = vsel %vm1949, %v1803, %v2020
      %2022 = vst [vmem:[%s1947 + $0x78] sm:$0xf] %v2021
      %2023 = vst.msk [vmem:[%s1947 + $0x7c] sm:$0xf] %vm226, %v1812
      %v2024 = vld [vmem:[%s1947 + $0x80] sm:$0x1]
      %v2025 = vsel %vm237, %v1813, %v2024
      %2026 = vst [vmem:[%s1947 + $0x80] sm:$0x1] %v2025
      %v2027 = vld [vmem:[%s1947 + $0x84] sm:$0xf]
      %v2028 = vsel %vm1949, %v1820, %v2027
      %2029 = vst [vmem:[%s1947 + $0x84] sm:$0xf] %v2028
      %2030 = vst.msk [vmem:[%s1947 + $0x88] sm:$0xf] %vm226, %v1829
      %v2031 = vld [vmem:[%s1947 + $0x8c] sm:$0x1]
      %v2032 = vsel %vm237, %v1830, %v2031
      %2033 = vst [vmem:[%s1947 + $0x8c] sm:$0x1] %v2032
      %v2034 = vld [vmem:[%s1947 + $0x90] sm:$0xf]
      %v2035 = vsel %vm1949, %v1837, %v2034
      %2036 = vst [vmem:[%s1947 + $0x90] sm:$0xf] %v2035
      %2037 = vst.msk [vmem:[%s1947 + $0x94] sm:$0xf] %vm226, %v1846
      %v2038 = vld [vmem:[%s1947 + $0x98] sm:$0x1]
      %v2039 = vsel %vm237, %v1847, %v2038
      %2040 = vst [vmem:[%s1947 + $0x98] sm:$0x1] %v2039
      %v2041 = vld [vmem:[%s1947 + $0x9c] sm:$0xf]
      %v2042 = vsel %vm1949, %v1854, %v2041
      %2043 = vst [vmem:[%s1947 + $0x9c] sm:$0xf] %v2042
      %2044 = vst.msk [vmem:[%s1947 + $0xa0] sm:$0xf] %vm226, %v1863
      %v2045 = vld [vmem:[%s1947 + $0xa4] sm:$0x1]
      %v2046 = vsel %vm237, %v1864, %v2045
      %2047 = vst [vmem:[%s1947 + $0xa4] sm:$0x1] %v2046
      %v2048 = vld [vmem:[%s1947 + $0xa8] sm:$0xf]
      %v2049 = vsel %vm1949, %v1871, %v2048
      %2050 = vst [vmem:[%s1947 + $0xa8] sm:$0xf] %v2049
      %2051 = vst.msk [vmem:[%s1947 + $0xac] sm:$0xf] %vm226, %v1880
      %v2052 = vld [vmem:[%s1947 + $0xb0] sm:$0x1]
      %v2053 = vsel %vm237, %v1881, %v2052
      %2054 = vst [vmem:[%s1947 + $0xb0] sm:$0x1] %v2053
      %v2055 = vld [vmem:[%s1947 + $0xb4] sm:$0xf]
      %v2056 = vsel %vm1949, %v1888, %v2055
      %2057 = vst [vmem:[%s1947 + $0xb4] sm:$0xf] %v2056
      %2058 = vst.msk [vmem:[%s1947 + $0xb8] sm:$0xf] %vm226, %v1897
      %v2059 = vld [vmem:[%s1947 + $0xbc] sm:$0x1]
      %v2060 = vsel %vm237, %v1898, %v2059
      %2061 = vst [vmem:[%s1947 + $0xbc] sm:$0x1] %v2060
      %v2062 = vld [vmem:[#allocation2] sm:$0xf]
      %v2063 = vld [vmem:[#allocation2 + $0x4] sm:$0xf]
      %v2064 = vld [vmem:[#allocation2 + $0x8] sm:$0x1]
      %v2065 = vld [vmem:[#allocation2 + $0xc] sm:$0xf]
      %v2066 = vld [vmem:[#allocation2 + $0x10] sm:$0xf]
      %v2067 = vld [vmem:[#allocation2 + $0x14] sm:$0x1]
      %v2068 = vld [vmem:[#allocation2 + $0x18] sm:$0xf]
      %v2069 = vld [vmem:[#allocation2 + $0x1c] sm:$0xf]
      %v2070 = vld [vmem:[#allocation2 + $0x20] sm:$0x1]
      %v2071 = vld [vmem:[#allocation2 + $0x24] sm:$0xf]
      %v2072 = vld [vmem:[#allocation2 + $0x28] sm:$0xf]
      %v2073 = vld [vmem:[#allocation2 + $0x2c] sm:$0x1]
      %v2074 = vld [vmem:[#allocation2 + $0x30] sm:$0xf]
      %v2075 = vld [vmem:[#allocation2 + $0x34] sm:$0xf]
      %v2076 = vld [vmem:[#allocation2 + $0x38] sm:$0x1]
      %v2077 = vld [vmem:[#allocation2 + $0x3c] sm:$0xf]
      %v2078 = vld [vmem:[#allocation2 + $0x40] sm:$0xf]
      %v2079 = vld [vmem:[#allocation2 + $0x44] sm:$0x1]
      %v2080 = vld [vmem:[#allocation2 + $0x48] sm:$0xf]
      %v2081 = vld [vmem:[#allocation2 + $0x4c] sm:$0xf]
      %v2082 = vld [vmem:[#allocation2 + $0x50] sm:$0x1]
      %v2083 = vld [vmem:[#allocation2 + $0x54] sm:$0xf]
      %v2084 = vld [vmem:[#allocation2 + $0x58] sm:$0xf]
      %v2085 = vld [vmem:[#allocation2 + $0x5c] sm:$0x1]
      %v2086 = vld [vmem:[#allocation2 + $0x60] sm:$0xf]
      %v2087 = vld [vmem:[#allocation2 + $0x64] sm:$0xf]
      %v2088 = vld [vmem:[#allocation2 + $0x68] sm:$0x1]
      %v2089 = vld [vmem:[#allocation2 + $0x6c] sm:$0xf]
      %v2090 = vld [vmem:[#allocation2 + $0x70] sm:$0xf]
      %v2091 = vld [vmem:[#allocation2 + $0x74] sm:$0x1]
      %v2092 = vld [vmem:[#allocation2 + $0x78] sm:$0xf]
      %v2093 = vld [vmem:[#allocation2 + $0x7c] sm:$0xf]
      %v2094 = vld [vmem:[#allocation2 + $0x80] sm:$0x1]
      %v2095 = vld [vmem:[#allocation2 + $0x84] sm:$0xf]
      %v2096 = vld [vmem:[#allocation2 + $0x88] sm:$0xf]
      %v2097 = vld [vmem:[#allocation2 + $0x8c] sm:$0x1]
      %v2098 = vld [vmem:[#allocation2 + $0x90] sm:$0xf]
      %v2099 = vld [vmem:[#allocation2 + $0x94] sm:$0xf]
      %v2100 = vld [vmem:[#allocation2 + $0x98] sm:$0x1]
      %v2101 = vld [vmem:[#allocation2 + $0x9c] sm:$0xf]
      %v2102 = vld [vmem:[#allocation2 + $0xa0] sm:$0xf]
      %v2103 = vld [vmem:[#allocation2 + $0xa4] sm:$0x1]
      %v2104 = vld [vmem:[#allocation2 + $0xa8] sm:$0xf]
      %v2105 = vld [vmem:[#allocation2 + $0xac] sm:$0xf]
      %v2106 = vld [vmem:[#allocation2 + $0xb0] sm:$0x1]
      %v2107 = vld [vmem:[#allocation2 + $0xb4] sm:$0xf]
      %v2108 = vld [vmem:[#allocation2 + $0xb8] sm:$0xf]
      %v2109 = vld [vmem:[#allocation2 + $0xbc] sm:$0x1]
      %v2110 = vld [vmem:[#allocation2 + $0xc0] sm:$0xf]
      %v2111 = vld [vmem:[#allocation2 + $0xc4] sm:$0xf]
      %v2112 = vld [vmem:[#allocation2 + $0xc8] sm:$0x1]
      %v2113 = vld [vmem:[#allocation2 + $0xcc] sm:$0xf]
      %v2114 = vld [vmem:[#allocation2 + $0xd0] sm:$0xf]
      %v2115 = vld [vmem:[#allocation2 + $0xd4] sm:$0x1]
      %vm2116 = vsmask.f32 3328
      %vm2117 = vsmask.f32 7440
      %vm2118 = vmor %vm2116, %vm2117
      %v2120 = vshrl.u32 %v2062, 16
      %v2122 = vrot.slane %v2120, 4
      %v2123 = vshll.u32 %v2062, 16
      %v2125 = vrot.slane %v2123, 5
      %v2126 = vor.u32 %v2122, %v2125
      %v2127 = vrot.slane %v2126, 4
      %v2129 = vshll.u32 %v2063, 16
      %v2131 = vrot.slane %v2129, 5
      %v2132 = vsel %vm2118, %v2127, %v2131
      %v2133 = vshrl.u32 %v2063, 16
      %v2135 = vrot.slane %v2133, 4
      %v2136 = vor.u32 %v2135, %v2131
      %v2137 = vrot.slane %v2136, 4
      %v2139 = vshll.u32 %v2064, 16
      %v2141 = vrot.slane %v2139, 5
      %v2142 = vsel %vm2118, %v2137, %v2141
      %v2144 = vshrl.u32 %v2065, 16
      %v2146 = vrot.slane %v2144, 4
      %v2147 = vshll.u32 %v2065, 16
      %v2149 = vrot.slane %v2147, 5
      %v2150 = vor.u32 %v2146, %v2149
      %v2151 = vrot.slane %v2150, 4
      %v2153 = vshll.u32 %v2066, 16
      %v2155 = vrot.slane %v2153, 5
      %v2156 = vsel %vm2118, %v2151, %v2155
      %v2157 = vshrl.u32 %v2066, 16
      %v2159 = vrot.slane %v2157, 4
      %v2160 = vor.u32 %v2159, %v2155
      %v2161 = vrot.slane %v2160, 4
      %v2163 = vshll.u32 %v2067, 16
      %v2165 = vrot.slane %v2163, 5
      %v2166 = vsel %vm2118, %v2161, %v2165
      %v2168 = vshrl.u32 %v2068, 16
      %v2170 = vrot.slane %v2168, 4
      %v2171 = vshll.u32 %v2068, 16
      %v2173 = vrot.slane %v2171, 5
      %v2174 = vor.u32 %v2170, %v2173
      %v2175 = vrot.slane %v2174, 4
      %v2177 = vshll.u32 %v2069, 16
      %v2179 = vrot.slane %v2177, 5
      %v2180 = vsel %vm2118, %v2175, %v2179
      %v2181 = vshrl.u32 %v2069, 16
      %v2183 = vrot.slane %v2181, 4
      %v2184 = vor.u32 %v2183, %v2179
      %v2185 = vrot.slane %v2184, 4
      %v2187 = vshll.u32 %v2070, 16
      %v2189 = vrot.slane %v2187, 5
      %v2190 = vsel %vm2118, %v2185, %v2189
      %v2192 = vshrl.u32 %v2071, 16
      %v2194 = vrot.slane %v2192, 4
      %v2195 = vshll.u32 %v2071, 16
      %v2197 = vrot.slane %v2195, 5
      %v2198 = vor.u32 %v2194, %v2197
      %v2199 = vrot.slane %v2198, 4
      %v2201 = vshll.u32 %v2072, 16
      %v2203 = vrot.slane %v2201, 5
      %v2204 = vsel %vm2118, %v2199, %v2203
      %v2205 = vshrl.u32 %v2072, 16
      %v2207 = vrot.slane %v2205, 4
      %v2208 = vor.u32 %v2207, %v2203
      %v2209 = vrot.slane %v2208, 4
      %v2211 = vshll.u32 %v2073, 16
      %v2213 = vrot.slane %v2211, 5
      %v2214 = vsel %vm2118, %v2209, %v2213
      %v2216 = vshrl.u32 %v2074, 16
      %v2218 = vrot.slane %v2216, 4
      %v2219 = vshll.u32 %v2074, 16
      %v2221 = vrot.slane %v2219, 5
      %v2222 = vor.u32 %v2218, %v2221
      %v2223 = vrot.slane %v2222, 4
      %v2225 = vshll.u32 %v2075, 16
      %v2227 = vrot.slane %v2225, 5
      %v2228 = vsel %vm2118, %v2223, %v2227
      %v2229 = vshrl.u32 %v2075, 16
      %v2231 = vrot.slane %v2229, 4
      %v2232 = vor.u32 %v2231, %v2227
      %v2233 = vrot.slane %v2232, 4
      %v2235 = vshll.u32 %v2076, 16
      %v2237 = vrot.slane %v2235, 5
      %v2238 = vsel %vm2118, %v2233, %v2237
      %v2240 = vshrl.u32 %v2077, 16
      %v2242 = vrot.slane %v2240, 4
      %v2243 = vshll.u32 %v2077, 16
      %v2245 = vrot.slane %v2243, 5
      %v2246 = vor.u32 %v2242, %v2245
      %v2247 = vrot.slane %v2246, 4
      %v2249 = vshll.u32 %v2078, 16
      %v2251 = vrot.slane %v2249, 5
      %v2252 = vsel %vm2118, %v2247, %v2251
      %v2253 = vshrl.u32 %v2078, 16
      %v2255 = vrot.slane %v2253, 4
      %v2256 = vor.u32 %v2255, %v2251
      %v2257 = vrot.slane %v2256, 4
      %v2259 = vshll.u32 %v2079, 16
      %v2261 = vrot.slane %v2259, 5
      %v2262 = vsel %vm2118, %v2257, %v2261
      %v2264 = vshrl.u32 %v2080, 16
      %v2266 = vrot.slane %v2264, 4
      %v2267 = vshll.u32 %v2080, 16
      %v2269 = vrot.slane %v2267, 5
      %v2270 = vor.u32 %v2266, %v2269
      %v2271 = vrot.slane %v2270, 4
      %v2273 = vshll.u32 %v2081, 16
      %v2275 = vrot.slane %v2273, 5
      %v2276 = vsel %vm2118, %v2271, %v2275
      %v2277 = vshrl.u32 %v2081, 16
      %v2279 = vrot.slane %v2277, 4
      %v2280 = vor.u32 %v2279, %v2275
      %v2281 = vrot.slane %v2280, 4
      %v2283 = vshll.u32 %v2082, 16
      %v2285 = vrot.slane %v2283, 5
      %v2286 = vsel %vm2118, %v2281, %v2285
      %v2288 = vshrl.u32 %v2083, 16
      %v2290 = vrot.slane %v2288, 4
      %v2291 = vshll.u32 %v2083, 16
      %v2293 = vrot.slane %v2291, 5
      %v2294 = vor.u32 %v2290, %v2293
      %v2295 = vrot.slane %v2294, 4
      %v2297 = vshll.u32 %v2084, 16
      %v2299 = vrot.slane %v2297, 5
      %v2300 = vsel %vm2118, %v2295, %v2299
      %v2301 = vshrl.u32 %v2084, 16
      %v2303 = vrot.slane %v2301, 4
      %v2304 = vor.u32 %v2303, %v2299
      %v2305 = vrot.slane %v2304, 4
      %v2307 = vshll.u32 %v2085, 16
      %v2309 = vrot.slane %v2307, 5
      %v2310 = vsel %vm2118, %v2305, %v2309
      %v2312 = vshrl.u32 %v2086, 16
      %v2314 = vrot.slane %v2312, 4
      %v2315 = vshll.u32 %v2086, 16
      %v2317 = vrot.slane %v2315, 5
      %v2318 = vor.u32 %v2314, %v2317
      %v2319 = vrot.slane %v2318, 4
      %v2321 = vshll.u32 %v2087, 16
      %v2323 = vrot.slane %v2321, 5
      %v2324 = vsel %vm2118, %v2319, %v2323
      %v2325 = vshrl.u32 %v2087, 16
      %v2327 = vrot.slane %v2325, 4
      %v2328 = vor.u32 %v2327, %v2323
      %v2329 = vrot.slane %v2328, 4
      %v2331 = vshll.u32 %v2088, 16
      %v2333 = vrot.slane %v2331, 5
      %v2334 = vsel %vm2118, %v2329, %v2333
      %v2336 = vshrl.u32 %v2089, 16
      %v2338 = vrot.slane %v2336, 4
      %v2339 = vshll.u32 %v2089, 16
      %v2341 = vrot.slane %v2339, 5
      %v2342 = vor.u32 %v2338, %v2341
      %v2343 = vrot.slane %v2342, 4
      %v2345 = vshll.u32 %v2090, 16
      %v2347 = vrot.slane %v2345, 5
      %v2348 = vsel %vm2118, %v2343, %v2347
      %v2349 = vshrl.u32 %v2090, 16
      %v2351 = vrot.slane %v2349, 4
      %v2352 = vor.u32 %v2351, %v2347
      %v2353 = vrot.slane %v2352, 4
      %v2355 = vshll.u32 %v2091, 16
      %v2357 = vrot.slane %v2355, 5
      %v2358 = vsel %vm2118, %v2353, %v2357
      %v2360 = vshrl.u32 %v2092, 16
      %v2362 = vrot.slane %v2360, 4
      %v2363 = vshll.u32 %v2092, 16
      %v2365 = vrot.slane %v2363, 5
      %v2366 = vor.u32 %v2362, %v2365
      %v2367 = vrot.slane %v2366, 4
      %v2369 = vshll.u32 %v2093, 16
      %v2371 = vrot.slane %v2369, 5
      %v2372 = vsel %vm2118, %v2367, %v2371
      %v2373 = vshrl.u32 %v2093, 16
      %v2375 = vrot.slane %v2373, 4
      %v2376 = vor.u32 %v2375, %v2371
      %v2377 = vrot.slane %v2376, 4
      %v2379 = vshll.u32 %v2094, 16
      %v2381 = vrot.slane %v2379, 5
      %v2382 = vsel %vm2118, %v2377, %v2381
      %v2384 = vshrl.u32 %v2095, 16
      %v2386 = vrot.slane %v2384, 4
      %v2387 = vshll.u32 %v2095, 16
      %v2389 = vrot.slane %v2387, 5
      %v2390 = vor.u32 %v2386, %v2389
      %v2391 = vrot.slane %v2390, 4
      %v2393 = vshll.u32 %v2096, 16
      %v2395 = vrot.slane %v2393, 5
      %v2396 = vsel %vm2118, %v2391, %v2395
      %v2397 = vshrl.u32 %v2096, 16
      %v2399 = vrot.slane %v2397, 4
      %v2400 = vor.u32 %v2399, %v2395
      %v2401 = vrot.slane %v2400, 4
      %v2403 = vshll.u32 %v2097, 16
      %v2405 = vrot.slane %v2403, 5
      %v2406 = vsel %vm2118, %v2401, %v2405
      %v2408 = vshrl.u32 %v2098, 16
      %v2410 = vrot.slane %v2408, 4
      %v2411 = vshll.u32 %v2098, 16
      %v2413 = vrot.slane %v2411, 5
      %v2414 = vor.u32 %v2410, %v2413
      %v2415 = vrot.slane %v2414, 4
      %v2417 = vshll.u32 %v2099, 16
      %v2419 = vrot.slane %v2417, 5
      %v2420 = vsel %vm2118, %v2415, %v2419
      %v2421 = vshrl.u32 %v2099, 16
      %v2423 = vrot.slane %v2421, 4
      %v2424 = vor.u32 %v2423, %v2419
      %v2425 = vrot.slane %v2424, 4
      %v2427 = vshll.u32 %v2100, 16
      %v2429 = vrot.slane %v2427, 5
      %v2430 = vsel %vm2118, %v2425, %v2429
      %v2432 = vshrl.u32 %v2101, 16
      %v2434 = vrot.slane %v2432, 4
      %v2435 = vshll.u32 %v2101, 16
      %v2437 = vrot.slane %v2435, 5
      %v2438 = vor.u32 %v2434, %v2437
      %v2439 = vrot.slane %v2438, 4
      %v2441 = vshll.u32 %v2102, 16
      %v2443 = vrot.slane %v2441, 5
      %v2444 = vsel %vm2118, %v2439, %v2443
      %v2445 = vshrl.u32 %v2102, 16
      %v2447 = vrot.slane %v2445, 4
      %v2448 = vor.u32 %v2447, %v2443
      %v2449 = vrot.slane %v2448, 4
      %v2451 = vshll.u32 %v2103, 16
      %v2453 = vrot.slane %v2451, 5
      %v2454 = vsel %vm2118, %v2449, %v2453
      %v2456 = vshrl.u32 %v2104, 16
      %v2458 = vrot.slane %v2456, 4
      %v2459 = vshll.u32 %v2104, 16
      %v2461 = vrot.slane %v2459, 5
      %v2462 = vor.u32 %v2458, %v2461
      %v2463 = vrot.slane %v2462, 4
      %v2465 = vshll.u32 %v2105, 16
      %v2467 = vrot.slane %v2465, 5
      %v2468 = vsel %vm2118, %v2463, %v2467
      %v2469 = vshrl.u32 %v2105, 16
      %v2471 = vrot.slane %v2469, 4
      %v2472 = vor.u32 %v2471, %v2467
      %v2473 = vrot.slane %v2472, 4
      %v2475 = vshll.u32 %v2106, 16
      %v2477 = vrot.slane %v2475, 5
      %v2478 = vsel %vm2118, %v2473, %v2477
      %v2480 = vshrl.u32 %v2107, 16
      %v2482 = vrot.slane %v2480, 4
      %v2483 = vshll.u32 %v2107, 16
      %v2485 = vrot.slane %v2483, 5
      %v2486 = vor.u32 %v2482, %v2485
      %v2487 = vrot.slane %v2486, 4
      %v2489 = vshll.u32 %v2108, 16
      %v2491 = vrot.slane %v2489, 5
      %v2492 = vsel %vm2118, %v2487, %v2491
      %v2493 = vshrl.u32 %v2108, 16
      %v2495 = vrot.slane %v2493, 4
      %v2496 = vor.u32 %v2495, %v2491
      %v2497 = vrot.slane %v2496, 4
      %v2499 = vshll.u32 %v2109, 16
      %v2501 = vrot.slane %v2499, 5
      %v2502 = vsel %vm2118, %v2497, %v2501
      %vm2551 = vcmask 1042432
      %vm2552 = vcmask 1046532
      %vm2553 = vmor %vm2551, %vm2552
      %v2554 = vrot.slane %v2062, 5
      %v2555 = vrot.slane %v2554, 4
      %v2556 = vrot.slane %v2063, 5
      %v2557 = vsel %vm2553, %v2555, %v2556
      %v2558 = vrot.slane %v2556, 4
      %v2559 = vrot.slane %v2064, 5
      %v2560 = vsel %vm2553, %v2558, %v2559
      %v2561 = vrot.slane %v2065, 5
      %v2562 = vrot.slane %v2561, 4
      %v2563 = vrot.slane %v2066, 5
      %v2564 = vsel %vm2553, %v2562, %v2563
      %v2565 = vrot.slane %v2563, 4
      %v2566 = vrot.slane %v2067, 5
      %v2567 = vsel %vm2553, %v2565, %v2566
      %v2568 = vrot.slane %v2068, 5
      %v2569 = vrot.slane %v2568, 4
      %v2570 = vrot.slane %v2069, 5
      %v2571 = vsel %vm2553, %v2569, %v2570
      %v2572 = vrot.slane %v2570, 4
      %v2573 = vrot.slane %v2070, 5
      %v2574 = vsel %vm2553, %v2572, %v2573
      %v2575 = vrot.slane %v2071, 5
      %v2576 = vrot.slane %v2575, 4
      %v2577 = vrot.slane %v2072, 5
      %v2578 = vsel %vm2553, %v2576, %v2577
      %v2579 = vrot.slane %v2577, 4
      %v2580 = vrot.slane %v2073, 5
      %v2581 = vsel %vm2553, %v2579, %v2580
      %v2582 = vrot.slane %v2074, 5
      %v2583 = vrot.slane %v2582, 4
      %v2584 = vrot.slane %v2075, 5
      %v2585 = vsel %vm2553, %v2583, %v2584
      %v2586 = vrot.slane %v2584, 4
      %v2587 = vrot.slane %v2076, 5
      %v2588 = vsel %vm2553, %v2586, %v2587
      %v2589 = vrot.slane %v2077, 5
      %v2590 = vrot.slane %v2589, 4
      %v2591 = vrot.slane %v2078, 5
      %v2592 = vsel %vm2553, %v2590, %v2591
      %v2593 = vrot.slane %v2591, 4
      %v2594 = vrot.slane %v2079, 5
      %v2595 = vsel %vm2553, %v2593, %v2594
      %v2596 = vrot.slane %v2080, 5
      %v2597 = vrot.slane %v2596, 4
      %v2598 = vrot.slane %v2081, 5
      %v2599 = vsel %vm2553, %v2597, %v2598
      %v2600 = vrot.slane %v2598, 4
      %v2601 = vrot.slane %v2082, 5
      %v2602 = vsel %vm2553, %v2600, %v2601
      %v2603 = vrot.slane %v2083, 5
      %v2604 = vrot.slane %v2603, 4
      %v2605 = vrot.slane %v2084, 5
      %v2606 = vsel %vm2553, %v2604, %v2605
      %v2607 = vrot.slane %v2605, 4
      %v2608 = vrot.slane %v2085, 5
      %v2609 = vsel %vm2553, %v2607, %v2608
      %v2610 = vrot.slane %v2086, 5
      %v2611 = vrot.slane %v2610, 4
      %v2612 = vrot.slane %v2087, 5
      %v2613 = vsel %vm2553, %v2611, %v2612
      %v2614 = vrot.slane %v2612, 4
      %v2615 = vrot.slane %v2088, 5
      %v2616 = vsel %vm2553, %v2614, %v2615
      %v2617 = vrot.slane %v2089, 5
      %v2618 = vrot.slane %v2617, 4
      %v2619 = vrot.slane %v2090, 5
      %v2620 = vsel %vm2553, %v2618, %v2619
      %v2621 = vrot.slane %v2619, 4
      %v2622 = vrot.slane %v2091, 5
      %v2623 = vsel %vm2553, %v2621, %v2622
      %v2624 = vrot.slane %v2092, 5
      %v2625 = vrot.slane %v2624, 4
      %v2626 = vrot.slane %v2093, 5
      %v2627 = vsel %vm2553, %v2625, %v2626
      %v2628 = vrot.slane %v2626, 4
      %v2629 = vrot.slane %v2094, 5
      %v2630 = vsel %vm2553, %v2628, %v2629
      %v2631 = vrot.slane %v2095, 5
      %v2632 = vrot.slane %v2631, 4
      %v2633 = vrot.slane %v2096, 5
      %v2634 = vsel %vm2553, %v2632, %v2633
      %v2635 = vrot.slane %v2633, 4
      %v2636 = vrot.slane %v2097, 5
      %v2637 = vsel %vm2553, %v2635, %v2636
      %v2638 = vrot.slane %v2098, 5
      %v2639 = vrot.slane %v2638, 4
      %v2640 = vrot.slane %v2099, 5
      %v2641 = vsel %vm2553, %v2639, %v2640
      %v2642 = vrot.slane %v2640, 4
      %v2643 = vrot.slane %v2100, 5
      %v2644 = vsel %vm2553, %v2642, %v2643
      %v2645 = vrot.slane %v2101, 5
      %v2646 = vrot.slane %v2645, 4
      %v2647 = vrot.slane %v2102, 5
      %v2648 = vsel %vm2553, %v2646, %v2647
      %v2649 = vrot.slane %v2647, 4
      %v2650 = vrot.slane %v2103, 5
      %v2651 = vsel %vm2553, %v2649, %v2650
      %v2652 = vrot.slane %v2104, 5
      %v2653 = vrot.slane %v2652, 4
      %v2654 = vrot.slane %v2105, 5
      %v2655 = vsel %vm2553, %v2653, %v2654
      %v2656 = vrot.slane %v2654, 4
      %v2657 = vrot.slane %v2106, 5
      %v2658 = vsel %vm2553, %v2656, %v2657
      %v2659 = vrot.slane %v2107, 5
      %v2660 = vrot.slane %v2659, 4
      %v2661 = vrot.slane %v2108, 5
      %v2662 = vsel %vm2553, %v2660, %v2661
      %v2663 = vrot.slane %v2661, 4
      %v2664 = vrot.slane %v2109, 5
      %v2665 = vsel %vm2553, %v2663, %v2664
      %v2667 = vshrl.u32 %v2110, 16
      %v2669 = vrot.slane %v2667, 4
      %v2670 = vshll.u32 %v2110, 16
      %v2672 = vrot.slane %v2670, 5
      %v2673 = vor.u32 %v2669, %v2672
      %v2674 = vrot.slane %v2673, 4
      %v2676 = vshll.u32 %v2111, 16
      %v2678 = vrot.slane %v2676, 5
      %v2679 = vsel %vm2118, %v2674, %v2678
      %v2680 = vshrl.u32 %v2111, 16
      %v2682 = vrot.slane %v2680, 4
      %v2683 = vor.u32 %v2682, %v2678
      %v2684 = vrot.slane %v2683, 4
      %v2686 = vshll.u32 %v2112, 16
      %v2688 = vrot.slane %v2686, 5
      %v2689 = vsel %vm2118, %v2684, %v2688
      %v2693 = vrot.slane %v2110, 5
      %v2694 = vrot.slane %v2693, 4
      %v2695 = vrot.slane %v2111, 5
      %v2696 = vsel %vm2553, %v2694, %v2695
      %v2697 = vrot.slane %v2695, 4
      %v2698 = vrot.slane %v2112, 5
      %v2699 = vsel %vm2553, %v2697, %v2698
      %v2701 = vshrl.u32 %v2113, 16
      %v2703 = vrot.slane %v2701, 4
      %v2704 = vshll.u32 %v2113, 16
      %v2706 = vrot.slane %v2704, 5
      %v2707 = vor.u32 %v2703, %v2706
      %v2708 = vrot.slane %v2707, 4
      %v2710 = vshll.u32 %v2114, 16
      %v2712 = vrot.slane %v2710, 5
      %v2713 = vsel %vm2118, %v2708, %v2712
      %v2714 = vshrl.u32 %v2114, 16
      %v2716 = vrot.slane %v2714, 4
      %v2717 = vor.u32 %v2716, %v2712
      %v2718 = vrot.slane %v2717, 4
      %v2720 = vshll.u32 %v2115, 16
      %v2722 = vrot.slane %v2720, 5
      %v2723 = vsel %vm2118, %v2718, %v2722
      %v2727 = vrot.slane %v2113, 5
      %v2728 = vrot.slane %v2727, 4
      %v2729 = vrot.slane %v2114, 5
      %v2730 = vsel %vm2553, %v2728, %v2729
      %v2731 = vrot.slane %v2729, 4
      %v2732 = vrot.slane %v2115, 5
      %v2733 = vsel %vm2553, %v2731, %v2732
      %v2734 = vunpack.c.l.b16 %v2062
      %v2735 = vunpack.c.l.b16 %v2063
      %v2736 = vunpack.c.l.b16 %v2065
      %v2737 = vunpack.c.l.b16 %v2066
      %v2738 = vunpack.c.l.b16 %v2068
      %v2739 = vunpack.c.l.b16 %v2069
      %v2740 = vunpack.c.l.b16 %v2071
      %v2741 = vunpack.c.l.b16 %v2072
      %v2742 = vunpack.c.l.b16 %v2074
      %v2743 = vunpack.c.l.b16 %v2075
      %v2744 = vunpack.c.l.b16 %v2077
      %v2745 = vunpack.c.l.b16 %v2078
      %v2746 = vunpack.c.l.b16 %v2080
      %v2747 = vunpack.c.l.b16 %v2081
      %v2748 = vunpack.c.l.b16 %v2083
      %v2749 = vunpack.c.l.b16 %v2084
      %v2750 = vunpack.c.l.b16 %v2086
      %v2751 = vunpack.c.l.b16 %v2087
      %v2752 = vunpack.c.l.b16 %v2089
      %v2753 = vunpack.c.l.b16 %v2090
      %v2754 = vunpack.c.l.b16 %v2092
      %v2755 = vunpack.c.l.b16 %v2093
      %v2756 = vunpack.c.l.b16 %v2095
      %v2757 = vunpack.c.l.b16 %v2096
      %v2758 = vunpack.c.l.b16 %v2098
      %v2759 = vunpack.c.l.b16 %v2099
      %v2760 = vunpack.c.l.b16 %v2101
      %v2761 = vunpack.c.l.b16 %v2102
      %v2762 = vunpack.c.l.b16 %v2104
      %v2763 = vunpack.c.l.b16 %v2105
      %v2764 = vunpack.c.l.b16 %v2107
      %v2765 = vunpack.c.l.b16 %v2108
      %v2766 = vpack.c.b16 %v2735, %v2734
      %v2767 = vpack.c.b16 %v2737, %v2736
      %v2768 = vpack.c.b16 %v2739, %v2738
      %v2769 = vpack.c.b16 %v2741, %v2740
      %v2770 = vpack.c.b16 %v2743, %v2742
      %v2771 = vpack.c.b16 %v2745, %v2744
      %v2772 = vpack.c.b16 %v2747, %v2746
      %v2773 = vpack.c.b16 %v2749, %v2748
      %v2774 = vpack.c.b16 %v2751, %v2750
      %v2775 = vpack.c.b16 %v2753, %v2752
      %v2776 = vpack.c.b16 %v2755, %v2754
      %v2777 = vpack.c.b16 %v2757, %v2756
      %v2778 = vpack.c.b16 %v2759, %v2758
      %v2779 = vpack.c.b16 %v2761, %v2760
      %v2780 = vpack.c.b16 %v2763, %v2762
      %v2781 = vpack.c.b16 %v2765, %v2764
      %v2782 = vunpack.c.l.b16 %v2132
      %v2783 = vunpack.c.l.b16 %v2142
      %v2784 = vunpack.c.l.b16 %v2156
      %v2785 = vunpack.c.l.b16 %v2166
      %v2786 = vunpack.c.l.b16 %v2180
      %v2787 = vunpack.c.l.b16 %v2190
      %v2788 = vunpack.c.l.b16 %v2204
      %v2789 = vunpack.c.l.b16 %v2214
      %v2790 = vunpack.c.l.b16 %v2228
      %v2791 = vunpack.c.l.b16 %v2238
      %v2792 = vunpack.c.l.b16 %v2252
      %v2793 = vunpack.c.l.b16 %v2262
      %v2794 = vunpack.c.l.b16 %v2276
      %v2795 = vunpack.c.l.b16 %v2286
      %v2796 = vunpack.c.l.b16 %v2300
      %v2797 = vunpack.c.l.b16 %v2310
      %v2798 = vunpack.c.l.b16 %v2324
      %v2799 = vunpack.c.l.b16 %v2334
      %v2800 = vunpack.c.l.b16 %v2348
      %v2801 = vunpack.c.l.b16 %v2358
      %v2802 = vunpack.c.l.b16 %v2372
      %v2803 = vunpack.c.l.b16 %v2382
      %v2804 = vunpack.c.l.b16 %v2396
      %v2805 = vunpack.c.l.b16 %v2406
      %v2806 = vunpack.c.l.b16 %v2420
      %v2807 = vunpack.c.l.b16 %v2430
      %v2808 = vunpack.c.l.b16 %v2444
      %v2809 = vunpack.c.l.b16 %v2454
      %v2810 = vunpack.c.l.b16 %v2468
      %v2811 = vunpack.c.l.b16 %v2478
      %v2812 = vunpack.c.l.b16 %v2492
      %v2813 = vunpack.c.l.b16 %v2502
      %v2814 = vpack.c.b16 %v2783, %v2782
      %v2815 = vpack.c.b16 %v2785, %v2784
      %v2816 = vpack.c.b16 %v2787, %v2786
      %v2817 = vpack.c.b16 %v2789, %v2788
      %v2818 = vpack.c.b16 %v2791, %v2790
      %v2819 = vpack.c.b16 %v2793, %v2792
      %v2820 = vpack.c.b16 %v2795, %v2794
      %v2821 = vpack.c.b16 %v2797, %v2796
      %v2822 = vpack.c.b16 %v2799, %v2798
      %v2823 = vpack.c.b16 %v2801, %v2800
      %v2824 = vpack.c.b16 %v2803, %v2802
      %v2825 = vpack.c.b16 %v2805, %v2804
      %v2826 = vpack.c.b16 %v2807, %v2806
      %v2827 = vpack.c.b16 %v2809, %v2808
      %v2828 = vpack.c.b16 %v2811, %v2810
      %v2829 = vpack.c.b16 %v2813, %v2812
      %2830 = vrot.lane.b32.xlu0 %v2814, 4
      %v2831 = vpop.permute.xlu0 %2830
      %2832 = vrot.lane.b32.xlu0 %v2815, 4
      %v2833 = vpop.permute.xlu0 %2832
      %2834 = vrot.lane.b32.xlu0 %v2816, 4
      %v2835 = vpop.permute.xlu0 %2834
      %2836 = vrot.lane.b32.xlu0 %v2817, 4
      %v2837 = vpop.permute.xlu0 %2836
      %2838 = vrot.lane.b32.xlu0 %v2818, 4
      %v2839 = vpop.permute.xlu0 %2838
      %2840 = vrot.lane.b32.xlu0 %v2819, 4
      %v2841 = vpop.permute.xlu0 %2840
      %2842 = vrot.lane.b32.xlu0 %v2820, 4
      %v2843 = vpop.permute.xlu0 %2842
      %2844 = vrot.lane.b32.xlu0 %v2821, 4
      %v2845 = vpop.permute.xlu0 %2844
      %2846 = vrot.lane.b32.xlu0 %v2822, 4
      %v2847 = vpop.permute.xlu0 %2846
      %2848 = vrot.lane.b32.xlu0 %v2823, 4
      %v2849 = vpop.permute.xlu0 %2848
      %2850 = vrot.lane.b32.xlu0 %v2824, 4
      %v2851 = vpop.permute.xlu0 %2850
      %2852 = vrot.lane.b32.xlu0 %v2825, 4
      %v2853 = vpop.permute.xlu0 %2852
      %2854 = vrot.lane.b32.xlu0 %v2826, 4
      %v2855 = vpop.permute.xlu0 %2854
      %2856 = vrot.lane.b32.xlu0 %v2827, 4
      %v2857 = vpop.permute.xlu0 %2856
      %2858 = vrot.lane.b32.xlu0 %v2828, 4
      %v2859 = vpop.permute.xlu0 %2858
      %2860 = vrot.lane.b32.xlu0 %v2829, 4
      %v2861 = vpop.permute.xlu0 %2860
      %v2862 = vunpack.c.l.b16 %v2557
      %v2863 = vunpack.c.l.b16 %v2560
      %v2864 = vunpack.c.l.b16 %v2564
      %v2865 = vunpack.c.l.b16 %v2567
      %v2866 = vunpack.c.l.b16 %v2571
      %v2867 = vunpack.c.l.b16 %v2574
      %v2868 = vunpack.c.l.b16 %v2578
      %v2869 = vunpack.c.l.b16 %v2581
      %v2870 = vunpack.c.l.b16 %v2585
      %v2871 = vunpack.c.l.b16 %v2588
      %v2872 = vunpack.c.l.b16 %v2592
      %v2873 = vunpack.c.l.b16 %v2595
      %v2874 = vunpack.c.l.b16 %v2599
      %v2875 = vunpack.c.l.b16 %v2602
      %v2876 = vunpack.c.l.b16 %v2606
      %v2877 = vunpack.c.l.b16 %v2609
      %v2878 = vunpack.c.l.b16 %v2613
      %v2879 = vunpack.c.l.b16 %v2616
      %v2880 = vunpack.c.l.b16 %v2620
      %v2881 = vunpack.c.l.b16 %v2623
      %v2882 = vunpack.c.l.b16 %v2627
      %v2883 = vunpack.c.l.b16 %v2630
      %v2884 = vunpack.c.l.b16 %v2634
      %v2885 = vunpack.c.l.b16 %v2637
      %v2886 = vunpack.c.l.b16 %v2641
      %v2887 = vunpack.c.l.b16 %v2644
      %v2888 = vunpack.c.l.b16 %v2648
      %v2889 = vunpack.c.l.b16 %v2651
      %v2890 = vunpack.c.l.b16 %v2655
      %v2891 = vunpack.c.l.b16 %v2658
      %v2892 = vunpack.c.l.b16 %v2662
      %v2893 = vunpack.c.l.b16 %v2665
      %v2894 = vpack.c.b16 %v2863, %v2862
      %v2895 = vpack.c.b16 %v2865, %v2864
      %v2896 = vpack.c.b16 %v2867, %v2866
      %v2897 = vpack.c.b16 %v2869, %v2868
      %v2898 = vpack.c.b16 %v2871, %v2870
      %v2899 = vpack.c.b16 %v2873, %v2872
      %v2900 = vpack.c.b16 %v2875, %v2874
      %v2901 = vpack.c.b16 %v2877, %v2876
      %v2902 = vpack.c.b16 %v2879, %v2878
      %v2903 = vpack.c.b16 %v2881, %v2880
      %v2904 = vpack.c.b16 %v2883, %v2882
      %v2905 = vpack.c.b16 %v2885, %v2884
      %v2906 = vpack.c.b16 %v2887, %v2886
      %v2907 = vpack.c.b16 %v2889, %v2888
      %v2908 = vpack.c.b16 %v2891, %v2890
      %v2909 = vpack.c.b16 %v2893, %v2892
      %2910 = vrot.lane.b32.xlu0 %v2894, 8
      %v2911 = vpop.permute.xlu0 %2910
      %2912 = vrot.lane.b32.xlu0 %v2895, 8
      %v2913 = vpop.permute.xlu0 %2912
      %2914 = vrot.lane.b32.xlu0 %v2896, 8
      %v2915 = vpop.permute.xlu0 %2914
      %2916 = vrot.lane.b32.xlu0 %v2897, 8
      %v2917 = vpop.permute.xlu0 %2916
      %2918 = vrot.lane.b32.xlu0 %v2898, 8
      %v2919 = vpop.permute.xlu0 %2918
      %2920 = vrot.lane.b32.xlu0 %v2899, 8
      %v2921 = vpop.permute.xlu0 %2920
      %2922 = vrot.lane.b32.xlu0 %v2900, 8
      %v2923 = vpop.permute.xlu0 %2922
      %2924 = vrot.lane.b32.xlu0 %v2901, 8
      %v2925 = vpop.permute.xlu0 %2924
      %2926 = vrot.lane.b32.xlu0 %v2902, 8
      %v2927 = vpop.permute.xlu0 %2926
      %2928 = vrot.lane.b32.xlu0 %v2903, 8
      %v2929 = vpop.permute.xlu0 %2928
      %2930 = vrot.lane.b32.xlu0 %v2904, 8
      %v2931 = vpop.permute.xlu0 %2930
      %2932 = vrot.lane.b32.xlu0 %v2905, 8
      %v2933 = vpop.permute.xlu0 %2932
      %2934 = vrot.lane.b32.xlu0 %v2906, 8
      %v2935 = vpop.permute.xlu0 %2934
      %2936 = vrot.lane.b32.xlu0 %v2907, 8
      %v2937 = vpop.permute.xlu0 %2936
      %2938 = vrot.lane.b32.xlu0 %v2908, 8
      %v2939 = vpop.permute.xlu0 %2938
      %2940 = vrot.lane.b32.xlu0 %v2909, 8
      %v2941 = vpop.permute.xlu0 %2940
      %v2942 = vunpack.c.l.b16 %v2110
      %v2943 = vunpack.c.l.b16 %v2111
      %v2944 = vpack.c.b16 %v2943, %v2942
      %2945 = vrot.lane.b32.xlu0 %v2767, 12
      %v2946 = vpop.permute.xlu0 %2945
      %2947 = vrot.lane.b32.xlu0 %v2768, 12
      %v2948 = vpop.permute.xlu0 %2947
      %2949 = vrot.lane.b32.xlu0 %v2769, 12
      %v2950 = vpop.permute.xlu0 %2949
      %2951 = vrot.lane.b32.xlu0 %v2770, 12
      %v2952 = vpop.permute.xlu0 %2951
      %2953 = vrot.lane.b32.xlu0 %v2771, 12
      %v2954 = vpop.permute.xlu0 %2953
      %2955 = vrot.lane.b32.xlu0 %v2772, 12
      %v2956 = vpop.permute.xlu0 %2955
      %2957 = vrot.lane.b32.xlu0 %v2773, 12
      %v2958 = vpop.permute.xlu0 %2957
      %2959 = vrot.lane.b32.xlu0 %v2774, 12
      %v2960 = vpop.permute.xlu0 %2959
      %2961 = vrot.lane.b32.xlu0 %v2775, 12
      %v2962 = vpop.permute.xlu0 %2961
      %2963 = vrot.lane.b32.xlu0 %v2776, 12
      %v2964 = vpop.permute.xlu0 %2963
      %2965 = vrot.lane.b32.xlu0 %v2777, 12
      %v2966 = vpop.permute.xlu0 %2965
      %2967 = vrot.lane.b32.xlu0 %v2778, 12
      %v2968 = vpop.permute.xlu0 %2967
      %2969 = vrot.lane.b32.xlu0 %v2779, 12
      %v2970 = vpop.permute.xlu0 %2969
      %2971 = vrot.lane.b32.xlu0 %v2780, 12
      %v2972 = vpop.permute.xlu0 %2971
      %2973 = vrot.lane.b32.xlu0 %v2781, 12
      %v2974 = vpop.permute.xlu0 %2973
      %2975 = vrot.lane.b32.xlu0 %v2944, 12
      %v2976 = vpop.permute.xlu0 %2975
      %v2977 = vunpack.c.l.b16 %v2679
      %v2978 = vunpack.c.l.b16 %v2689
      %v2979 = vpack.c.b16 %v2978, %v2977
      %2980 = vrot.lane.b32.xlu0 %v2815, 16
      %v2981 = vpop.permute.xlu0 %2980
      %2982 = vrot.lane.b32.xlu0 %v2816, 16
      %v2983 = vpop.permute.xlu0 %2982
      %2984 = vrot.lane.b32.xlu0 %v2817, 16
      %v2985 = vpop.permute.xlu0 %2984
      %2986 = vrot.lane.b32.xlu0 %v2818, 16
      %v2987 = vpop.permute.xlu0 %2986
      %2988 = vrot.lane.b32.xlu0 %v2819, 16
      %v2989 = vpop.permute.xlu0 %2988
      %2990 = vrot.lane.b32.xlu0 %v2820, 16
      %v2991 = vpop.permute.xlu0 %2990
      %2992 = vrot.lane.b32.xlu0 %v2821, 16
      %v2993 = vpop.permute.xlu0 %2992
      %2994 = vrot.lane.b32.xlu0 %v2822, 16
      %v2995 = vpop.permute.xlu0 %2994
      %2996 = vrot.lane.b32.xlu0 %v2823, 16
      %v2997 = vpop.permute.xlu0 %2996
      %2998 = vrot.lane.b32.xlu0 %v2824, 16
      %v2999 = vpop.permute.xlu0 %2998
      %3000 = vrot.lane.b32.xlu0 %v2825, 16
      %v3001 = vpop.permute.xlu0 %3000
      %3002 = vrot.lane.b32.xlu0 %v2826, 16
      %v3003 = vpop.permute.xlu0 %3002
      %3004 = vrot.lane.b32.xlu0 %v2827, 16
      %v3005 = vpop.permute.xlu0 %3004
      %3006 = vrot.lane.b32.xlu0 %v2828, 16
      %v3007 = vpop.permute.xlu0 %3006
      %3008 = vrot.lane.b32.xlu0 %v2829, 16
      %v3009 = vpop.permute.xlu0 %3008
      %3010 = vrot.lane.b32.xlu0 %v2979, 16
      %v3011 = vpop.permute.xlu0 %3010
      %v3012 = vunpack.c.l.b16 %v2696
      %v3013 = vunpack.c.l.b16 %v2699
      %v3014 = vpack.c.b16 %v3013, %v3012
      %3015 = vrot.lane.b32.xlu0 %v2895, 20
      %v3016 = vpop.permute.xlu0 %3015
      %3017 = vrot.lane.b32.xlu0 %v2896, 20
      %v3018 = vpop.permute.xlu0 %3017
      %3019 = vrot.lane.b32.xlu0 %v2897, 20
      %v3020 = vpop.permute.xlu0 %3019
      %3021 = vrot.lane.b32.xlu0 %v2898, 20
      %v3022 = vpop.permute.xlu0 %3021
      %3023 = vrot.lane.b32.xlu0 %v2899, 20
      %v3024 = vpop.permute.xlu0 %3023
      %3025 = vrot.lane.b32.xlu0 %v2900, 20
      %v3026 = vpop.permute.xlu0 %3025
      %3027 = vrot.lane.b32.xlu0 %v2901, 20
      %v3028 = vpop.permute.xlu0 %3027
      %3029 = vrot.lane.b32.xlu0 %v2902, 20
      %v3030 = vpop.permute.xlu0 %3029
      %3031 = vrot.lane.b32.xlu0 %v2903, 20
      %v3032 = vpop.permute.xlu0 %3031
      %3033 = vrot.lane.b32.xlu0 %v2904, 20
      %v3034 = vpop.permute.xlu0 %3033
      %3035 = vrot.lane.b32.xlu0 %v2905, 20
      %v3036 = vpop.permute.xlu0 %3035
      %3037 = vrot.lane.b32.xlu0 %v2906, 20
      %v3038 = vpop.permute.xlu0 %3037
      %3039 = vrot.lane.b32.xlu0 %v2907, 20
      %v3040 = vpop.permute.xlu0 %3039
      %3041 = vrot.lane.b32.xlu0 %v2908, 20
      %v3042 = vpop.permute.xlu0 %3041
      %3043 = vrot.lane.b32.xlu0 %v2909, 20
      %v3044 = vpop.permute.xlu0 %3043
      %3045 = vrot.lane.b32.xlu0 %v3014, 20
      %v3046 = vpop.permute.xlu0 %3045
      %v3047 = vunpack.c.l.b16 %v2113
      %v3048 = vunpack.c.l.b16 %v2114
      %v3049 = vpack.c.b16 %v3048, %v3047
      %3050 = vrot.lane.b32.xlu0 %v2768, 24
      %v3051 = vpop.permute.xlu0 %3050
      %3052 = vrot.lane.b32.xlu0 %v2769, 24
      %v3053 = vpop.permute.xlu0 %3052
      %3054 = vrot.lane.b32.xlu0 %v2770, 24
      %v3055 = vpop.permute.xlu0 %3054
      %3056 = vrot.lane.b32.xlu0 %v2771, 24
      %v3057 = vpop.permute.xlu0 %3056
      %3058 = vrot.lane.b32.xlu0 %v2772, 24
      %v3059 = vpop.permute.xlu0 %3058
      %3060 = vrot.lane.b32.xlu0 %v2773, 24
      %v3061 = vpop.permute.xlu0 %3060
      %3062 = vrot.lane.b32.xlu0 %v2774, 24
      %v3063 = vpop.permute.xlu0 %3062
      %3064 = vrot.lane.b32.xlu0 %v2775, 24
      %v3065 = vpop.permute.xlu0 %3064
      %3066 = vrot.lane.b32.xlu0 %v2776, 24
      %v3067 = vpop.permute.xlu0 %3066
      %3068 = vrot.lane.b32.xlu0 %v2777, 24
      %v3069 = vpop.permute.xlu0 %3068
      %3070 = vrot.lane.b32.xlu0 %v2778, 24
      %v3071 = vpop.permute.xlu0 %3070
      %3072 = vrot.lane.b32.xlu0 %v2779, 24
      %v3073 = vpop.permute.xlu0 %3072
      %3074 = vrot.lane.b32.xlu0 %v2780, 24
      %v3075 = vpop.permute.xlu0 %3074
      %3076 = vrot.lane.b32.xlu0 %v2781, 24
      %v3077 = vpop.permute.xlu0 %3076
      %3078 = vrot.lane.b32.xlu0 %v2944, 24
      %v3079 = vpop.permute.xlu0 %3078
      %3080 = vrot.lane.b32.xlu0 %v3049, 24
      %v3081 = vpop.permute.xlu0 %3080
      %v3082 = vunpack.c.l.b16 %v2713
      %v3083 = vunpack.c.l.b16 %v2723
      %v3084 = vpack.c.b16 %v3083, %v3082
      %3085 = vrot.lane.b32.xlu0 %v2816, 28
      %v3086 = vpop.permute.xlu0 %3085
      %3087 = vrot.lane.b32.xlu0 %v2817, 28
      %v3088 = vpop.permute.xlu0 %3087
      %3089 = vrot.lane.b32.xlu0 %v2818, 28
      %v3090 = vpop.permute.xlu0 %3089
      %3091 = vrot.lane.b32.xlu0 %v2819, 28
      %v3092 = vpop.permute.xlu0 %3091
      %3093 = vrot.lane.b32.xlu0 %v2820, 28
      %v3094 = vpop.permute.xlu0 %3093
      %3095 = vrot.lane.b32.xlu0 %v2821, 28
      %v3096 = vpop.permute.xlu0 %3095
      %3097 = vrot.lane.b32.xlu0 %v2822, 28
      %v3098 = vpop.permute.xlu0 %3097
      %3099 = vrot.lane.b32.xlu0 %v2823, 28
      %v3100 = vpop.permute.xlu0 %3099
      %3101 = vrot.lane.b32.xlu0 %v2824, 28
      %v3102 = vpop.permute.xlu0 %3101
      %3103 = vrot.lane.b32.xlu0 %v2825, 28
      %v3104 = vpop.permute.xlu0 %3103
      %3105 = vrot.lane.b32.xlu0 %v2826, 28
      %v3106 = vpop.permute.xlu0 %3105
      %3107 = vrot.lane.b32.xlu0 %v2827, 28
      %v3108 = vpop.permute.xlu0 %3107
      %3109 = vrot.lane.b32.xlu0 %v2828, 28
      %v3110 = vpop.permute.xlu0 %3109
      %3111 = vrot.lane.b32.xlu0 %v2829, 28
      %v3112 = vpop.permute.xlu0 %3111
      %3113 = vrot.lane.b32.xlu0 %v2979, 28
      %v3114 = vpop.permute.xlu0 %3113
      %3115 = vrot.lane.b32.xlu0 %v3084, 28
      %v3116 = vpop.permute.xlu0 %3115
      %v3117 = vunpack.c.l.b16 %v2730
      %v3118 = vunpack.c.l.b16 %v2733
      %v3119 = vpack.c.b16 %v3118, %v3117
      %3120 = vrot.lane.b32.xlu0 %v2896, 32
      %v3121 = vpop.permute.xlu0 %3120
      %3122 = vrot.lane.b32.xlu0 %v2897, 32
      %v3123 = vpop.permute.xlu0 %3122
      %3124 = vrot.lane.b32.xlu0 %v2898, 32
      %v3125 = vpop.permute.xlu0 %3124
      %3126 = vrot.lane.b32.xlu0 %v2899, 32
      %v3127 = vpop.permute.xlu0 %3126
      %3128 = vrot.lane.b32.xlu0 %v2900, 32
      %v3129 = vpop.permute.xlu0 %3128
      %3130 = vrot.lane.b32.xlu0 %v2901, 32
      %v3131 = vpop.permute.xlu0 %3130
      %3132 = vrot.lane.b32.xlu0 %v2902, 32
      %v3133 = vpop.permute.xlu0 %3132
      %3134 = vrot.lane.b32.xlu0 %v2903, 32
      %v3135 = vpop.permute.xlu0 %3134
      %3136 = vrot.lane.b32.xlu0 %v2904, 32
      %v3137 = vpop.permute.xlu0 %3136
      %3138 = vrot.lane.b32.xlu0 %v2905, 32
      %v3139 = vpop.permute.xlu0 %3138
      %3140 = vrot.lane.b32.xlu0 %v2906, 32
      %v3141 = vpop.permute.xlu0 %3140
      %3142 = vrot.lane.b32.xlu0 %v2907, 32
      %v3143 = vpop.permute.xlu0 %3142
      %3144 = vrot.lane.b32.xlu0 %v2908, 32
      %v3145 = vpop.permute.xlu0 %3144
      %3146 = vrot.lane.b32.xlu0 %v2909, 32
      %v3147 = vpop.permute.xlu0 %3146
      %3148 = vrot.lane.b32.xlu0 %v3014, 32
      %v3149 = vpop.permute.xlu0 %3148
      %3150 = vrot.lane.b32.xlu0 %v3119, 32
      %v3151 = vpop.permute.xlu0 %3150
      %v3154 = vsel %vm1014, %v2766, %v2831
      %v3157 = vsel %vm1014, %v2767, %v2833
      %v3160 = vsel %vm1014, %v2768, %v2835
      %v3163 = vsel %vm1014, %v2769, %v2837
      %v3166 = vsel %vm1014, %v2770, %v2839
      %v3169 = vsel %vm1014, %v2771, %v2841
      %v3172 = vsel %vm1014, %v2772, %v2843
      %v3175 = vsel %vm1014, %v2773, %v2845
      %v3178 = vsel %vm1014, %v2774, %v2847
      %v3181 = vsel %vm1014, %v2775, %v2849
      %v3184 = vsel %vm1014, %v2776, %v2851
      %v3187 = vsel %vm1014, %v2777, %v2853
      %v3190 = vsel %vm1014, %v2778, %v2855
      %v3193 = vsel %vm1014, %v2779, %v2857
      %v3196 = vsel %vm1014, %v2780, %v2859
      %v3199 = vsel %vm1014, %v2781, %v2861
      %v3201 = vsel %vm1047, %v3154, %v2911
      %v3203 = vsel %vm1047, %v3157, %v2913
      %v3205 = vsel %vm1047, %v3160, %v2915
      %v3207 = vsel %vm1047, %v3163, %v2917
      %v3209 = vsel %vm1047, %v3166, %v2919
      %v3211 = vsel %vm1047, %v3169, %v2921
      %v3213 = vsel %vm1047, %v3172, %v2923
      %v3215 = vsel %vm1047, %v3175, %v2925
      %v3217 = vsel %vm1047, %v3178, %v2927
      %v3219 = vsel %vm1047, %v3181, %v2929
      %v3221 = vsel %vm1047, %v3184, %v2931
      %v3223 = vsel %vm1047, %v3187, %v2933
      %v3225 = vsel %vm1047, %v3190, %v2935
      %v3227 = vsel %vm1047, %v3193, %v2937
      %v3229 = vsel %vm1047, %v3196, %v2939
      %v3231 = vsel %vm1047, %v3199, %v2941
      %v3233 = vsel %vm1080, %v3201, %v2946
      %v3235 = vsel %vm1080, %v3203, %v2948
      %v3237 = vsel %vm1080, %v3205, %v2950
      %v3239 = vsel %vm1080, %v3207, %v2952
      %v3241 = vsel %vm1080, %v3209, %v2954
      %v3243 = vsel %vm1080, %v3211, %v2956
      %v3245 = vsel %vm1080, %v3213, %v2958
      %v3247 = vsel %vm1080, %v3215, %v2960
      %v3249 = vsel %vm1080, %v3217, %v2962
      %v3251 = vsel %vm1080, %v3219, %v2964
      %v3253 = vsel %vm1080, %v3221, %v2966
      %v3255 = vsel %vm1080, %v3223, %v2968
      %v3257 = vsel %vm1080, %v3225, %v2970
      %v3259 = vsel %vm1080, %v3227, %v2972
      %v3261 = vsel %vm1080, %v3229, %v2974
      %v3263 = vsel %vm1080, %v3231, %v2976
      %v3265 = vsel %vm1113, %v3233, %v2981
      %v3267 = vsel %vm1113, %v3235, %v2983
      %v3269 = vsel %vm1113, %v3237, %v2985
      %v3271 = vsel %vm1113, %v3239, %v2987
      %v3273 = vsel %vm1113, %v3241, %v2989
      %v3275 = vsel %vm1113, %v3243, %v2991
      %v3277 = vsel %vm1113, %v3245, %v2993
      %v3279 = vsel %vm1113, %v3247, %v2995
      %v3281 = vsel %vm1113, %v3249, %v2997
      %v3283 = vsel %vm1113, %v3251, %v2999
      %v3285 = vsel %vm1113, %v3253, %v3001
      %v3287 = vsel %vm1113, %v3255, %v3003
      %v3289 = vsel %vm1113, %v3257, %v3005
      %v3291 = vsel %vm1113, %v3259, %v3007
      %v3293 = vsel %vm1113, %v3261, %v3009
      %v3295 = vsel %vm1113, %v3263, %v3011
      %v3297 = vsel %vm1146, %v3265, %v3016
      %v3299 = vsel %vm1146, %v3267, %v3018
      %v3301 = vsel %vm1146, %v3269, %v3020
      %v3303 = vsel %vm1146, %v3271, %v3022
      %v3305 = vsel %vm1146, %v3273, %v3024
      %v3307 = vsel %vm1146, %v3275, %v3026
      %v3309 = vsel %vm1146, %v3277, %v3028
      %v3311 = vsel %vm1146, %v3279, %v3030
      %v3313 = vsel %vm1146, %v3281, %v3032
      %v3315 = vsel %vm1146, %v3283, %v3034
      %v3317 = vsel %vm1146, %v3285, %v3036
      %v3319 = vsel %vm1146, %v3287, %v3038
      %v3321 = vsel %vm1146, %v3289, %v3040
      %v3323 = vsel %vm1146, %v3291, %v3042
      %v3325 = vsel %vm1146, %v3293, %v3044
      %v3327 = vsel %vm1146, %v3295, %v3046
      %v3329 = vsel %vm1179, %v3297, %v3051
      %v3331 = vsel %vm1179, %v3299, %v3053
      %v3333 = vsel %vm1179, %v3301, %v3055
      %v3335 = vsel %vm1179, %v3303, %v3057
      %v3337 = vsel %vm1179, %v3305, %v3059
      %v3339 = vsel %vm1179, %v3307, %v3061
      %v3341 = vsel %vm1179, %v3309, %v3063
      %v3343 = vsel %vm1179, %v3311, %v3065
      %v3345 = vsel %vm1179, %v3313, %v3067
      %v3347 = vsel %vm1179, %v3315, %v3069
      %v3349 = vsel %vm1179, %v3317, %v3071
      %v3351 = vsel %vm1179, %v3319, %v3073
      %v3353 = vsel %vm1179, %v3321, %v3075
      %v3355 = vsel %vm1179, %v3323, %v3077
      %v3357 = vsel %vm1179, %v3325, %v3079
      %v3359 = vsel %vm1179, %v3327, %v3081
      %v3361 = vsel %vm1212, %v3329, %v3086
      %v3363 = vsel %vm1212, %v3331, %v3088
      %v3365 = vsel %vm1212, %v3333, %v3090
      %v3367 = vsel %vm1212, %v3335, %v3092
      %v3369 = vsel %vm1212, %v3337, %v3094
      %v3371 = vsel %vm1212, %v3339, %v3096
      %v3373 = vsel %vm1212, %v3341, %v3098
      %v3375 = vsel %vm1212, %v3343, %v3100
      %v3377 = vsel %vm1212, %v3345, %v3102
      %v3379 = vsel %vm1212, %v3347, %v3104
      %v3381 = vsel %vm1212, %v3349, %v3106
      %v3383 = vsel %vm1212, %v3351, %v3108
      %v3385 = vsel %vm1212, %v3353, %v3110
      %v3387 = vsel %vm1212, %v3355, %v3112
      %v3389 = vsel %vm1212, %v3357, %v3114
      %v3391 = vsel %vm1212, %v3359, %v3116
      %v3393 = vsel %vm1245, %v3361, %v3121
      %v3395 = vsel %vm1245, %v3363, %v3123
      %v3397 = vsel %vm1245, %v3365, %v3125
      %v3399 = vsel %vm1245, %v3367, %v3127
      %v3401 = vsel %vm1245, %v3369, %v3129
      %v3403 = vsel %vm1245, %v3371, %v3131
      %v3405 = vsel %vm1245, %v3373, %v3133
      %v3407 = vsel %vm1245, %v3375, %v3135
      %v3409 = vsel %vm1245, %v3377, %v3137
      %v3411 = vsel %vm1245, %v3379, %v3139
      %v3413 = vsel %vm1245, %v3381, %v3141
      %v3415 = vsel %vm1245, %v3383, %v3143
      %v3417 = vsel %vm1245, %v3385, %v3145
      %v3419 = vsel %vm1245, %v3387, %v3147
      %v3421 = vsel %vm1245, %v3389, %v3149
      %v3423 = vsel %vm1245, %v3391, %v3151
      %s3424 = scalar_lea.vmem %s219, 24
      %v3425 = vld [vmem:[%s3424 + $0x1] sm:$0xff]
      %v3426 = vld [vmem:[%s3424 + $0x9] sm:$0xff]
      %v3427 = vld [vmem:[%s3424 + $0x19] sm:$0xff]
      %v3428 = vld [vmem:[%s3424 + $0x21] sm:$0xff]
      %v3429 = vld [vmem:[%s3424 + $0x31] sm:$0xff]
      %v3430 = vld [vmem:[%s3424 + $0x39] sm:$0xff]
      %v3431 = vld [vmem:[%s3424 + $0x49] sm:$0xff]
      %v3432 = vld [vmem:[%s3424 + $0x51] sm:$0xff]
      %v3433 = vld [vmem:[%s3424 + $0x61] sm:$0xff]
      %v3434 = vld [vmem:[%s3424 + $0x69] sm:$0xff]
      %v3435 = vld [vmem:[%s3424 + $0x79] sm:$0xff]
      %v3436 = vld [vmem:[%s3424 + $0x81] sm:$0xff]
      %v3437 = vld [vmem:[%s3424 + $0x91] sm:$0xff]
      %v3438 = vld [vmem:[%s3424 + $0x99] sm:$0xff]
      %v3439 = vld [vmem:[%s3424 + $0xa9] sm:$0xff]
      %v3440 = vld [vmem:[%s3424 + $0xb1] sm:$0xff]
      %v3441 = vld [vmem:[%s3424 + $0xc1] sm:$0xff]
      %v3442 = vld [vmem:[%s3424 + $0xc9] sm:$0xff]
      %v3443 = vld [vmem:[%s3424 + $0xd9] sm:$0xff]
      %v3444 = vld [vmem:[%s3424 + $0xe1] sm:$0xff]
      %v3445 = vld [vmem:[%s3424 + $0xf1] sm:$0xff]
      %v3446 = vld [vmem:[%s3424 + $0xf9] sm:$0xff]
      %v3447 = vld [vmem:[%s3424 + $0x109] sm:$0xff]
      %v3448 = vld [vmem:[%s3424 + $0x111] sm:$0xff]
      %v3449 = vld [vmem:[%s3424 + $0x121] sm:$0xff]
      %v3450 = vld [vmem:[%s3424 + $0x129] sm:$0xff]
      %v3451 = vld [vmem:[%s3424 + $0x139] sm:$0xff]
      %v3452 = vld [vmem:[%s3424 + $0x141] sm:$0xff]
      %v3453 = vld [vmem:[%s3424 + $0x151] sm:$0xff]
      %v3454 = vld [vmem:[%s3424 + $0x159] sm:$0xff]
      %v3455 = vld [vmem:[%s3424 + $0x169] sm:$0xff]
      %v3456 = vld [vmem:[%s3424 + $0x171] sm:$0xff]
      %v3457 = vsel %vm1014, %v3425, 0.0
      %v3458 = vsel %vm1014, %v3426, 0.0
      %v3459 = vsel %vm1014, %v3427, 0.0
      %v3460 = vsel %vm1014, %v3428, 0.0
      %v3461 = vsel %vm1014, %v3429, 0.0
      %v3462 = vsel %vm1014, %v3430, 0.0
      %v3463 = vsel %vm1014, %v3431, 0.0
      %v3464 = vsel %vm1014, %v3432, 0.0
      %v3465 = vsel %vm1014, %v3433, 0.0
      %v3466 = vsel %vm1014, %v3434, 0.0
      %v3467 = vsel %vm1014, %v3435, 0.0
      %v3468 = vsel %vm1014, %v3436, 0.0
      %v3469 = vsel %vm1014, %v3437, 0.0
      %v3470 = vsel %vm1014, %v3438, 0.0
      %v3471 = vsel %vm1014, %v3439, 0.0
      %v3472 = vsel %vm1014, %v3440, 0.0
      %v3473 = vsel %vm1014, %v3441, 0.0
      %v3474 = vsel %vm1014, %v3442, 0.0
      %v3475 = vsel %vm1014, %v3443, 0.0
      %v3476 = vsel %vm1014, %v3444, 0.0
      %v3477 = vsel %vm1014, %v3445, 0.0
      %v3478 = vsel %vm1014, %v3446, 0.0
      %v3479 = vsel %vm1014, %v3447, 0.0
      %v3480 = vsel %vm1014, %v3448, 0.0
      %v3481 = vsel %vm1014, %v3449, 0.0
      %v3482 = vsel %vm1014, %v3450, 0.0
      %v3483 = vsel %vm1014, %v3451, 0.0
      %v3484 = vsel %vm1014, %v3452, 0.0
      %v3485 = vsel %vm1014, %v3453, 0.0
      %v3486 = vsel %vm1014, %v3454, 0.0
      %v3487 = vsel %vm1014, %v3455, 0.0
      %v3488 = vsel %vm1014, %v3456, 0.0
      %v3490 = vlaneseq
      %v3491 = vshrl.u32 %v3490, 7
      %v3492 = vsub.s32 0, %v3491
      %v3493 = vrot.slane %v359, %v3492
      %v3500 = vunpack.c.l.b16 %v353
      %v3501 = vunpack.c.l.b16 %v354
      %v3502 = vunpack.c.l.b16 %v355
      %v3503 = vunpack.c.l.b16 %v356
      %v3504 = vunpack.c.l.b16 %v357
      %v3505 = vpack.c.b16 %v3501, %v3500
      %v3506 = vpack.c.b16 %v3503, %v3502
      %v3507 = vpack.c.b16 %v3504, %v3504
      %v3510 = vsel %vm1299, %v3393, 0
      %v3512 = vsel %vm1299, %v3395, 0
      %v3514 = vsel %vm1299, %v3397, 0
      %v3516 = vsel %vm1299, %v3399, 0
      %v3518 = vsel %vm1299, %v3401, 0
      %v3520 = vsel %vm1299, %v3403, 0
      %v3522 = vsel %vm1299, %v3405, 0
      %v3524 = vsel %vm1299, %v3407, 0
      %v3526 = vsel %vm1299, %v3409, 0
      %v3528 = vsel %vm1299, %v3411, 0
      %v3530 = vsel %vm1299, %v3413, 0
      %v3532 = vsel %vm1299, %v3415, 0
      %v3534 = vsel %vm1299, %v3417, 0
      %v3536 = vsel %vm1299, %v3419, 0
      %v3538 = vsel %vm1299, %v3421, 0
      %v3540 = vsel %vm1299, %v3423, 0
      %v3543 = vsel %vm1332, %v3507, 0
      %3545 = vmatprep.subr.bf16.mxu0 0
      %3546 = vmatpush1.bf16.msra.mxu0 %v3505
      %3547 = vmatprep.subr.bf16.mxu0 0
      %3548 = vmatpush1.bf16.msra.mxu0 %v3506
      %3549 = vmatprep.subr.bf16.mxu0 0
      %3550 = vmatpush1.bf16.msra.mxu0 %v3543
      %3551 = vmatprep.subr.bf16.mxu0 0
      %3552 = vmatpush1.bf16.msra.mxu0 0
      %3553 = vmatprep.subr.bf16.mxu0 0
      %3554 = vmatpush1.bf16.msra.mxu0 0
      %3555 = vmatprep.subr.bf16.mxu0 0
      %3556 = vmatpush1.bf16.msra.mxu0 0
      %3557 = vmatprep.subr.bf16.mxu0 0
      %3558 = vmatpush1.bf16.msra.mxu0 0
      %3559 = vmatprep.subr.bf16.mxu0 0
      %3560 = vmatpush1.bf16.msra.mxu0 0
      %3561 = vmatprep.subr.bf16.mxu0 0
      %3562 = vmatpush1.bf16.msra.mxu0 0
      %3563 = vmatprep.subr.bf16.mxu0 0
      %3564 = vmatpush1.bf16.msra.mxu0 0
      %3565 = vmatprep.subr.bf16.mxu0 0
      %3566 = vmatpush1.bf16.msra.mxu0 0
      %3567 = vmatprep.subr.bf16.mxu0 0
      %3568 = vmatpush1.bf16.msra.mxu0 0
      %3569 = vmatprep.subr.bf16.mxu0 0
      %3570 = vmatpush1.bf16.msra.mxu0 0
      %3571 = vmatprep.subr.bf16.mxu0 0
      %3572 = vmatpush1.bf16.msra.mxu0 0
      %3573 = vmatprep.subr.bf16.mxu0 0
      %3574 = vmatpush1.bf16.msra.mxu0 0
      %3575 = vmatprep.subr.bf16.mxu0 0
      %3576 = vmatpush1.bf16.msra.mxu0 0
      %3577 = vmatprep.mubr.bf16.mxu0 0
      %3578 = vmatmul.mubr.bf16.gmra.mrb[0].mxu0 %v3510
      %v3579 = vpop.f32.mrb[0].mxu0
      %v3580 = vadd.f32 %v3493, %v3579
      %v3581 = vpop.f32.mrb[0].mxu0
      %v3582 = vpop.f32.mrb[0].mxu0
      %v3583 = vadd.f32 %v3493, %v3582
      %v3584 = vpop.f32.mrb[0].mxu0
      %3585 = vmatprep.mubr.bf16.mxu0 0
      %3586 = vmatmul.mubr.bf16.gmra.mrb[0].mxu0 %v3512
      %v3587 = vpop.f32.mrb[0].mxu0
      %v3588 = vadd.f32 %v3493, %v3587
      %v3589 = vpop.f32.mrb[0].mxu0
      %v3590 = vpop.f32.mrb[0].mxu0
      %v3591 = vadd.f32 %v3493, %v3590
      %v3592 = vpop.f32.mrb[0].mxu0
      %3593 = vmatprep.mubr.bf16.mxu0 0
      %3594 = vmatmul.mubr.bf16.gmra.mrb[0].mxu0 %v3514
      %v3595 = vpop.f32.mrb[0].mxu0
      %v3596 = vadd.f32 %v3493, %v3595
      %v3597 = vpop.f32.mrb[0].mxu0
      %v3598 = vpop.f32.mrb[0].mxu0
      %v3599 = vadd.f32 %v3493, %v3598
      %v3600 = vpop.f32.mrb[0].mxu0
      %3601 = vmatprep.mubr.bf16.mxu0 0
      %3602 = vmatmul.mubr.bf16.gmra.mrb[0].mxu0 %v3516
      %v3603 = vpop.f32.mrb[0].mxu0
      %v3604 = vadd.f32 %v3493, %v3603
      %v3605 = vpop.f32.mrb[0].mxu0
      %v3606 = vpop.f32.mrb[0].mxu0
      %v3607 = vadd.f32 %v3493, %v3606
      %v3608 = vpop.f32.mrb[0].mxu0
      %3609 = vmatprep.mubr.bf16.mxu0 0
      %3610 = vmatmul.mubr.bf16.gmra.mrb[0].mxu0 %v3518
      %v3611 = vpop.f32.mrb[0].mxu0
      %v3612 = vadd.f32 %v3493, %v3611
      %v3613 = vpop.f32.mrb[0].mxu0
      %v3614 = vpop.f32.mrb[0].mxu0
      %v3615 = vadd.f32 %v3493, %v3614
      %v3616 = vpop.f32.mrb[0].mxu0
      %3617 = vmatprep.mubr.bf16.mxu0 0
      %3618 = vmatmul.mubr.bf16.gmra.mrb[0].mxu0 %v3520
      %v3619 = vpop.f32.mrb[0].mxu0
      %v3620 = vadd.f32 %v3493, %v3619
      %v3621 = vpop.f32.mrb[0].mxu0
      %v3622 = vpop.f32.mrb[0].mxu0
      %v3623 = vadd.f32 %v3493, %v3622
      %v3624 = vpop.f32.mrb[0].mxu0
      %3625 = vmatprep.mubr.bf16.mxu0 0
      %3626 = vmatmul.mubr.bf16.gmra.mrb[0].mxu0 %v3522
      %v3627 = vpop.f32.mrb[0].mxu0
      %v3628 = vadd.f32 %v3493, %v3627
      %v3629 = vpop.f32.mrb[0].mxu0
      %v3630 = vpop.f32.mrb[0].mxu0
      %v3631 = vadd.f32 %v3493, %v3630
      %v3632 = vpop.f32.mrb[0].mxu0
      %3633 = vmatprep.mubr.bf16.mxu0 0
      %3634 = vmatmul.mubr.bf16.gmra.mrb[0].mxu0 %v3524
      %v3635 = vpop.f32.mrb[0].mxu0
      %v3636 = vadd.f32 %v3493, %v3635
      %v3637 = vpop.f32.mrb[0].mxu0
      %v3638 = vpop.f32.mrb[0].mxu0
      %v3639 = vadd.f32 %v3493, %v3638
      %v3640 = vpop.f32.mrb[0].mxu0
      %3641 = vmatprep.mubr.bf16.mxu0 0
      %3642 = vmatmul.mubr.bf16.gmra.mrb[0].mxu0 %v3526
      %v3643 = vpop.f32.mrb[0].mxu0
      %v3644 = vadd.f32 %v3493, %v3643
      %v3645 = vpop.f32.mrb[0].mxu0
      %v3646 = vpop.f32.mrb[0].mxu0
      %v3647 = vadd.f32 %v3493, %v3646
      %v3648 = vpop.f32.mrb[0].mxu0
      %3649 = vmatprep.mubr.bf16.mxu0 0
      %3650 = vmatmul.mubr.bf16.gmra.mrb[0].mxu0 %v3528
      %v3651 = vpop.f32.mrb[0].mxu0
      %v3652 = vadd.f32 %v3493, %v3651
      %v3653 = vpop.f32.mrb[0].mxu0
      %v3654 = vpop.f32.mrb[0].mxu0
      %v3655 = vadd.f32 %v3493, %v3654
      %v3656 = vpop.f32.mrb[0].mxu0
      %3657 = vmatprep.mubr.bf16.mxu0 0
      %3658 = vmatmul.mubr.bf16.gmra.mrb[0].mxu0 %v3530
      %v3659 = vpop.f32.mrb[0].mxu0
      %v3660 = vadd.f32 %v3493, %v3659
      %v3661 = vpop.f32.mrb[0].mxu0
      %v3662 = vpop.f32.mrb[0].mxu0
      %v3663 = vadd.f32 %v3493, %v3662
      %v3664 = vpop.f32.mrb[0].mxu0
      %3665 = vmatprep.mubr.bf16.mxu0 0
      %3666 = vmatmul.mubr.bf16.gmra.mrb[0].mxu0 %v3532
      %v3667 = vpop.f32.mrb[0].mxu0
      %v3668 = vadd.f32 %v3493, %v3667
      %v3669 = vpop.f32.mrb[0].mxu0
      %v3670 = vpop.f32.mrb[0].mxu0
      %v3671 = vadd.f32 %v3493, %v3670
      %v3672 = vpop.f32.mrb[0].mxu0
      %3673 = vmatprep.mubr.bf16.mxu0 0
      %3674 = vmatmul.mubr.bf16.gmra.mrb[0].mxu0 %v3534
      %v3675 = vpop.f32.mrb[0].mxu0
      %v3676 = vadd.f32 %v3493, %v3675
      %v3677 = vpop.f32.mrb[0].mxu0
      %v3678 = vpop.f32.mrb[0].mxu0
      %v3679 = vadd.f32 %v3493, %v3678
      %v3680 = vpop.f32.mrb[0].mxu0
      %3681 = vmatprep.mubr.bf16.mxu0 0
      %3682 = vmatmul.mubr.bf16.gmra.mrb[0].mxu0 %v3536
      %v3683 = vpop.f32.mrb[0].mxu0
      %v3684 = vadd.f32 %v3493, %v3683
      %v3685 = vpop.f32.mrb[0].mxu0
      %v3686 = vpop.f32.mrb[0].mxu0
      %v3687 = vadd.f32 %v3493, %v3686
      %v3688 = vpop.f32.mrb[0].mxu0
      %3689 = vmatprep.mubr.bf16.mxu0 0
      %3690 = vmatmul.mubr.bf16.gmra.mrb[0].mxu0 %v3538
      %v3691 = vpop.f32.mrb[0].mxu0
      %v3692 = vadd.f32 %v3493, %v3691
      %v3693 = vpop.f32.mrb[0].mxu0
      %v3694 = vpop.f32.mrb[0].mxu0
      %v3695 = vadd.f32 %v3493, %v3694
      %v3696 = vpop.f32.mrb[0].mxu0
      %3697 = vmatprep.mubr.bf16.mxu0 0
      %3698 = vmatmul.mubr.bf16.gmra.mrb[0].mxu0 %v3540
      %v3699 = vpop.f32.mrb[0].mxu0
      %v3700 = vadd.f32 %v3493, %v3699
      %v3701 = vpop.f32.mrb[0].mxu0
      %v3702 = vpop.f32.mrb[0].mxu0
      %v3703 = vadd.f32 %v3493, %v3702
      %v3704 = vpop.f32.mrb[0].mxu0
      %3705 = vdwg.mxu0
      %v3706 = vadd.f32 %v3580, %v3457
      %v3707 = vadd.f32 %v3583, %v3458
      %v3708 = vadd.f32 %v3588, %v3459
      %v3709 = vadd.f32 %v3591, %v3460
      %v3710 = vadd.f32 %v3596, %v3461
      %v3711 = vadd.f32 %v3599, %v3462
      %v3712 = vadd.f32 %v3604, %v3463
      %v3713 = vadd.f32 %v3607, %v3464
      %v3714 = vadd.f32 %v3612, %v3465
      %v3715 = vadd.f32 %v3615, %v3466
      %v3716 = vadd.f32 %v3620, %v3467
      %v3717 = vadd.f32 %v3623, %v3468
      %v3718 = vadd.f32 %v3628, %v3469
      %v3719 = vadd.f32 %v3631, %v3470
      %v3720 = vadd.f32 %v3636, %v3471
      %v3721 = vadd.f32 %v3639, %v3472
      %v3722 = vadd.f32 %v3644, %v3473
      %v3723 = vadd.f32 %v3647, %v3474
      %v3724 = vadd.f32 %v3652, %v3475
      %v3725 = vadd.f32 %v3655, %v3476
      %v3726 = vadd.f32 %v3660, %v3477
      %v3727 = vadd.f32 %v3663, %v3478
      %v3728 = vadd.f32 %v3668, %v3479
      %v3729 = vadd.f32 %v3671, %v3480
      %v3730 = vadd.f32 %v3676, %v3481
      %v3731 = vadd.f32 %v3679, %v3482
      %v3732 = vadd.f32 %v3684, %v3483
      %v3733 = vadd.f32 %v3687, %v3484
      %v3734 = vadd.f32 %v3692, %v3485
      %v3735 = vadd.f32 %v3695, %v3486
      %v3736 = vadd.f32 %v3700, %v3487
      %v3737 = vadd.f32 %v3703, %v3488
      %v3738 = vmax.f32 %v3706, 0.0
      %v3739 = vmax.f32 %v3707, 0.0
      %v3740 = vmax.f32 %v3708, 0.0
      %v3741 = vmax.f32 %v3709, 0.0
      %v3742 = vmax.f32 %v3710, 0.0
      %v3743 = vmax.f32 %v3711, 0.0
      %v3744 = vmax.f32 %v3712, 0.0
      %v3745 = vmax.f32 %v3713, 0.0
      %v3746 = vmax.f32 %v3714, 0.0
      %v3747 = vmax.f32 %v3715, 0.0
      %v3748 = vmax.f32 %v3716, 0.0
      %v3749 = vmax.f32 %v3717, 0.0
      %v3750 = vmax.f32 %v3718, 0.0
      %v3751 = vmax.f32 %v3719, 0.0
      %v3752 = vmax.f32 %v3720, 0.0
      %v3753 = vmax.f32 %v3721, 0.0
      %v3754 = vmax.f32 %v3722, 0.0
      %v3755 = vmax.f32 %v3723, 0.0
      %v3756 = vmax.f32 %v3724, 0.0
      %v3757 = vmax.f32 %v3725, 0.0
      %v3758 = vmax.f32 %v3726, 0.0
      %v3759 = vmax.f32 %v3727, 0.0
      %v3760 = vmax.f32 %v3728, 0.0
      %v3761 = vmax.f32 %v3729, 0.0
      %v3762 = vmax.f32 %v3730, 0.0
      %v3763 = vmax.f32 %v3731, 0.0
      %v3764 = vmax.f32 %v3732, 0.0
      %v3765 = vmax.f32 %v3733, 0.0
      %v3766 = vmax.f32 %v3734, 0.0
      %v3767 = vmax.f32 %v3735, 0.0
      %v3768 = vmax.f32 %v3736, 0.0
      %v3769 = vmax.f32 %v3737, 0.0
      %3770 = vst [vmem:[%s224] sm:$0xff] %v3738
      %3771 = vst [vmem:[%s224 + $0x8] sm:$0xff] %v3739
      %3772 = vst [vmem:[%s224 + $0x10] sm:$0xff] %v3740
      %3773 = vst [vmem:[%s224 + $0x18] sm:$0xff] %v3741
      %3774 = vst [vmem:[%s224 + $0x20] sm:$0xff] %v3742
      %3775 = vst [vmem:[%s224 + $0x28] sm:$0xff] %v3743
      %3776 = vst [vmem:[%s224 + $0x30] sm:$0xff] %v3744
      %3777 = vst [vmem:[%s224 + $0x38] sm:$0xff] %v3745
      %3778 = vst [vmem:[%s224 + $0x40] sm:$0xff] %v3746
      %3779 = vst [vmem:[%s224 + $0x48] sm:$0xff] %v3747
      %3780 = vst [vmem:[%s224 + $0x50] sm:$0xff] %v3748
      %3781 = vst [vmem:[%s224 + $0x58] sm:$0xff] %v3749
      %3782 = vst [vmem:[%s224 + $0x60] sm:$0xff] %v3750
      %3783 = vst [vmem:[%s224 + $0x68] sm:$0xff] %v3751
      %3784 = vst [vmem:[%s224 + $0x70] sm:$0xff] %v3752
      %3785 = vst [vmem:[%s224 + $0x78] sm:$0xff] %v3753
      %3786 = vst [vmem:[%s224 + $0x80] sm:$0xff] %v3754
      %3787 = vst [vmem:[%s224 + $0x88] sm:$0xff] %v3755
      %3788 = vst [vmem:[%s224 + $0x90] sm:$0xff] %v3756
      %3789 = vst [vmem:[%s224 + $0x98] sm:$0xff] %v3757
      %3790 = vst [vmem:[%s224 + $0xa0] sm:$0xff] %v3758
      %3791 = vst [vmem:[%s224 + $0xa8] sm:$0xff] %v3759
      %3792 = vst [vmem:[%s224 + $0xb0] sm:$0xff] %v3760
      %3793 = vst [vmem:[%s224 + $0xb8] sm:$0xff] %v3761
      %3794 = vst [vmem:[%s224 + $0xc0] sm:$0xff] %v3762
      %3795 = vst [vmem:[%s224 + $0xc8] sm:$0xff] %v3763
      %3796 = vst [vmem:[%s224 + $0xd0] sm:$0xff] %v3764
      %3797 = vst [vmem:[%s224 + $0xd8] sm:$0xff] %v3765
      %3798 = vst [vmem:[%s224 + $0xe0] sm:$0xff] %v3766
      %3799 = vst [vmem:[%s224 + $0xe8] sm:$0xff] %v3767
      %3800 = vst [vmem:[%s224 + $0xf0] sm:$0xff] %v3768
      %3801 = vst [vmem:[%s224 + $0xf8] sm:$0xff] %v3769
      %p3802 = scmp.lt.s32.totalorder %s16, 1
      %s3803 = scalar_select %p3802, %s16, 1
      %s3804 = smul.addr %s3803, 32
      %s3805 = smul.addr %s3804, 8
      %s3806 = scalar_lea.vmem %s5, %s3805
      // Predicated region
      $region41: #{basic_block_forward.1} parent=39 // pred_check
        %p3807 = pneg %p144
      $region42: #{basic_block_forward.1} parent=39 // pred_check_branch
        %3809 = sbr.rel (%p3807) target = $region44
      $region43: #{basic_block_forward.1} parent=39 // pred_region
        _
      $region44: #{basic_block_forward.1} parent=39 // pred_fallthru
        _
    $region40: #{basic_block_forward.1} parent=5 // pred_fallthru
      _
    %p3810 = scmp.le.s32.totalorder 2, %s11
    // Predicated region
    $region45: #{basic_block_forward.1} parent=5 // pred_check
      %p3811 = pneg %p3810
    $region46: #{basic_block_forward.1} parent=5 // pred_check_branch
      %3813 = sbr.rel (%p3811) target = $region48
    $region47: #{basic_block_forward.1} parent=5 // pred_region
      %s3814 = ssub.s32 %s11, 2
      // Predicated region
      $region49: #{basic_block_forward.1} parent=47 // pred_check
        %p3815 = pneg %p150
      $region50: #{basic_block_forward.1} parent=47 // pred_check_branch
        %3817 = sbr.rel (%p3815) target = $region52
      $region51: #{basic_block_forward.1} parent=47 // pred_region
        %p3818 = scmp.lt.s32.totalorder %s17, 1
        %s3819 = scalar_select %p3818, %s17, 1
        %s3820 = smul.addr %s3819, 32
        %s3821 = smul.addr %s3820, 8
        %s3822 = scalar_lea.vmem %s5, %s3821
      $region52: #{basic_block_forward.1} parent=47 // pred_fallthru
        _
    $region48: #{basic_block_forward.1} parent=5 // pred_fallthru
      _
  $region6: #{basic_block_forward.1} parent=0 // loop_footer
    %s15 = sadd.s32 1, %s11
  $region7: #{basic_block_forward.1} parent=0 // loop_footer_branch
    %10 = sbr.rel target = $region3
  $region8: #{basic_block_forward.1} parent=0 // loop_exit
    _

</llo_original>
